<compile_context>
chip_gen: v5e
topology: v5e:2x2
jax: 0.10.0
libtpu: 0.0.40
codegen_flags: <defaults>
</compile_context>

<pallas_src>
import functools

import jax
import jax.numpy as jnp
from jax.experimental import pallas as pl
from jax.experimental.pallas import tpu as pltpu

LANES = 128                      # all kernel outputs are (rows, 128) lane-dense
DEFAULT_TM = 2048                # target row tile for the matmul grids
_COMPILER_PARAMS = pltpu.CompilerParams(
    dimension_semantics=("parallel",),   # row tiles split across v7x's 2 TCs
    vmem_limit_bytes=32 * 1024 * 1024,
)


def _row_tile(M, target=DEFAULT_TM):
    """Row tile TM: divides M exactly, multiple of 16 (bf16 sublane packing),
    <= target, and yields a grid of >= 2 steps whenever M allows it (v7x)."""
    if M % 32 != 0:
        return M                       # tiny / oddly sized M: one full block
    tm = min(target, M // 2)
    tm -= tm % 16
    while tm >= 16:
        if M % tm == 0:
            return tm
        tm -= 16
    return M


# ---------------------------------------------------------------------------
# Pallas kernels
# ---------------------------------------------------------------------------

def _mm_kernel(a_ref, w_ref, b_ref, o_ref, *, relu):
    acc = jnp.dot(a_ref[...], w_ref[...], preferred_element_type=jnp.float32)
    acc = acc + b_ref[...]
    if relu:
        acc = jnp.maximum(acc, 0.0)
    o_ref[...] = acc.astype(o_ref.dtype)


def _mm_res_kernel(a_ref, w_ref, b_ref, r_ref, o_ref, *, relu):
    acc = jnp.dot(a_ref[...], w_ref[...], preferred_element_type=jnp.float32)
    acc = acc + b_ref[...] + r_ref[...].astype(jnp.float32)
    if relu:
        acc = jnp.maximum(acc, 0.0)
    o_ref[...] = acc.astype(o_ref.dtype)


def _mm_relu_pool_kernel(a_ref, w_ref, b_ref, o_ref):
    # a_ref: (4, TM, K) -- the 4 conv pixels of each 2x2 pool window.
    _, tm, kk = a_ref.shape
    n = o_ref.shape[-1]
    w = w_ref[...]
    b = b_ref[...]
    if tm % 16 == 0:
        # One long MXU stream (4*TM, K) @ (K, 128); both reshapes are
        # layout-preserving because TM is a multiple of the bf16 sublane pack.
        v = jnp.dot(a_ref[...].reshape(4 * tm, kk), w,
                    preferred_element_type=jnp.float32) + b
        v = jnp.maximum(v, 0.0).reshape(4, tm, n)        # ReLU
        out = jnp.maximum(jnp.maximum(v[0], v[1]),
                          jnp.maximum(v[2], v[3]))       # 2x2 max pool
    else:  # safety fallback (never hit for this net's shapes)
        out = None
        for p in range(4):
            vp = jnp.dot(a_ref[p], w, preferred_element_type=jnp.float32) + b
            vp = jnp.maximum(vp, 0.0)
            out = vp if out is None else jnp.maximum(out, vp)
    o_ref[...] = out.astype(o_ref.dtype)


# ---------------------------------------------------------------------------
# pallas_call wrappers
# ---------------------------------------------------------------------------

def matmul_bias(a, w, b, *, relu=False, residual=None,
                out_dtype=jnp.bfloat16, tm=DEFAULT_TM):
    """out = [relu]( a @ w + b [+ residual] ); lane-dense (M, 128) output.

    a: (M, K) bf16; w: (K, 128) bf16; b: (128,) f32; residual: (M, 128) bf16.
    """
    M, K = a.shape
    Kw, N = w.shape
    assert K == Kw and N == LANES
    if a.dtype != jnp.bfloat16:
        a = a.astype(jnp.bfloat16)
    TM = _row_tile(M, tm)
    grid = (M // TM,)

    args = [a, w, b.reshape(1, N).astype(jnp.float32)]
    in_specs = [
        pl.BlockSpec((TM, K), lambda i: (i, 0)),
        pl.BlockSpec((K, N), lambda i: (0, 0)),
        pl.BlockSpec((1, N), lambda i: (0, 0)),
    ]
    if residual is None:
        kern = functools.partial(_mm_kernel, relu=relu)
    else:
        kern = functools.partial(_mm_res_kernel, relu=relu)
        if residual.dtype != jnp.bfloat16:
            residual = residual.astype(jnp.bfloat16)
        args.append(residual)
        in_specs.append(pl.BlockSpec((TM, N), lambda i: (i, 0)))

    return pl.pallas_call(
        kern,
        out_shape=jax.ShapeDtypeStruct((M, N), out_dtype),
        grid=grid,
        in_specs=in_specs,
        out_specs=pl.BlockSpec((TM, N), lambda i: (i, 0)),
        compiler_params=_COMPILER_PARAMS,
    )(*args)


def matmul_relu_pool(a4, w, b, *, tm=DEFAULT_TM):
    """max_p relu(a4[p] @ w + b): fused conv-matmul + bias + ReLU + 2x2 max-pool.

    a4: (4, M, K) bf16 (the 4 pool-window members per pooled output pixel).
    Returns (M, 128) bf16.
    """
    _, M, K = a4.shape
    N = w.shape[1]
    assert N == LANES
    if a4.dtype != jnp.bfloat16:
        a4 = a4.astype(jnp.bfloat16)
    TM = _row_tile(M, tm)
    grid = (M // TM,)
    return pl.pallas_call(
        _mm_relu_pool_kernel,
        out_shape=jax.ShapeDtypeStruct((M, N), jnp.bfloat16),
        grid=grid,
        in_specs=[
            pl.BlockSpec((4, TM, K), lambda i: (0, i, 0)),
            pl.BlockSpec((K, N), lambda i: (0, 0)),
            pl.BlockSpec((1, N), lambda i: (0, 0)),
        ],
        out_specs=pl.BlockSpec((TM, N), lambda i: (i, 0)),
        compiler_params=_COMPILER_PARAMS,
    )(a4, w, b.reshape(1, N).astype(jnp.float32))


# ---------------------------------------------------------------------------
# conv wrappers (bf16 im2col glue + fused kernels)
# ---------------------------------------------------------------------------

def _im2col(x, k, pad, cin):
    """im2col columns in bf16 (XLA glue).  x: (N, H, W, C>=cin) bf16.

    Returns (N*Ho*Wo, k*k*cin) with K ordered (kh, kw, ci) to match the
    packed weight rows, plus (N, Ho, Wo).
    """
    if pad:
        x = jnp.pad(x, ((0, 0), (pad, pad), (pad, pad), (0, 0)))
    n, H, W, _ = x.shape
    ho, wo = H - k + 1, W - k + 1
    cols = jnp.stack(
        [x[:, i:i + ho, j:j + wo, :cin] for i in range(k) for j in range(k)],
        axis=3)                                          # (n, ho, wo, k*k, cin)
    return cols.reshape(n * ho * wo, k * k * cin), (n, ho, wo)


def _pool_cols(x, k, cin):
    """Pool-grouped im2col for a valid conv followed by a 2x2 max-pool.

    a4[p] holds the im2col rows of pool-window member p = (di, dj), built with
    stride-2 window slices so no separate pool-grouping transpose is needed.
    Returns a4: (4, N*h2*w2, k*k*cin) bf16, plus (N, h2, w2).
    """
    n, H, W, _ = x.shape
    ho, wo = H - k + 1, W - k + 1
    h2, w2 = ho // 2, wo // 2
    members = []
    for di in range(2):
        for dj in range(2):
            taps = [
                x[:, di + a:di + a + 2 * h2:2, dj + b:dj + b + 2 * w2:2, :cin]
                for a in range(k) for b in range(k)
            ]
            members.append(jnp.stack(taps, axis=3))      # (n, h2, w2, k*k, cin)
    a4 = jnp.stack(members, axis=0).reshape(4, n * h2 * w2, k * k * cin)
    return a4, (n, h2, w2)


def conv2d(x, w, b, *, cin, k, pad=0, relu=False, residual=None):
    """Conv as bf16 im2col + fused Pallas matmul.  Output (N, Ho, Wo, 128) bf16."""
    a, (n, ho, wo) = _im2col(x, k, pad, cin)
    res = None if residual is None else residual.reshape(n * ho * wo, LANES)
    out = matmul_bias(a, w, b, relu=relu, residual=res)
    return out.reshape(n, ho, wo, LANES)


def conv2d_relu_pool(x, w, b, *, cin, k):
    """conv (valid) + ReLU + 2x2 max-pool, fused into one Pallas kernel."""
    a4, (n, h2, w2) = _pool_cols(x, k, cin)
    out = matmul_relu_pool(a4, w, b)
    return out.reshape(n, h2, w2, LANES)


# ---------------------------------------------------------------------------
# Model: parameters + forward
# ---------------------------------------------------------------------------

def _uniform(key, shape, fan_in):
    bound = 1.0 / jnp.sqrt(jnp.float32(fan_in))
    return jax.random.uniform(key, shape, jnp.float32, -bound, bound)


def _pack_conv(w, b):
    """(kh,kw,cin,cout) f32 -> ((kh*kw*cin), 128) bf16 with zero-padded cols."""
    kh, kw, cin, cout = w.shape
    wm = w.reshape(kh * kw * cin, cout)
    wm = jnp.pad(wm, ((0, 0), (0, LANES - cout))).astype(jnp.bfloat16)
    bp = jnp.pad(b, (0, LANES - cout)).astype(jnp.float32)
    return wm, bp


def _pack_fc(w, b):
    """fc weight (512, 10), rows in PyTorch CHW-flatten order (c*16 + h*4 + w).

    Re-ordered to the NHWC-padded flatten order ((h*4+w)*128 + c) so the
    pre-fc flatten is a plain reshape, then zero-padded to (2048, 128) bf16.
    """
    wc = w.reshape(32, 4, 4, 10).transpose(1, 2, 0, 3)           # (h, w, c, o)
    wc = jnp.pad(wc, ((0, 0), (0, 0), (0, LANES - 32), (0, 0)))  # pad channels
    wm = wc.reshape(4 * 4 * LANES, 10)
    wm = jnp.pad(wm, ((0, 0), (0, LANES - 10))).astype(jnp.bfloat16)
    bp = jnp.pad(b, (0, LANES - 10)).astype(jnp.float32)
    return wm, bp


def init_params(key):
    ks = jax.random.split(key, 14)
    p = {}
    # conv1: Conv2d(1, 16, k=5)
    p["c1_w"], p["c1_b"] = _pack_conv(_uniform(ks[0], (5, 5, 1, 16), 25),
                                      _uniform(ks[1], (16,), 25))
    # conv2: Conv2d(16, 32, k=5)
    p["c2_w"], p["c2_b"] = _pack_conv(_uniform(ks[2], (5, 5, 16, 32), 400),
                                      _uniform(ks[3], (32,), 400))
    # rblock1: two Conv2d(16, 16, k=3, pad=1)
    rb1 = {}
    rb1["w1"], rb1["b1"] = _pack_conv(_uniform(ks[4], (3, 3, 16, 16), 144),
                                      _uniform(ks[5], (16,), 144))
    rb1["w2"], rb1["b2"] = _pack_conv(_uniform(ks[6], (3, 3, 16, 16), 144),
                                      _uniform(ks[7], (16,), 144))
    p["rb1"] = rb1
    # rblock2: two Conv2d(32, 32, k=3, pad=1)
    rb2 = {}
    rb2["w1"], rb2["b1"] = _pack_conv(_uniform(ks[8], (3, 3, 32, 32), 288),
                                      _uniform(ks[9], (32,), 288))
    rb2["w2"], rb2["b2"] = _pack_conv(_uniform(ks[10], (3, 3, 32, 32), 288),
                                      _uniform(ks[11], (32,), 288))
    p["rb2"] = rb2
    # fc: Linear(512, 10)
    p["fc_w"], p["fc_b"] = _pack_fc(_uniform(ks[12], (512, 10), 512),
                                    _uniform(ks[13], (10,), 512))
    return p


def residual_block(x, rp, *, cin):
    # y = relu(conv1(x)); y = conv2(y); return relu(x + y)
    # (residual add + ReLU fused into the second conv's matmul epilogue; the
    #  residual stream is the stored bf16 activation -> half the DMA of f32)
    y = conv2d(x, rp["w1"], rp["b1"], cin=cin, k=3, pad=1, relu=True)
    y = conv2d(y, rp["w2"], rp["b2"], cin=cin, k=3, pad=1, relu=True,
               residual=x)
    return y


def net_forward(x_nchw, p):
    n = x_nchw.shape[0]
    x = jnp.transpose(x_nchw, (0, 2, 3, 1)).astype(jnp.bfloat16)  # (N,28,28,1)
    x = conv2d_relu_pool(x, p["c1_w"], p["c1_b"], cin=1, k=5)     # (N,12,12,128[:16])
    x = residual_block(x, p["rb1"], cin=16)                       # (N,12,12,128[:16])
    x = conv2d_relu_pool(x, p["c2_w"], p["c2_b"], cin=16, k=5)    # (N, 4, 4,128[:32])
    x = residual_block(x, p["rb2"], cin=32)                       # (N, 4, 4,128[:32])
    # fc: the PyTorch CHW view(N,-1) permutation is folded into fc_w rows, so a
    # plain reshape of the padded NHWC activation is sufficient.
    feat = x.reshape(n, 4 * 4 * LANES)                            # (N, 2048) bf16
    out = matmul_bias(feat, p["fc_w"], p["fc_b"], relu=False,
                      out_dtype=jnp.float32)                      # (N, 128) f32
    return out[:, :10]


if __name__ == "__main__":
    key = jax.random.PRNGKey(0)
    pkey, xkey = jax.random.split(key)
    params = init_params(pkey)
    # 28x28 input so the flattened feature dim is 512 (nn.Linear(512, 10));
    # small batch for the smoke test.
    x = jax.random.normal(xkey, (2, 1, 28, 28), jnp.float32)

    out = jax.jit(net_forward)(x, params)
    out = jax.block_until_ready(out)
    assert out.shape == (2, 10) and out.dtype == jnp.float32
    assert bool(jnp.all(jnp.isfinite(out)))
    print("KERNEL_OK")
</pallas_src>

<mosaic_0001>
module attributes {stable_mosaic.version = 11 : i64} {
  func.func @_mm_relu_pool_kernel(%arg0: i32, %arg1: memref<4x144x25xbf16, #tpu.memory_space<vmem>>, %arg2: memref<25x128xbf16, #tpu.memory_space<vmem>>, %arg3: memref<1x128xf32, #tpu.memory_space<vmem>>, %arg4: memref<144x128xbf16, #tpu.memory_space<vmem>>) attributes {dimension_semantics = [#tpu.dimension_semantics<parallel>], iteration_bounds = array<i64: 2>, scalar_prefetch = 0 : i64, scratch_operands = 0 : i64, tpu.core_type = #tpu.core_type<tc>, window_params = [{transform_indices = @transform_0, window_bounds = array<i64: 4, 144, 25>}, {pipeline_mode = #tpu.pipeline_mode<synchronous>, transform_indices = @transform_1, window_bounds = array<i64: 25, 128>}, {pipeline_mode = #tpu.pipeline_mode<synchronous>, transform_indices = @transform_2, window_bounds = array<i64: 1, 128>}, {transform_indices = @transform_3, window_bounds = array<i64: 144, 128>}]} {
    %c0 = arith.constant 0 : index
    %c0_0 = arith.constant 0 : index
    %0 = vector.load %arg2[%c0, %c0_0] : memref<25x128xbf16, #tpu.memory_space<vmem>>, vector<25x128xbf16>
    %c0_1 = arith.constant 0 : index
    %c0_2 = arith.constant 0 : index
    %1 = vector.load %arg3[%c0_1, %c0_2] : memref<1x128xf32, #tpu.memory_space<vmem>>, vector<1x128xf32>
    %c0_3 = arith.constant 0 : index
    %c0_4 = arith.constant 0 : index
    %c0_5 = arith.constant 0 : index
    %2 = vector.load %arg1[%c0_3, %c0_4, %c0_5] : memref<4x144x25xbf16, #tpu.memory_space<vmem>>, vector<4x144x25xbf16>
    %3 = vector.shape_cast %2 : vector<4x144x25xbf16> to vector<576x25xbf16>
    %cst = arith.constant dense<0.000000e+00> : vector<576x128xf32>
    %4 = tpu.matmul %3, %0, %cst {dimension_numbers = #tpu.dot_dimension_numbers<[1], [0], [0], [1], [0, 0, 1, 1], [], []>} : vector<576x25xbf16>, vector<25x128xbf16>, vector<576x128xf32> -> vector<576x128xf32>
    %5 = vector.broadcast %1 : vector<1x128xf32> to vector<576x128xf32>
    %6 = arith.addf %4, %5 : vector<576x128xf32>
    %cst_6 = arith.constant 0.000000e+00 : f32
    %7 = vector.broadcast %cst_6 : f32 to vector<576x128xf32>
    %8 = arith.maximumf %6, %7 : vector<576x128xf32>
    %9 = vector.shape_cast %8 : vector<576x128xf32> to vector<4x144x128xf32>
    %10 = vector.extract_strided_slice %9 {offsets = [0, 0, 0], sizes = [1, 144, 128], strides = [1, 1, 1]} : vector<4x144x128xf32> to vector<1x144x128xf32>
    %11 = vector.shape_cast %10 : vector<1x144x128xf32> to vector<144x128xf32>
    %12 = vector.extract_strided_slice %9 {offsets = [1, 0, 0], sizes = [1, 144, 128], strides = [1, 1, 1]} : vector<4x144x128xf32> to vector<1x144x128xf32>
    %13 = vector.shape_cast %12 : vector<1x144x128xf32> to vector<144x128xf32>
    %14 = arith.maximumf %11, %13 : vector<144x128xf32>
    %15 = vector.extract_strided_slice %9 {offsets = [2, 0, 0], sizes = [1, 144, 128], strides = [1, 1, 1]} : vector<4x144x128xf32> to vector<1x144x128xf32>
    %16 = vector.shape_cast %15 : vector<1x144x128xf32> to vector<144x128xf32>
    %17 = vector.extract_strided_slice %9 {offsets = [3, 0, 0], sizes = [1, 144, 128], strides = [1, 1, 1]} : vector<4x144x128xf32> to vector<1x144x128xf32>
    %18 = vector.shape_cast %17 : vector<1x144x128xf32> to vector<144x128xf32>
    %19 = arith.maximumf %16, %18 : vector<144x128xf32>
    %20 = arith.maximumf %14, %19 : vector<144x128xf32>
    %21 = arith.truncf %20 : vector<144x128xf32> to vector<144x128xbf16>
    %c0_7 = arith.constant 0 : index
    %c0_8 = arith.constant 0 : index
    %22 = vector.load %arg4[%c0_7, %c0_8] : memref<144x128xbf16, #tpu.memory_space<vmem>>, vector<144x128xbf16>
    tpu.vector_store %arg4[%c0_7, %c0_8], %21 {strides = array<i32>} : memref<144x128xbf16, #tpu.memory_space<vmem>>, vector<144x128xbf16>,
    return
  }
  func.func @transform_0(%arg0: i32) -> (i32, i32, i32) {
    %c0_i32 = arith.constant 0 : i32
    %c0_i32_0 = arith.constant 0 : i32
    %c0_i32_1 = arith.constant 0 : i32
    return %c0_i32, %arg0, %c0_i32_0 : i32, i32, i32
  }
  func.func @transform_1(%arg0: i32) -> (i32, i32) {
    %c0_i32 = arith.constant 0 : i32
    %c0_i32_0 = arith.constant 0 : i32
    %c0_i32_1 = arith.constant 0 : i32
    return %c0_i32, %c0_i32_0 : i32, i32
  }
  func.func @transform_2(%arg0: i32) -> (i32, i32) {
    %c0_i32 = arith.constant 0 : i32
    %c0_i32_0 = arith.constant 0 : i32
    %c0_i32_1 = arith.constant 0 : i32
    return %c0_i32, %c0_i32_0 : i32, i32
  }
  func.func @transform_3(%arg0: i32) -> (i32, i32) {
    %c0_i32 = arith.constant 0 : i32
    %c0_i32_0 = arith.constant 0 : i32
    return %arg0, %c0_i32 : i32, i32
  }
}

module attributes {stable_mosaic.version = 11 : i64} {
  func.func @_mm_kernel(%arg0: i32, %arg1: memref<144x144xbf16, #tpu.memory_space<vmem>>, %arg2: memref<144x128xbf16, #tpu.memory_space<vmem>>, %arg3: memref<1x128xf32, #tpu.memory_space<vmem>>, %arg4: memref<144x128xbf16, #tpu.memory_space<vmem>>) attributes {dimension_semantics = [#tpu.dimension_semantics<parallel>], iteration_bounds = array<i64: 2>, scalar_prefetch = 0 : i64, scratch_operands = 0 : i64, tpu.core_type = #tpu.core_type<tc>, window_params = [{transform_indices = @transform_0, window_bounds = array<i64: 144, 144>}, {pipeline_mode = #tpu.pipeline_mode<synchronous>, transform_indices = @transform_1, window_bounds = array<i64: 144, 128>}, {pipeline_mode = #tpu.pipeline_mode<synchronous>, transform_indices = @transform_2, window_bounds = array<i64: 1, 128>}, {transform_indices = @transform_3, window_bounds = array<i64: 144, 128>}]} {
    %c0 = arith.constant 0 : index
    %c0_0 = arith.constant 0 : index
    %0 = vector.load %arg1[%c0, %c0_0] : memref<144x144xbf16, #tpu.memory_space<vmem>>, vector<144x144xbf16>
    %c0_1 = arith.constant 0 : index
    %c0_2 = arith.constant 0 : index
    %1 = vector.load %arg2[%c0_1, %c0_2] : memref<144x128xbf16, #tpu.memory_space<vmem>>, vector<144x128xbf16>
    %cst = arith.constant dense<0.000000e+00> : vector<144x128xf32>
    %2 = tpu.matmul %0, %1, %cst {dimension_numbers = #tpu.dot_dimension_numbers<[1], [0], [0], [1], [0, 0, 1, 1], [], []>} : vector<144x144xbf16>, vector<144x128xbf16>, vector<144x128xf32> -> vector<144x128xf32>
    %c0_3 = arith.constant 0 : index
    %c0_4 = arith.constant 0 : index
    %3 = vector.load %arg3[%c0_3, %c0_4] : memref<1x128xf32, #tpu.memory_space<vmem>>, vector<1x128xf32>
    %4 = vector.broadcast %3 : vector<1x128xf32> to vector<144x128xf32>
    %5 = arith.addf %2, %4 : vector<144x128xf32>
    %cst_5 = arith.constant 0.000000e+00 : f32
    %6 = vector.broadcast %cst_5 : f32 to vector<144x128xf32>
    %7 = arith.maximumf %5, %6 : vector<144x128xf32>
    %8 = arith.truncf %7 : vector<144x128xf32> to vector<144x128xbf16>
    %c0_6 = arith.constant 0 : index
    %c0_7 = arith.constant 0 : index
    %9 = vector.load %arg4[%c0_6, %c0_7] : memref<144x128xbf16, #tpu.memory_space<vmem>>, vector<144x128xbf16>
    tpu.vector_store %arg4[%c0_6, %c0_7], %8 {strides = array<i32>} : memref<144x128xbf16, #tpu.memory_space<vmem>>, vector<144x128xbf16>,
    return
  }
  func.func @transform_0(%arg0: i32) -> (i32, i32) {
    %c0_i32 = arith.constant 0 : i32
    %c0_i32_0 = arith.constant 0 : i32
    return %arg0, %c0_i32 : i32, i32
  }
  func.func @transform_1(%arg0: i32) -> (i32, i32) {
    %c0_i32 = arith.constant 0 : i32
    %c0_i32_0 = arith.constant 0 : i32
    %c0_i32_1 = arith.constant 0 : i32
    return %c0_i32, %c0_i32_0 : i32, i32
  }
  func.func @transform_2(%arg0: i32) -> (i32, i32) {
    %c0_i32 = arith.constant 0 : i32
    %c0_i32_0 = arith.constant 0 : i32
    %c0_i32_1 = arith.constant 0 : i32
    return %c0_i32, %c0_i32_0 : i32, i32
  }
  func.func @transform_3(%arg0: i32) -> (i32, i32) {
    %c0_i32 = arith.constant 0 : i32
    %c0_i32_0 = arith.constant 0 : i32
    return %arg0, %c0_i32 : i32, i32
  }
}

module attributes {stable_mosaic.version = 11 : i64} {
  func.func @_mm_res_kernel(%arg0: i32, %arg1: memref<144x144xbf16, #tpu.memory_space<vmem>>, %arg2: memref<144x128xbf16, #tpu.memory_space<vmem>>, %arg3: memref<1x128xf32, #tpu.memory_space<vmem>>, %arg4: memref<144x128xbf16, #tpu.memory_space<vmem>>, %arg5: memref<144x128xbf16, #tpu.memory_space<vmem>>) attributes {dimension_semantics = [#tpu.dimension_semantics<parallel>], iteration_bounds = array<i64: 2>, scalar_prefetch = 0 : i64, scratch_operands = 0 : i64, tpu.core_type = #tpu.core_type<tc>, window_params = [{transform_indices = @transform_0, window_bounds = array<i64: 144, 144>}, {pipeline_mode = #tpu.pipeline_mode<synchronous>, transform_indices = @transform_1, window_bounds = array<i64: 144, 128>}, {pipeline_mode = #tpu.pipeline_mode<synchronous>, transform_indices = @transform_2, window_bounds = array<i64: 1, 128>}, {transform_indices = @transform_3, window_bounds = array<i64: 144, 128>}, {transform_indices = @transform_4, window_bounds = array<i64: 144, 128>}]} {
    %c0 = arith.constant 0 : index
    %c0_0 = arith.constant 0 : index
    %0 = vector.load %arg1[%c0, %c0_0] : memref<144x144xbf16, #tpu.memory_space<vmem>>, vector<144x144xbf16>
    %c0_1 = arith.constant 0 : index
    %c0_2 = arith.constant 0 : index
    %1 = vector.load %arg2[%c0_1, %c0_2] : memref<144x128xbf16, #tpu.memory_space<vmem>>, vector<144x128xbf16>
    %cst = arith.constant dense<0.000000e+00> : vector<144x128xf32>
    %2 = tpu.matmul %0, %1, %cst {dimension_numbers = #tpu.dot_dimension_numbers<[1], [0], [0], [1], [0, 0, 1, 1], [], []>} : vector<144x144xbf16>, vector<144x128xbf16>, vector<144x128xf32> -> vector<144x128xf32>
    %c0_3 = arith.constant 0 : index
    %c0_4 = arith.constant 0 : index
    %3 = vector.load %arg3[%c0_3, %c0_4] : memref<1x128xf32, #tpu.memory_space<vmem>>, vector<1x128xf32>
    %4 = vector.broadcast %3 : vector<1x128xf32> to vector<144x128xf32>
    %5 = arith.addf %2, %4 : vector<144x128xf32>
    %c0_5 = arith.constant 0 : index
    %c0_6 = arith.constant 0 : index
    %6 = vector.load %arg4[%c0_5, %c0_6] : memref<144x128xbf16, #tpu.memory_space<vmem>>, vector<144x128xbf16>
    %7 = arith.extf %6 : vector<144x128xbf16> to vector<144x128xf32>
    %8 = arith.addf %5, %7 : vector<144x128xf32>
    %cst_7 = arith.constant 0.000000e+00 : f32
    %9 = vector.broadcast %cst_7 : f32 to vector<144x128xf32>
    %10 = arith.maximumf %8, %9 : vector<144x128xf32>
    %11 = arith.truncf %10 : vector<144x128xf32> to vector<144x128xbf16>
    %c0_8 = arith.constant 0 : index
    %c0_9 = arith.constant 0 : index
    %12 = vector.load %arg5[%c0_8, %c0_9] : memref<144x128xbf16, #tpu.memory_space<vmem>>, vector<144x128xbf16>
    tpu.vector_store %arg5[%c0_8, %c0_9], %11 {strides = array<i32>} : memref<144x128xbf16, #tpu.memory_space<vmem>>, vector<144x128xbf16>,
    return
  }
  func.func @transform_0(%arg0: i32) -> (i32, i32) {
    %c0_i32 = arith.constant 0 : i32
    %c0_i32_0 = arith.constant 0 : i32
    return %arg0, %c0_i32 : i32, i32
  }
  func.func @transform_1(%arg0: i32) -> (i32, i32) {
    %c0_i32 = arith.constant 0 : i32
    %c0_i32_0 = arith.constant 0 : i32
    %c0_i32_1 = arith.constant 0 : i32
    return %c0_i32, %c0_i32_0 : i32, i32
  }
  func.func @transform_2(%arg0: i32) -> (i32, i32) {
    %c0_i32 = arith.constant 0 : i32
    %c0_i32_0 = arith.constant 0 : i32
    %c0_i32_1 = arith.constant 0 : i32
    return %c0_i32, %c0_i32_0 : i32, i32
  }
  func.func @transform_3(%arg0: i32) -> (i32, i32) {
    %c0_i32 = arith.constant 0 : i32
    %c0_i32_0 = arith.constant 0 : i32
    return %arg0, %c0_i32 : i32, i32
  }
  func.func @transform_4(%arg0: i32) -> (i32, i32) {
    %c0_i32 = arith.constant 0 : i32
    %c0_i32_0 = arith.constant 0 : i32
    return %arg0, %c0_i32 : i32, i32
  }
}

module attributes {stable_mosaic.version = 11 : i64} {
  func.func @_mm_relu_pool_kernel(%arg0: i32, %arg1: memref<4x16x400xbf16, #tpu.memory_space<vmem>>, %arg2: memref<400x128xbf16, #tpu.memory_space<vmem>>, %arg3: memref<1x128xf32, #tpu.memory_space<vmem>>, %arg4: memref<16x128xbf16, #tpu.memory_space<vmem>>) attributes {dimension_semantics = [#tpu.dimension_semantics<parallel>], iteration_bounds = array<i64: 2>, scalar_prefetch = 0 : i64, scratch_operands = 0 : i64, tpu.core_type = #tpu.core_type<tc>, window_params = [{transform_indices = @transform_0, window_bounds = array<i64: 4, 16, 400>}, {pipeline_mode = #tpu.pipeline_mode<synchronous>, transform_indices = @transform_1, window_bounds = array<i64: 400, 128>}, {pipeline_mode = #tpu.pipeline_mode<synchronous>, transform_indices = @transform_2, window_bounds = array<i64: 1, 128>}, {transform_indices = @transform_3, window_bounds = array<i64: 16, 128>}]} {
    %c0 = arith.constant 0 : index
    %c0_0 = arith.constant 0 : index
    %0 = vector.load %arg2[%c0, %c0_0] : memref<400x128xbf16, #tpu.memory_space<vmem>>, vector<400x128xbf16>
    %c0_1 = arith.constant 0 : index
    %c0_2 = arith.constant 0 : index
    %1 = vector.load %arg3[%c0_1, %c0_2] : memref<1x128xf32, #tpu.memory_space<vmem>>, vector<1x128xf32>
    %c0_3 = arith.constant 0 : index
    %c0_4 = arith.constant 0 : index
    %c0_5 = arith.constant 0 : index
    %2 = vector.load %arg1[%c0_3, %c0_4, %c0_5] : memref<4x16x400xbf16, #tpu.memory_space<vmem>>, vector<4x16x400xbf16>
    %3 = vector.shape_cast %2 : vector<4x16x400xbf16> to vector<64x400xbf16>
    %cst = arith.constant dense<0.000000e+00> : vector<64x128xf32>
    %4 = tpu.matmul %3, %0, %cst {dimension_numbers = #tpu.dot_dimension_numbers<[1], [0], [0], [1], [0, 0, 1, 1], [], []>} : vector<64x400xbf16>, vector<400x128xbf16>, vector<64x128xf32> -> vector<64x128xf32>
    %5 = vector.broadcast %1 : vector<1x128xf32> to vector<64x128xf32>
    %6 = arith.addf %4, %5 : vector<64x128xf32>
    %cst_6 = arith.constant 0.000000e+00 : f32
    %7 = vector.broadcast %cst_6 : f32 to vector<64x128xf32>
    %8 = arith.maximumf %6, %7 : vector<64x128xf32>
    %9 = vector.shape_cast %8 : vector<64x128xf32> to vector<4x16x128xf32>
    %10 = vector.extract_strided_slice %9 {offsets = [0, 0, 0], sizes = [1, 16, 128], strides = [1, 1, 1]} : vector<4x16x128xf32> to vector<1x16x128xf32>
    %11 = vector.shape_cast %10 : vector<1x16x128xf32> to vector<16x128xf32>
    %12 = vector.extract_strided_slice %9 {offsets = [1, 0, 0], sizes = [1, 16, 128], strides = [1, 1, 1]} : vector<4x16x128xf32> to vector<1x16x128xf32>
    %13 = vector.shape_cast %12 : vector<1x16x128xf32> to vector<16x128xf32>
    %14 = arith.maximumf %11, %13 : vector<16x128xf32>
    %15 = vector.extract_strided_slice %9 {offsets = [2, 0, 0], sizes = [1, 16, 128], strides = [1, 1, 1]} : vector<4x16x128xf32> to vector<1x16x128xf32>
    %16 = vector.shape_cast %15 : vector<1x16x128xf32> to vector<16x128xf32>
    %17 = vector.extract_strided_slice %9 {offsets = [3, 0, 0], sizes = [1, 16, 128], strides = [1, 1, 1]} : vector<4x16x128xf32> to vector<1x16x128xf32>
    %18 = vector.shape_cast %17 : vector<1x16x128xf32> to vector<16x128xf32>
    %19 = arith.maximumf %16, %18 : vector<16x128xf32>
    %20 = arith.maximumf %14, %19 : vector<16x128xf32>
    %21 = arith.truncf %20 : vector<16x128xf32> to vector<16x128xbf16>
    %c0_7 = arith.constant 0 : index
    %c0_8 = arith.constant 0 : index
    %22 = vector.load %arg4[%c0_7, %c0_8] : memref<16x128xbf16, #tpu.memory_space<vmem>>, vector<16x128xbf16>
    tpu.vector_store %arg4[%c0_7, %c0_8], %21 {strides = array<i32>} : memref<16x128xbf16, #tpu.memory_space<vmem>>, vector<16x128xbf16>,
    return
  }
  func.func @transform_0(%arg0: i32) -> (i32, i32, i32) {
    %c0_i32 = arith.constant 0 : i32
    %c0_i32_0 = arith.constant 0 : i32
    %c0_i32_1 = arith.constant 0 : i32
    return %c0_i32, %arg0, %c0_i32_0 : i32, i32, i32
  }
  func.func @transform_1(%arg0: i32) -> (i32, i32) {
    %c0_i32 = arith.constant 0 : i32
    %c0_i32_0 = arith.constant 0 : i32
    %c0_i32_1 = arith.constant 0 : i32
    return %c0_i32, %c0_i32_0 : i32, i32
  }
  func.func @transform_2(%arg0: i32) -> (i32, i32) {
    %c0_i32 = arith.constant 0 : i32
    %c0_i32_0 = arith.constant 0 : i32
    %c0_i32_1 = arith.constant 0 : i32
    return %c0_i32, %c0_i32_0 : i32, i32
  }
  func.func @transform_3(%arg0: i32) -> (i32, i32) {
    %c0_i32 = arith.constant 0 : i32
    %c0_i32_0 = arith.constant 0 : i32
    return %arg0, %c0_i32 : i32, i32
  }
}

module attributes {stable_mosaic.version = 11 : i64} {
  func.func @_mm_res_kernel(%arg0: i32, %arg1: memref<16x288xbf16, #tpu.memory_space<vmem>>, %arg2: memref<288x128xbf16, #tpu.memory_space<vmem>>, %arg3: memref<1x128xf32, #tpu.memory_space<vmem>>, %arg4: memref<16x128xbf16, #tpu.memory_space<vmem>>, %arg5: memref<16x128xbf16, #tpu.memory_space<vmem>>) attributes {dimension_semantics = [#tpu.dimension_semantics<parallel>], iteration_bounds = array<i64: 2>, scalar_prefetch = 0 : i64, scratch_operands = 0 : i64, tpu.core_type = #tpu.core_type<tc>, window_params = [{transform_indices = @transform_0, window_bounds = array<i64: 16, 288>}, {pipeline_mode = #tpu.pipeline_mode<synchronous>, transform_indices = @transform_1, window_bounds = array<i64: 288, 128>}, {pipeline_mode = #tpu.pipeline_mode<synchronous>, transform_indices = @transform_2, window_bounds = array<i64: 1, 128>}, {transform_indices = @transform_3, window_bounds = array<i64: 16, 128>}, {transform_indices = @transform_4, window_bounds = array<i64: 16, 128>}]} {
    %c0 = arith.constant 0 : index
    %c0_0 = arith.constant 0 : index
    %0 = vector.load %arg1[%c0, %c0_0] : memref<16x288xbf16, #tpu.memory_space<vmem>>, vector<16x288xbf16>
    %c0_1 = arith.constant 0 : index
    %c0_2 = arith.constant 0 : index
    %1 = vector.load %arg2[%c0_1, %c0_2] : memref<288x128xbf16, #tpu.memory_space<vmem>>, vector<288x128xbf16>
    %cst = arith.constant dense<0.000000e+00> : vector<16x128xf32>
    %2 = tpu.matmul %0, %1, %cst {dimension_numbers = #tpu.dot_dimension_numbers<[1], [0], [0], [1], [0, 0, 1, 1], [], []>} : vector<16x288xbf16>, vector<288x128xbf16>, vector<16x128xf32> -> vector<16x128xf32>
    %c0_3 = arith.constant 0 : index
    %c0_4 = arith.constant 0 : index
    %3 = vector.load %arg3[%c0_3, %c0_4] : memref<1x128xf32, #tpu.memory_space<vmem>>, vector<1x128xf32>
    %4 = vector.broadcast %3 : vector<1x128xf32> to vector<16x128xf32>
    %5 = arith.addf %2, %4 : vector<16x128xf32>
    %c0_5 = arith.constant 0 : index
    %c0_6 = arith.constant 0 : index
    %6 = vector.load %arg4[%c0_5, %c0_6] : memref<16x128xbf16, #tpu.memory_space<vmem>>, vector<16x128xbf16>
    %7 = arith.extf %6 : vector<16x128xbf16> to vector<16x128xf32>
    %8 = arith.addf %5, %7 : vector<16x128xf32>
    %cst_7 = arith.constant 0.000000e+00 : f32
    %9 = vector.broadcast %cst_7 : f32 to vector<16x128xf32>
    %10 = arith.maximumf %8, %9 : vector<16x128xf32>
    %11 = arith.truncf %10 : vector<16x128xf32> to vector<16x128xbf16>
    %c0_8 = arith.constant 0 : index
    %c0_9 = arith.constant 0 : index
    %12 = vector.load %arg5[%c0_8, %c0_9] : memref<16x128xbf16, #tpu.memory_space<vmem>>, vector<16x128xbf16>
    tpu.vector_store %arg5[%c0_8, %c0_9], %11 {strides = array<i32>} : memref<16x128xbf16, #tpu.memory_space<vmem>>, vector<16x128xbf16>,
    return
  }
  func.func @transform_0(%arg0: i32) -> (i32, i32) {
    %c0_i32 = arith.constant 0 : i32
    %c0_i32_0 = arith.constant 0 : i32
    return %arg0, %c0_i32 : i32, i32
  }
  func.func @transform_1(%arg0: i32) -> (i32, i32) {
    %c0_i32 = arith.constant 0 : i32
    %c0_i32_0 = arith.constant 0 : i32
    %c0_i32_1 = arith.constant 0 : i32
    return %c0_i32, %c0_i32_0 : i32, i32
  }
  func.func @transform_2(%arg0: i32) -> (i32, i32) {
    %c0_i32 = arith.constant 0 : i32
    %c0_i32_0 = arith.constant 0 : i32
    %c0_i32_1 = arith.constant 0 : i32
    return %c0_i32, %c0_i32_0 : i32, i32
  }
  func.func @transform_3(%arg0: i32) -> (i32, i32) {
    %c0_i32 = arith.constant 0 : i32
    %c0_i32_0 = arith.constant 0 : i32
    return %arg0, %c0_i32 : i32, i32
  }
  func.func @transform_4(%arg0: i32) -> (i32, i32) {
    %c0_i32 = arith.constant 0 : i32
    %c0_i32_0 = arith.constant 0 : i32
    return %arg0, %c0_i32 : i32, i32
  }
}

module attributes {stable_mosaic.version = 11 : i64} {
  func.func @_mm_kernel(%arg0: i32, %arg1: memref<16x288xbf16, #tpu.memory_space<vmem>>, %arg2: memref<288x128xbf16, #tpu.memory_space<vmem>>, %arg3: memref<1x128xf32, #tpu.memory_space<vmem>>, %arg4: memref<16x128xbf16, #tpu.memory_space<vmem>>) attributes {dimension_semantics = [#tpu.dimension_semantics<parallel>], iteration_bounds = array<i64: 2>, scalar_prefetch = 0 : i64, scratch_operands = 0 : i64, tpu.core_type = #tpu.core_type<tc>, window_params = [{transform_indices = @transform_0, window_bounds = array<i64: 16, 288>}, {pipeline_mode = #tpu.pipeline_mode<synchronous>, transform_indices = @transform_1, window_bounds = array<i64: 288, 128>}, {pipeline_mode = #tpu.pipeline_mode<synchronous>, transform_indices = @transform_2, window_bounds = array<i64: 1, 128>}, {transform_indices = @transform_3, window_bounds = array<i64: 16, 128>}]} {
    %c0 = arith.constant 0 : index
    %c0_0 = arith.constant 0 : index
    %0 = vector.load %arg1[%c0, %c0_0] : memref<16x288xbf16, #tpu.memory_space<vmem>>, vector<16x288xbf16>
    %c0_1 = arith.constant 0 : index
    %c0_2 = arith.constant 0 : index
    %1 = vector.load %arg2[%c0_1, %c0_2] : memref<288x128xbf16, #tpu.memory_space<vmem>>, vector<288x128xbf16>
    %cst = arith.constant dense<0.000000e+00> : vector<16x128xf32>
    %2 = tpu.matmul %0, %1, %cst {dimension_numbers = #tpu.dot_dimension_numbers<[1], [0], [0], [1], [0, 0, 1, 1], [], []>} : vector<16x288xbf16>, vector<288x128xbf16>, vector<16x128xf32> -> vector<16x128xf32>
    %c0_3 = arith.constant 0 : index
    %c0_4 = arith.constant 0 : index
    %3 = vector.load %arg3[%c0_3, %c0_4] : memref<1x128xf32, #tpu.memory_space<vmem>>, vector<1x128xf32>
    %4 = vector.broadcast %3 : vector<1x128xf32> to vector<16x128xf32>
    %5 = arith.addf %2, %4 : vector<16x128xf32>
    %cst_5 = arith.constant 0.000000e+00 : f32
    %6 = vector.broadcast %cst_5 : f32 to vector<16x128xf32>
    %7 = arith.maximumf %5, %6 : vector<16x128xf32>
    %8 = arith.truncf %7 : vector<16x128xf32> to vector<16x128xbf16>
    %c0_6 = arith.constant 0 : index
    %c0_7 = arith.constant 0 : index
    %9 = vector.load %arg4[%c0_6, %c0_7] : memref<16x128xbf16, #tpu.memory_space<vmem>>, vector<16x128xbf16>
    tpu.vector_store %arg4[%c0_6, %c0_7], %8 {strides = array<i32>} : memref<16x128xbf16, #tpu.memory_space<vmem>>, vector<16x128xbf16>,
    return
  }
  func.func @transform_0(%arg0: i32) -> (i32, i32) {
    %c0_i32 = arith.constant 0 : i32
    %c0_i32_0 = arith.constant 0 : i32
    return %arg0, %c0_i32 : i32, i32
  }
  func.func @transform_1(%arg0: i32) -> (i32, i32) {
    %c0_i32 = arith.constant 0 : i32
    %c0_i32_0 = arith.constant 0 : i32
    %c0_i32_1 = arith.constant 0 : i32
    return %c0_i32, %c0_i32_0 : i32, i32
  }
  func.func @transform_2(%arg0: i32) -> (i32, i32) {
    %c0_i32 = arith.constant 0 : i32
    %c0_i32_0 = arith.constant 0 : i32
    %c0_i32_1 = arith.constant 0 : i32
    return %c0_i32, %c0_i32_0 : i32, i32
  }
  func.func @transform_3(%arg0: i32) -> (i32, i32) {
    %c0_i32 = arith.constant 0 : i32
    %c0_i32_0 = arith.constant 0 : i32
    return %arg0, %c0_i32 : i32, i32
  }
}

module attributes {stable_mosaic.version = 11 : i64} {
  func.func @_mm_kernel(%arg0: i32, %arg1: memref<2x2048xbf16, #tpu.memory_space<vmem>>, %arg2: memref<2048x128xbf16, #tpu.memory_space<vmem>>, %arg3: memref<1x128xf32, #tpu.memory_space<vmem>>, %arg4: memref<2x128xf32, #tpu.memory_space<vmem>>) attributes {dimension_semantics = [#tpu.dimension_semantics<parallel>], iteration_bounds = array<i64: 1>, scalar_prefetch = 0 : i64, scratch_operands = 0 : i64, tpu.core_type = #tpu.core_type<tc>, window_params = [{transform_indices = @transform_0, window_bounds = array<i64: 2, 2048>}, {pipeline_mode = #tpu.pipeline_mode<synchronous>, transform_indices = @transform_1, window_bounds = array<i64: 2048, 128>}, {pipeline_mode = #tpu.pipeline_mode<synchronous>, transform_indices = @transform_2, window_bounds = array<i64: 1, 128>}, {transform_indices = @transform_3, window_bounds = array<i64: 2, 128>}]} {
    %c0 = arith.constant 0 : index
    %c0_0 = arith.constant 0 : index
    %0 = vector.load %arg1[%c0, %c0_0] : memref<2x2048xbf16, #tpu.memory_space<vmem>>, vector<2x2048xbf16>
    %c0_1 = arith.constant 0 : index
    %c0_2 = arith.constant 0 : index
    %1 = vector.load %arg2[%c0_1, %c0_2] : memref<2048x128xbf16, #tpu.memory_space<vmem>>, vector<2048x128xbf16>
    %cst = arith.constant dense<0.000000e+00> : vector<2x128xf32>
    %2 = tpu.matmul %0, %1, %cst {dimension_numbers = #tpu.dot_dimension_numbers<[1], [0], [0], [1], [0, 0, 1, 1], [], []>} : vector<2x2048xbf16>, vector<2048x128xbf16>, vector<2x128xf32> -> vector<2x128xf32>
    %c0_3 = arith.constant 0 : index
    %c0_4 = arith.constant 0 : index
    %3 = vector.load %arg3[%c0_3, %c0_4] : memref<1x128xf32, #tpu.memory_space<vmem>>, vector<1x128xf32>
    %4 = vector.broadcast %3 : vector<1x128xf32> to vector<2x128xf32>
    %5 = arith.addf %2, %4 : vector<2x128xf32>
    %c0_5 = arith.constant 0 : index
    %c0_6 = arith.constant 0 : index
    %6 = vector.load %arg4[%c0_5, %c0_6] : memref<2x128xf32, #tpu.memory_space<vmem>>, vector<2x128xf32>
    tpu.vector_store %arg4[%c0_5, %c0_6], %5 {strides = array<i32>} : memref<2x128xf32, #tpu.memory_space<vmem>>, vector<2x128xf32>,
    return
  }
  func.func @transform_0(%arg0: i32) -> (i32, i32) {
    %c0_i32 = arith.constant 0 : i32
    %c0_i32_0 = arith.constant 0 : i32
    return %arg0, %c0_i32 : i32, i32
  }
  func.func @transform_1(%arg0: i32) -> (i32, i32) {
    %c0_i32 = arith.constant 0 : i32
    %c0_i32_0 = arith.constant 0 : i32
    %c0_i32_1 = arith.constant 0 : i32
    return %c0_i32, %c0_i32_0 : i32, i32
  }
  func.func @transform_2(%arg0: i32) -> (i32, i32) {
    %c0_i32 = arith.constant 0 : i32
    %c0_i32_0 = arith.constant 0 : i32
    %c0_i32_1 = arith.constant 0 : i32
    return %c0_i32, %c0_i32_0 : i32, i32
  }
  func.func @transform_3(%arg0: i32) -> (i32, i32) {
    %c0_i32 = arith.constant 0 : i32
    %c0_i32_0 = arith.constant 0 : i32
    return %arg0, %c0_i32 : i32, i32
  }
}

</mosaic_0001>

<llo_original>
// kernel: net_forward.7
$region0: #{net_forward.7}
  #allocation0 [shape = 'u32[]', space=smem, size = 0x4, offset = 0x4, fixed_abs, tag = 'smem constant byte address 0x4 - core index']
  #allocation1 [shape = 'u32[72,128]{1,0:T(1,128)}', space=vmem, size = 0x9000, scoped, tag = 'internal scratch']
  %s0 = inlined_call_operand.vmem [shape: bf16[4,288,25], index: 0, kind: input, shape index: {}]
  %s1 = inlined_call_operand.vmem [shape: bf16[25,128], index: 1, kind: input, shape index: {}]
  %s2 = inlined_call_operand.vmem [shape: f32[1,128], index: 2, kind: input, shape index: {}]
  %s3 = inlined_call_operand.vmem [shape: bf16[288,128], index: 3, kind: output, shape index: {}]
  %s4 = sld [smem:[#allocation0]]
  $region86: #{net_forward.7} parent=0
    _
  %s6 = ssub.s32 1, %s4
  %s7 = scalar_select 0, %s6, %s4
  $region1: #{net_forward.7} parent=0
    #allocation2 [shape = 'u8[294912]{0}', space=vmem, size = 0x48000, scoped, tag = 'input window, operand 0']
    loop: start=0, step=1, limit=4
    $region2: #{net_forward.7} parent=1 // loop_pre_header
      _
    $region3: #{net_forward.7} parent=1 // loop_header
      %s9 = sphi 0, %s13
      %p10 = scmp.ge.s32.totalorder %s9, 4
      %s19 = sphi 0, %s21
      %s22 = sphi 0, %s19
      %s23 = sphi 0, %s22
      %s39 = sphi 0, %s23
      %s43 = sphi 0, %s43
      %s45 = sphi 0, %s43
      %s46 = sphi 0, %s45
      %s60 = sphi 0, %s46
      %s64 = sphi 0, %s64
      %s66 = sphi 0, %s64
      %s67 = sphi 0, %s66
      %s81 = sphi 0, %s67
      %s87 = sphi 0, %s89
      %s90 = sphi 0, %s87
      %s91 = sphi 0, %s90
      %s107 = sphi 0, %s91
    $region4: #{net_forward.7} parent=1 // loop_header_branch
      %12 = sbr.rel (%p10) target = $region8
    $region5: #{net_forward.7} parent=1 // loop_body
      %s14 = ssub.s32 %s9, 1
      %s15 = ssub.s32 %s9, 2
      %s16 = sadd.s32 %s9, 1
      %s17 = ssub.s32 %s9, %s16
      %p18 = scmp.eq.s32.totalorder %s17, 0
      %s20 = sadd.s32 %s19, 1
      %s21 = scalar_select %p18, %s19, %s20
      %p24 = pneg %p18
      %p25 = scmp.eq.s32.totalorder %s9, 1
      %p26 = por %p24, %p25
      %p27 = scmp.ne.s32.totalorder %s19, %s22
      %p28 = scmp.eq.s32.totalorder %s9, 0
      %p29 = por %p27, %p28
      %p30 = scmp.ne.s32.totalorder %s19, %s22
      %p31 = scmp.eq.s32.totalorder %s14, 1
      %p32 = por %p30, %p31
      %p33 = scmp.ne.s32.totalorder %s22, %s23
      %p34 = scmp.eq.s32.totalorder %s14, 0
      %p35 = por %p33, %p34
      %p36 = scmp.ne.s32.totalorder %s22, %s23
      %p37 = scmp.eq.s32.totalorder %s15, 1
      %p38 = por %p36, %p37
      %p40 = scmp.ne.s32.totalorder %s23, %s39
      %p41 = scmp.eq.s32.totalorder %s15, 0
      %p42 = por %p40, %p41
      %s44 = sadd.s32 %s43, 1
      %p47 = scmp.eq.s32.totalorder %s9, 1
      %p48 = scmp.ne.s32.totalorder %s43, %s45
      %p49 = scmp.eq.s32.totalorder %s9, 0
      %p50 = por %p48, %p49
      %p51 = scmp.ne.s32.totalorder %s43, %s45
      %p52 = scmp.eq.s32.totalorder %s14, 1
      %p53 = por %p51, %p52
      %p54 = scmp.ne.s32.totalorder %s45, %s46
      %p55 = scmp.eq.s32.totalorder %s14, 0
      %p56 = por %p54, %p55
      %p57 = scmp.ne.s32.totalorder %s45, %s46
      %p58 = scmp.eq.s32.totalorder %s15, 1
      %p59 = por %p57, %p58
      %p61 = scmp.ne.s32.totalorder %s46, %s60
      %p62 = scmp.eq.s32.totalorder %s15, 0
      %p63 = por %p61, %p62
      %s65 = sadd.s32 %s64, 1
      %p68 = scmp.eq.s32.totalorder %s9, 1
      %p69 = scmp.ne.s32.totalorder %s64, %s66
      %p70 = scmp.eq.s32.totalorder %s9, 0
      %p71 = por %p69, %p70
      %p72 = scmp.ne.s32.totalorder %s64, %s66
      %p73 = scmp.eq.s32.totalorder %s14, 1
      %p74 = por %p72, %p73
      %p75 = scmp.ne.s32.totalorder %s66, %s67
      %p76 = scmp.eq.s32.totalorder %s14, 0
      %p77 = por %p75, %p76
      %p78 = scmp.ne.s32.totalorder %s66, %s67
      %p79 = scmp.eq.s32.totalorder %s15, 1
      %p80 = por %p78, %p79
      %p82 = scmp.ne.s32.totalorder %s67, %s81
      %p83 = scmp.eq.s32.totalorder %s15, 0
      %p84 = por %p82, %p83
      %s85 = ssub.s32 %s9, %s16
      %p86 = scmp.eq.s32.totalorder %s85, 0
      %s88 = sadd.s32 %s87, 1
      %s89 = scalar_select %p86, %s87, %s88
      %p92 = pneg %p86
      %p93 = scmp.eq.s32.totalorder %s9, 1
      %p94 = por %p92, %p93
      %p95 = scmp.ne.s32.totalorder %s87, %s90
      %p96 = scmp.eq.s32.totalorder %s9, 0
      %p97 = por %p95, %p96
      %p98 = scmp.ne.s32.totalorder %s87, %s90
      %p99 = scmp.eq.s32.totalorder %s14, 1
      %p100 = por %p98, %p99
      %p101 = scmp.ne.s32.totalorder %s90, %s91
      %p102 = scmp.eq.s32.totalorder %s14, 0
      %p103 = por %p101, %p102
      %p104 = scmp.ne.s32.totalorder %s90, %s91
      %p105 = scmp.eq.s32.totalorder %s15, 1
      %p106 = por %p104, %p105
      %p108 = scmp.ne.s32.totalorder %s91, %s107
      %p109 = scmp.eq.s32.totalorder %s15, 0
      %p110 = por %p108, %p109
      %p111 = scmp.le.s32.totalorder 1, %s9
      %p112 = scmp.lt.s32.totalorder %s9, 3
      %p113 = pnand %p111, %p112
      %p114 = pneg %p113
      // Predicated region
      $region9: #{net_forward.7} parent=5 // pred_check
        _
      $region10: #{net_forward.7} parent=5 // pred_check_branch
        %116 = sbr.rel (%p113) target = $region12
      $region11: #{net_forward.7} parent=5 // pred_region
        %s117 = ssub.s32 %s9, 1
        // Predicated region
        $region13: #{net_forward.7} parent=11 // pred_check
          %p118 = pneg %p56
        $region14: #{net_forward.7} parent=11 // pred_check_branch
          %120 = sbr.rel (%p118) target = $region16
        $region15: #{net_forward.7} parent=11 // pred_region
          _
        $region16: #{net_forward.7} parent=11 // pred_fallthru
          _
        // Predicated region
        $region17: #{net_forward.7} parent=11 // pred_check
          %p121 = pneg %p77
        $region18: #{net_forward.7} parent=11 // pred_check_branch
          %123 = sbr.rel (%p121) target = $region20
        $region19: #{net_forward.7} parent=11 // pred_region
          _
        $region20: #{net_forward.7} parent=11 // pred_fallthru
          _
      $region12: #{net_forward.7} parent=5 // pred_fallthru
        _
      %p124 = scmp.lt.s32.totalorder %s9, 2
      // Predicated region
      $region21: #{net_forward.7} parent=5 // pred_check
        %p125 = pneg %p124
      $region22: #{net_forward.7} parent=5 // pred_check_branch
        %127 = sbr.rel (%p125) target = $region24
      $region23: #{net_forward.7} parent=5 // pred_region
        // Predicated region
        $region25: #{net_forward.7} parent=23 // pred_check
          %p128 = pneg %p29
        $region26: #{net_forward.7} parent=23 // pred_check_branch
          %130 = sbr.rel (%p128) target = $region28
        $region27: #{net_forward.7} parent=23 // pred_region
          %s131 = sand.u32 %s19, 1
          %s132 = sand.u32 %s19, 1
          %s133 = smul.addr %s132, 288
          %s134 = scalar_lea.vmem [#allocation2], %s133
          %s135 = smul.u32 18, %s9
          %s136 = smul.addr %s135, 4
          %s137 = scalar_lea.vmem %s0, %s136
          // Predicated region
          $region29: #{net_forward.7} parent=27 // pred_check
            _
          $region30: #{net_forward.7} parent=27 // pred_check_branch
            %139 = sbr.rel (0) target = $region32
          $region31: #{net_forward.7} parent=27 // pred_region
            // Predicated region
            $region33: #{net_forward.7} parent=31 // pred_check
              _
            $region34: #{net_forward.7} parent=31 // pred_check_branch
              %141 = sbr.rel target = $region36
            $region35: #{net_forward.7} parent=31 // pred_region
              // Predicated region
              $region48: #{net_forward.7} parent=35 // pred_check
                _
              $region49: #{net_forward.7} parent=35 // pred_check_branch
                %299 = sbr.rel (0) target = $region51
              $region50: #{net_forward.7} parent=35 // pred_region
                loop: start=0, step=1, limit=1
                $region52: #{net_forward.7} parent=50 // loop_pre_header
                  _
                $region53: #{net_forward.7} parent=50 // loop_header
                  %s301 = sphi 0, %s305
                  %p302 = scmp.ge.s32.totalorder %s301, 1
                  %s306 = sphi %s137, %s137
                  %s307 = sphi %s134, %s134
                $region54: #{net_forward.7} parent=50 // loop_header_branch
                  %304 = sbr.rel (%p302) target = $region58
                $region55: #{net_forward.7} parent=50 // loop_body
                  _
                $region56: #{net_forward.7} parent=50 // loop_footer
                  %s305 = sadd.s32 1, %s301
                $region57: #{net_forward.7} parent=50 // loop_footer_branch
                  %300 = sbr.rel target = $region53
                $region58: #{net_forward.7} parent=50 // loop_exit
                  _
                %s309 = ssub.s32 16, 1
                loop: start=0, step=1, limit=1
                $region59: #{net_forward.7} parent=50 // loop_pre_header
                  _
                $region60: #{net_forward.7} parent=50 // loop_header
                  %s311 = sphi 0, %s315
                  %p312 = scmp.ge.s32.totalorder %s311, 1
                  %s316 = sphi %s137, %s137
                  %s317 = sphi %s134, %s134
                $region61: #{net_forward.7} parent=50 // loop_header_branch
                  %314 = sbr.rel (%p312) target = $region65
                $region62: #{net_forward.7} parent=50 // loop_body
                  %v318 = vld [vmem:[%s316] sm:%s309]
                  %319 = vst [vmem:[%s317] sm:%s309] %v318
                  %v320 = vld [vmem:[%s316 + $0x4] sm:%s309]
                  %321 = vst [vmem:[%s317 + $0x4] sm:%s309] %v320
                  %v322 = vld [vmem:[%s316 + $0x8] sm:%s309]
                  %323 = vst [vmem:[%s317 + $0x8] sm:%s309] %v322
                  %v324 = vld [vmem:[%s316 + $0xc] sm:%s309]
                  %325 = vst [vmem:[%s317 + $0xc] sm:%s309] %v324
                  %v326 = vld [vmem:[%s316 + $0x10] sm:%s309]
                  %327 = vst [vmem:[%s317 + $0x10] sm:%s309] %v326
                  %v328 = vld [vmem:[%s316 + $0x14] sm:%s309]
                  %329 = vst [vmem:[%s317 + $0x14] sm:%s309] %v328
                  %v330 = vld [vmem:[%s316 + $0x18] sm:%s309]
                  %331 = vst [vmem:[%s317 + $0x18] sm:%s309] %v330
                  %v332 = vld [vmem:[%s316 + $0x1c] sm:%s309]
                  %333 = vst [vmem:[%s317 + $0x1c] sm:%s309] %v332
                  %v334 = vld [vmem:[%s316 + $0x20] sm:%s309]
                  %335 = vst [vmem:[%s317 + $0x20] sm:%s309] %v334
                  %v336 = vld [vmem:[%s316 + $0x24] sm:%s309]
                  %337 = vst [vmem:[%s317 + $0x24] sm:%s309] %v336
                  %v338 = vld [vmem:[%s316 + $0x28] sm:%s309]
                  %339 = vst [vmem:[%s317 + $0x28] sm:%s309] %v338
                  %v340 = vld [vmem:[%s316 + $0x2c] sm:%s309]
                  %341 = vst [vmem:[%s317 + $0x2c] sm:%s309] %v340
                  %v342 = vld [vmem:[%s316 + $0x30] sm:%s309]
                  %343 = vst [vmem:[%s317 + $0x30] sm:%s309] %v342
                  %v344 = vld [vmem:[%s316 + $0x34] sm:%s309]
                  %345 = vst [vmem:[%s317 + $0x34] sm:%s309] %v344
                  %v346 = vld [vmem:[%s316 + $0x38] sm:%s309]
                  %347 = vst [vmem:[%s317 + $0x38] sm:%s309] %v346
                  %v348 = vld [vmem:[%s316 + $0x3c] sm:%s309]
                  %349 = vst [vmem:[%s317 + $0x3c] sm:%s309] %v348
                  %v350 = vld [vmem:[%s316 + $0x40] sm:%s309]
                  %351 = vst [vmem:[%s317 + $0x40] sm:%s309] %v350
                  %v352 = vld [vmem:[%s316 + $0x44] sm:%s309]
                  %353 = vst [vmem:[%s317 + $0x44] sm:%s309] %v352
                  %v354 = vld [vmem:[%s316 + $0x90] sm:%s309]
                  %355 = vst [vmem:[%s317 + $0x48] sm:%s309] %v354
                  %v356 = vld [vmem:[%s316 + $0x94] sm:%s309]
                  %357 = vst [vmem:[%s317 + $0x4c] sm:%s309] %v356
                  %v358 = vld [vmem:[%s316 + $0x98] sm:%s309]
                  %359 = vst [vmem:[%s317 + $0x50] sm:%s309] %v358
                  %v360 = vld [vmem:[%s316 + $0x9c] sm:%s309]
                  %361 = vst [vmem:[%s317 + $0x54] sm:%s309] %v360
                  %v362 = vld [vmem:[%s316 + $0xa0] sm:%s309]
                  %363 = vst [vmem:[%s317 + $0x58] sm:%s309] %v362
                  %v364 = vld [vmem:[%s316 + $0xa4] sm:%s309]
                  %365 = vst [vmem:[%s317 + $0x5c] sm:%s309] %v364
                  %v366 = vld [vmem:[%s316 + $0xa8] sm:%s309]
                  %367 = vst [vmem:[%s317 + $0x60] sm:%s309] %v366
                  %v368 = vld [vmem:[%s316 + $0xac] sm:%s309]
                  %369 = vst [vmem:[%s317 + $0x64] sm:%s309] %v368
                  %v370 = vld [vmem:[%s316 + $0xb0] sm:%s309]
                  %371 = vst [vmem:[%s317 + $0x68] sm:%s309] %v370
                  %v372 = vld [vmem:[%s316 + $0xb4] sm:%s309]
                  %373 = vst [vmem:[%s317 + $0x6c] sm:%s309] %v372
                  %v374 = vld [vmem:[%s316 + $0xb8] sm:%s309]
                  %375 = vst [vmem:[%s317 + $0x70] sm:%s309] %v374
                  %v376 = vld [vmem:[%s316 + $0xbc] sm:%s309]
                  %377 = vst [vmem:[%s317 + $0x74] sm:%s309] %v376
                  %v378 = vld [vmem:[%s316 + $0xc0] sm:%s309]
                  %379 = vst [vmem:[%s317 + $0x78] sm:%s309] %v378
                  %v380 = vld [vmem:[%s316 + $0xc4] sm:%s309]
                  %381 = vst [vmem:[%s317 + $0x7c] sm:%s309] %v380
                  %v382 = vld [vmem:[%s316 + $0xc8] sm:%s309]
                  %383 = vst [vmem:[%s317 + $0x80] sm:%s309] %v382
                  %v384 = vld [vmem:[%s316 + $0xcc] sm:%s309]
                  %385 = vst [vmem:[%s317 + $0x84] sm:%s309] %v384
                  %v386 = vld [vmem:[%s316 + $0xd0] sm:%s309]
                  %387 = vst [vmem:[%s317 + $0x88] sm:%s309] %v386
                  %v388 = vld [vmem:[%s316 + $0xd4] sm:%s309]
                  %389 = vst [vmem:[%s317 + $0x8c] sm:%s309] %v388
                  %v390 = vld [vmem:[%s316 + $0x120] sm:%s309]
                  %391 = vst [vmem:[%s317 + $0x90] sm:%s309] %v390
                  %v392 = vld [vmem:[%s316 + $0x124] sm:%s309]
                  %393 = vst [vmem:[%s317 + $0x94] sm:%s309] %v392
                  %v394 = vld [vmem:[%s316 + $0x128] sm:%s309]
                  %395 = vst [vmem:[%s317 + $0x98] sm:%s309] %v394
                  %v396 = vld [vmem:[%s316 + $0x12c] sm:%s309]
                  %397 = vst [vmem:[%s317 + $0x9c] sm:%s309] %v396
                  %v398 = vld [vmem:[%s316 + $0x130] sm:%s309]
                  %399 = vst [vmem:[%s317 + $0xa0] sm:%s309] %v398
                  %v400 = vld [vmem:[%s316 + $0x134] sm:%s309]
                  %401 = vst [vmem:[%s317 + $0xa4] sm:%s309] %v400
                  %v402 = vld [vmem:[%s316 + $0x138] sm:%s309]
                  %403 = vst [vmem:[%s317 + $0xa8] sm:%s309] %v402
                  %v404 = vld [vmem:[%s316 + $0x13c] sm:%s309]
                  %405 = vst [vmem:[%s317 + $0xac] sm:%s309] %v404
                  %v406 = vld [vmem:[%s316 + $0x140] sm:%s309]
                  %407 = vst [vmem:[%s317 + $0xb0] sm:%s309] %v406
                  %v408 = vld [vmem:[%s316 + $0x144] sm:%s309]
                  %409 = vst [vmem:[%s317 + $0xb4] sm:%s309] %v408
                  %v410 = vld [vmem:[%s316 + $0x148] sm:%s309]
                  %411 = vst [vmem:[%s317 + $0xb8] sm:%s309] %v410
                  %v412 = vld [vmem:[%s316 + $0x14c] sm:%s309]
                  %413 = vst [vmem:[%s317 + $0xbc] sm:%s309] %v412
                  %v414 = vld [vmem:[%s316 + $0x150] sm:%s309]
                  %415 = vst [vmem:[%s317 + $0xc0] sm:%s309] %v414
                  %v416 = vld [vmem:[%s316 + $0x154] sm:%s309]
                  %417 = vst [vmem:[%s317 + $0xc4] sm:%s309] %v416
                  %v418 = vld [vmem:[%s316 + $0x158] sm:%s309]
                  %419 = vst [vmem:[%s317 + $0xc8] sm:%s309] %v418
                  %v420 = vld [vmem:[%s316 + $0x15c] sm:%s309]
                  %421 = vst [vmem:[%s317 + $0xcc] sm:%s309] %v420
                  %v422 = vld [vmem:[%s316 + $0x160] sm:%s309]
                  %423 = vst [vmem:[%s317 + $0xd0] sm:%s309] %v422
                  %v424 = vld [vmem:[%s316 + $0x164] sm:%s309]
                  %425 = vst [vmem:[%s317 + $0xd4] sm:%s309] %v424
                  %v426 = vld [vmem:[%s316 + $0x1b0] sm:%s309]
                  %427 = vst [vmem:[%s317 + $0xd8] sm:%s309] %v426
                  %v428 = vld [vmem:[%s316 + $0x1b4] sm:%s309]
                  %429 = vst [vmem:[%s317 + $0xdc] sm:%s309] %v428
                  %v430 = vld [vmem:[%s316 + $0x1b8] sm:%s309]
                  %431 = vst [vmem:[%s317 + $0xe0] sm:%s309] %v430
                  %v432 = vld [vmem:[%s316 + $0x1bc] sm:%s309]
                  %433 = vst [vmem:[%s317 + $0xe4] sm:%s309] %v432
                  %v434 = vld [vmem:[%s316 + $0x1c0] sm:%s309]
                  %435 = vst [vmem:[%s317 + $0xe8] sm:%s309] %v434
                  %v436 = vld [vmem:[%s316 + $0x1c4] sm:%s309]
                  %437 = vst [vmem:[%s317 + $0xec] sm:%s309] %v436
                  %v438 = vld [vmem:[%s316 + $0x1c8] sm:%s309]
                  %439 = vst [vmem:[%s317 + $0xf0] sm:%s309] %v438
                  %v440 = vld [vmem:[%s316 + $0x1cc] sm:%s309]
                  %441 = vst [vmem:[%s317 + $0xf4] sm:%s309] %v440
                  %v442 = vld [vmem:[%s316 + $0x1d0] sm:%s309]
                  %443 = vst [vmem:[%s317 + $0xf8] sm:%s309] %v442
                  %v444 = vld [vmem:[%s316 + $0x1d4] sm:%s309]
                  %445 = vst [vmem:[%s317 + $0xfc] sm:%s309] %v444
                  %v446 = vld [vmem:[%s316 + $0x1d8] sm:%s309]
                  %447 = vst [vmem:[%s317 + $0x100] sm:%s309] %v446
                  %v448 = vld [vmem:[%s316 + $0x1dc] sm:%s309]
                  %449 = vst [vmem:[%s317 + $0x104] sm:%s309] %v448
                  %v450 = vld [vmem:[%s316 + $0x1e0] sm:%s309]
                  %451 = vst [vmem:[%s317 + $0x108] sm:%s309] %v450
                  %v452 = vld [vmem:[%s316 + $0x1e4] sm:%s309]
                  %453 = vst [vmem:[%s317 + $0x10c] sm:%s309] %v452
                  %v454 = vld [vmem:[%s316 + $0x1e8] sm:%s309]
                  %455 = vst [vmem:[%s317 + $0x110] sm:%s309] %v454
                  %v456 = vld [vmem:[%s316 + $0x1ec] sm:%s309]
                  %457 = vst [vmem:[%s317 + $0x114] sm:%s309] %v456
                  %v458 = vld [vmem:[%s316 + $0x1f0] sm:%s309]
                  %459 = vst [vmem:[%s317 + $0x118] sm:%s309] %v458
                  %v460 = vld [vmem:[%s316 + $0x1f4] sm:%s309]
                  %461 = vst [vmem:[%s317 + $0x11c] sm:%s309] %v460
                $region63: #{net_forward.7} parent=50 // loop_footer
                  %s315 = sadd.s32 1, %s311
                $region64: #{net_forward.7} parent=50 // loop_footer_branch
                  %310 = sbr.rel target = $region60
                $region65: #{net_forward.7} parent=50 // loop_exit
                  _
              $region51: #{net_forward.7} parent=35 // pred_fallthru
                _
            $region36: #{net_forward.7} parent=31 // pred_fallthru
              _
            // Predicated region
            $region37: #{net_forward.7} parent=31 // pred_check
              _
            $region38: #{net_forward.7} parent=31 // pred_check_branch
              %143 = sbr.rel (0) target = $region40
            $region39: #{net_forward.7} parent=31 // pred_region
              %s145 = ssub.s32 16, 1
              loop: start=0, step=1, limit=1
              $region41: #{net_forward.7} parent=39 // loop_pre_header
                _
              $region42: #{net_forward.7} parent=39 // loop_header
                %s147 = sphi 0, %s151
                %p148 = scmp.ge.s32.totalorder %s147, 1
                %s152 = sphi %s137, %s137
                %s153 = sphi %s134, %s134
              $region43: #{net_forward.7} parent=39 // loop_header_branch
                %150 = sbr.rel (%p148) target = $region47
              $region44: #{net_forward.7} parent=39 // loop_body
                %v154 = vld [vmem:[%s152] sm:%s145]
                %155 = vst [vmem:[%s153] sm:%s145] %v154
                %v156 = vld [vmem:[%s152 + $0x4] sm:%s145]
                %157 = vst [vmem:[%s153 + $0x4] sm:%s145] %v156
                %v158 = vld [vmem:[%s152 + $0x8] sm:%s145]
                %159 = vst [vmem:[%s153 + $0x8] sm:%s145] %v158
                %v160 = vld [vmem:[%s152 + $0xc] sm:%s145]
                %161 = vst [vmem:[%s153 + $0xc] sm:%s145] %v160
                %v162 = vld [vmem:[%s152 + $0x10] sm:%s145]
                %163 = vst [vmem:[%s153 + $0x10] sm:%s145] %v162
                %v164 = vld [vmem:[%s152 + $0x14] sm:%s145]
                %165 = vst [vmem:[%s153 + $0x14] sm:%s145] %v164
                %v166 = vld [vmem:[%s152 + $0x18] sm:%s145]
                %167 = vst [vmem:[%s153 + $0x18] sm:%s145] %v166
                %v168 = vld [vmem:[%s152 + $0x1c] sm:%s145]
                %169 = vst [vmem:[%s153 + $0x1c] sm:%s145] %v168
                %v170 = vld [vmem:[%s152 + $0x20] sm:%s145]
                %171 = vst [vmem:[%s153 + $0x20] sm:%s145] %v170
                %v172 = vld [vmem:[%s152 + $0x24] sm:%s145]
                %173 = vst [vmem:[%s153 + $0x24] sm:%s145] %v172
                %v174 = vld [vmem:[%s152 + $0x28] sm:%s145]
                %175 = vst [vmem:[%s153 + $0x28] sm:%s145] %v174
                %v176 = vld [vmem:[%s152 + $0x2c] sm:%s145]
                %177 = vst [vmem:[%s153 + $0x2c] sm:%s145] %v176
                %v178 = vld [vmem:[%s152 + $0x30] sm:%s145]
                %179 = vst [vmem:[%s153 + $0x30] sm:%s145] %v178
                %v180 = vld [vmem:[%s152 + $0x34] sm:%s145]
                %181 = vst [vmem:[%s153 + $0x34] sm:%s145] %v180
                %v182 = vld [vmem:[%s152 + $0x38] sm:%s145]
                %183 = vst [vmem:[%s153 + $0x38] sm:%s145] %v182
                %v184 = vld [vmem:[%s152 + $0x3c] sm:%s145]
                %185 = vst [vmem:[%s153 + $0x3c] sm:%s145] %v184
                %v186 = vld [vmem:[%s152 + $0x40] sm:%s145]
                %187 = vst [vmem:[%s153 + $0x40] sm:%s145] %v186
                %v188 = vld [vmem:[%s152 + $0x44] sm:%s145]
                %189 = vst [vmem:[%s153 + $0x44] sm:%s145] %v188
                %v190 = vld [vmem:[%s152 + $0x90] sm:%s145]
                %191 = vst [vmem:[%s153 + $0x48] sm:%s145] %v190
                %v192 = vld [vmem:[%s152 + $0x94] sm:%s145]
                %193 = vst [vmem:[%s153 + $0x4c] sm:%s145] %v192
                %v194 = vld [vmem:[%s152 + $0x98] sm:%s145]
                %195 = vst [vmem:[%s153 + $0x50] sm:%s145] %v194
                %v196 = vld [vmem:[%s152 + $0x9c] sm:%s145]
                %197 = vst [vmem:[%s153 + $0x54] sm:%s145] %v196
                %v198 = vld [vmem:[%s152 + $0xa0] sm:%s145]
                %199 = vst [vmem:[%s153 + $0x58] sm:%s145] %v198
                %v200 = vld [vmem:[%s152 + $0xa4] sm:%s145]
                %201 = vst [vmem:[%s153 + $0x5c] sm:%s145] %v200
                %v202 = vld [vmem:[%s152 + $0xa8] sm:%s145]
                %203 = vst [vmem:[%s153 + $0x60] sm:%s145] %v202
                %v204 = vld [vmem:[%s152 + $0xac] sm:%s145]
                %205 = vst [vmem:[%s153 + $0x64] sm:%s145] %v204
                %v206 = vld [vmem:[%s152 + $0xb0] sm:%s145]
                %207 = vst [vmem:[%s153 + $0x68] sm:%s145] %v206
                %v208 = vld [vmem:[%s152 + $0xb4] sm:%s145]
                %209 = vst [vmem:[%s153 + $0x6c] sm:%s145] %v208
                %v210 = vld [vmem:[%s152 + $0xb8] sm:%s145]
                %211 = vst [vmem:[%s153 + $0x70] sm:%s145] %v210
                %v212 = vld [vmem:[%s152 + $0xbc] sm:%s145]
                %213 = vst [vmem:[%s153 + $0x74] sm:%s145] %v212
                %v214 = vld [vmem:[%s152 + $0xc0] sm:%s145]
                %215 = vst [vmem:[%s153 + $0x78] sm:%s145] %v214
                %v216 = vld [vmem:[%s152 + $0xc4] sm:%s145]
                %217 = vst [vmem:[%s153 + $0x7c] sm:%s145] %v216
                %v218 = vld [vmem:[%s152 + $0xc8] sm:%s145]
                %219 = vst [vmem:[%s153 + $0x80] sm:%s145] %v218
                %v220 = vld [vmem:[%s152 + $0xcc] sm:%s145]
                %221 = vst [vmem:[%s153 + $0x84] sm:%s145] %v220
                %v222 = vld [vmem:[%s152 + $0xd0] sm:%s145]
                %223 = vst [vmem:[%s153 + $0x88] sm:%s145] %v222
                %v224 = vld [vmem:[%s152 + $0xd4] sm:%s145]
                %225 = vst [vmem:[%s153 + $0x8c] sm:%s145] %v224
                %v226 = vld [vmem:[%s152 + $0x120] sm:%s145]
                %227 = vst [vmem:[%s153 + $0x90] sm:%s145] %v226
                %v228 = vld [vmem:[%s152 + $0x124] sm:%s145]
                %229 = vst [vmem:[%s153 + $0x94] sm:%s145] %v228
                %v230 = vld [vmem:[%s152 + $0x128] sm:%s145]
                %231 = vst [vmem:[%s153 + $0x98] sm:%s145] %v230
                %v232 = vld [vmem:[%s152 + $0x12c] sm:%s145]
                %233 = vst [vmem:[%s153 + $0x9c] sm:%s145] %v232
                %v234 = vld [vmem:[%s152 + $0x130] sm:%s145]
                %235 = vst [vmem:[%s153 + $0xa0] sm:%s145] %v234
                %v236 = vld [vmem:[%s152 + $0x134] sm:%s145]
                %237 = vst [vmem:[%s153 + $0xa4] sm:%s145] %v236
                %v238 = vld [vmem:[%s152 + $0x138] sm:%s145]
                %239 = vst [vmem:[%s153 + $0xa8] sm:%s145] %v238
                %v240 = vld [vmem:[%s152 + $0x13c] sm:%s145]
                %241 = vst [vmem:[%s153 + $0xac] sm:%s145] %v240
                %v242 = vld [vmem:[%s152 + $0x140] sm:%s145]
                %243 = vst [vmem:[%s153 + $0xb0] sm:%s145] %v242
                %v244 = vld [vmem:[%s152 + $0x144] sm:%s145]
                %245 = vst [vmem:[%s153 + $0xb4] sm:%s145] %v244
                %v246 = vld [vmem:[%s152 + $0x148] sm:%s145]
                %247 = vst [vmem:[%s153 + $0xb8] sm:%s145] %v246
                %v248 = vld [vmem:[%s152 + $0x14c] sm:%s145]
                %249 = vst [vmem:[%s153 + $0xbc] sm:%s145] %v248
                %v250 = vld [vmem:[%s152 + $0x150] sm:%s145]
                %251 = vst [vmem:[%s153 + $0xc0] sm:%s145] %v250
                %v252 = vld [vmem:[%s152 + $0x154] sm:%s145]
                %253 = vst [vmem:[%s153 + $0xc4] sm:%s145] %v252
                %v254 = vld [vmem:[%s152 + $0x158] sm:%s145]
                %255 = vst [vmem:[%s153 + $0xc8] sm:%s145] %v254
                %v256 = vld [vmem:[%s152 + $0x15c] sm:%s145]
                %257 = vst [vmem:[%s153 + $0xcc] sm:%s145] %v256
                %v258 = vld [vmem:[%s152 + $0x160] sm:%s145]
                %259 = vst [vmem:[%s153 + $0xd0] sm:%s145] %v258
                %v260 = vld [vmem:[%s152 + $0x164] sm:%s145]
                %261 = vst [vmem:[%s153 + $0xd4] sm:%s145] %v260
                %v262 = vld [vmem:[%s152 + $0x1b0] sm:%s145]
                %263 = vst [vmem:[%s153 + $0xd8] sm:%s145] %v262
                %v264 = vld [vmem:[%s152 + $0x1b4] sm:%s145]
                %265 = vst [vmem:[%s153 + $0xdc] sm:%s145] %v264
                %v266 = vld [vmem:[%s152 + $0x1b8] sm:%s145]
                %267 = vst [vmem:[%s153 + $0xe0] sm:%s145] %v266
                %v268 = vld [vmem:[%s152 + $0x1bc] sm:%s145]
                %269 = vst [vmem:[%s153 + $0xe4] sm:%s145] %v268
                %v270 = vld [vmem:[%s152 + $0x1c0] sm:%s145]
                %271 = vst [vmem:[%s153 + $0xe8] sm:%s145] %v270
                %v272 = vld [vmem:[%s152 + $0x1c4] sm:%s145]
                %273 = vst [vmem:[%s153 + $0xec] sm:%s145] %v272
                %v274 = vld [vmem:[%s152 + $0x1c8] sm:%s145]
                %275 = vst [vmem:[%s153 + $0xf0] sm:%s145] %v274
                %v276 = vld [vmem:[%s152 + $0x1cc] sm:%s145]
                %277 = vst [vmem:[%s153 + $0xf4] sm:%s145] %v276
                %v278 = vld [vmem:[%s152 + $0x1d0] sm:%s145]
                %279 = vst [vmem:[%s153 + $0xf8] sm:%s145] %v278
                %v280 = vld [vmem:[%s152 + $0x1d4] sm:%s145]
                %281 = vst [vmem:[%s153 + $0xfc] sm:%s145] %v280
                %v282 = vld [vmem:[%s152 + $0x1d8] sm:%s145]
                %283 = vst [vmem:[%s153 + $0x100] sm:%s145] %v282
                %v284 = vld [vmem:[%s152 + $0x1dc] sm:%s145]
                %285 = vst [vmem:[%s153 + $0x104] sm:%s145] %v284
                %v286 = vld [vmem:[%s152 + $0x1e0] sm:%s145]
                %287 = vst [vmem:[%s153 + $0x108] sm:%s145] %v286
                %v288 = vld [vmem:[%s152 + $0x1e4] sm:%s145]
                %289 = vst [vmem:[%s153 + $0x10c] sm:%s145] %v288
                %v290 = vld [vmem:[%s152 + $0x1e8] sm:%s145]
                %291 = vst [vmem:[%s153 + $0x110] sm:%s145] %v290
                %v292 = vld [vmem:[%s152 + $0x1ec] sm:%s145]
                %293 = vst [vmem:[%s153 + $0x114] sm:%s145] %v292
                %v294 = vld [vmem:[%s152 + $0x1f0] sm:%s145]
                %295 = vst [vmem:[%s153 + $0x118] sm:%s145] %v294
                %v296 = vld [vmem:[%s152 + $0x1f4] sm:%s145]
                %297 = vst [vmem:[%s153 + $0x11c] sm:%s145] %v296
              $region45: #{net_forward.7} parent=39 // loop_footer
                %s151 = sadd.s32 1, %s147
              $region46: #{net_forward.7} parent=39 // loop_footer_branch
                %146 = sbr.rel target = $region42
              $region47: #{net_forward.7} parent=39 // loop_exit
                _
            $region40: #{net_forward.7} parent=31 // pred_fallthru
              _
          $region32: #{net_forward.7} parent=27 // pred_fallthru
            _
          %462 = vnop
        $region28: #{net_forward.7} parent=23 // pred_fallthru
          _
      $region24: #{net_forward.7} parent=5 // pred_fallthru
        _
      %p463 = scmp.le.s32.totalorder 1, %s9
      %p464 = scmp.lt.s32.totalorder %s9, 3
      %p465 = pnand %p463, %p464
      %p466 = pneg %p465
      // Predicated region
      $region66: #{net_forward.7} parent=5 // pred_check
        _
      $region67: #{net_forward.7} parent=5 // pred_check_branch
        %468 = sbr.rel (%p465) target = $region69
      $region68: #{net_forward.7} parent=5 // pred_region
        %s469 = ssub.s32 %s9, 1
        %s470 = sand.u32 %s22, 1
        %s471 = sand.u32 %s22, 1
        %s472 = smul.addr %s471, 288
        %s473 = scalar_lea.vmem [#allocation2], %s472
        // Predicated region
        $region70: #{net_forward.7} parent=68 // pred_check
          %p474 = pneg %p35
        $region71: #{net_forward.7} parent=68 // pred_check_branch
          %476 = sbr.rel (%p474) target = $region73
        $region72: #{net_forward.7} parent=68 // pred_region
          _
        $region73: #{net_forward.7} parent=68 // pred_fallthru
          _
        %s477 = sand.u32 %s22, 1
        %s478 = sand.u32 %s22, 1
        %s479 = smul.addr %s478, 288
        %s480 = scalar_lea.vmem [#allocation2], %s479
        %p481 = pneg %p35
        %p482 = pneg %p32
        %p483 = pneg %p56
        %p484 = pneg %p53
        %p485 = pneg %p77
        %p486 = pneg %p74
        %p487 = pneg %p103
        %p488 = pneg %p100
        %s489 = smul.u32 18, %s14
        %p490 = scmp.lt.s32.totalorder %s489, 35
        %s491 = scalar_select %p490, %s489, 35
        %s492 = smul.addr %s491, 4
        %s493 = scalar_lea.vmem %s3, %s492
        %s494 = smul.u32 18, %s14
        %s495 = smul.u32 18, %s14
        %p496 = scmp.lt.s32.totalorder %s495, 35
        %s497 = scalar_select %p496, %s495, 35
        %s498 = smul.addr %s497, 4
        %s499 = scalar_lea.vmem %s3, %s498
        %s500 = smul.u32 18, %s14
        %v502 = vld [vmem:[%s1] sm:$0xf]
        %v503 = vld [vmem:[%s1 + $0x4] sm:$0xf]
        %v504 = vld [vmem:[%s1 + $0x8] sm:$0xf]
        %v505 = vld [vmem:[%s1 + $0xc] sm:$0x1]
        %v506 = vld [vmem:[%s2] sm:$0x1]
        %v507 = vld [vmem:[%s473] sm:$0xf]
        %v508 = vld [vmem:[%s473 + $0x4] sm:$0xf]
        %v509 = vld [vmem:[%s473 + $0x8] sm:$0xf]
        %v510 = vld [vmem:[%s473 + $0xc] sm:$0xf]
        %v511 = vld [vmem:[%s473 + $0x10] sm:$0xf]
        %v512 = vld [vmem:[%s473 + $0x14] sm:$0xf]
        %v513 = vld [vmem:[%s473 + $0x18] sm:$0xf]
        %v514 = vld [vmem:[%s473 + $0x1c] sm:$0xf]
        %v515 = vld [vmem:[%s473 + $0x20] sm:$0xf]
        %v516 = vld [vmem:[%s473 + $0x24] sm:$0xf]
        %v517 = vld [vmem:[%s473 + $0x28] sm:$0xf]
        %v518 = vld [vmem:[%s473 + $0x2c] sm:$0xf]
        %v519 = vld [vmem:[%s473 + $0x30] sm:$0xf]
        %v520 = vld [vmem:[%s473 + $0x34] sm:$0xf]
        %v521 = vld [vmem:[%s473 + $0x38] sm:$0xf]
        %v522 = vld [vmem:[%s473 + $0x3c] sm:$0xf]
        %v523 = vld [vmem:[%s473 + $0x40] sm:$0xf]
        %v524 = vld [vmem:[%s473 + $0x44] sm:$0xf]
        %v525 = vld [vmem:[%s473 + $0x48] sm:$0xf]
        %v526 = vld [vmem:[%s473 + $0x4c] sm:$0xf]
        %v527 = vld [vmem:[%s473 + $0x50] sm:$0xf]
        %v528 = vld [vmem:[%s473 + $0x54] sm:$0xf]
        %v529 = vld [vmem:[%s473 + $0x58] sm:$0xf]
        %v530 = vld [vmem:[%s473 + $0x5c] sm:$0xf]
        %v531 = vld [vmem:[%s473 + $0x60] sm:$0xf]
        %v532 = vld [vmem:[%s473 + $0x64] sm:$0xf]
        %v533 = vld [vmem:[%s473 + $0x68] sm:$0xf]
        %v534 = vld [vmem:[%s473 + $0x6c] sm:$0xf]
        %v535 = vld [vmem:[%s473 + $0x70] sm:$0xf]
        %v536 = vld [vmem:[%s473 + $0x74] sm:$0xf]
        %v537 = vld [vmem:[%s473 + $0x78] sm:$0xf]
        %v538 = vld [vmem:[%s473 + $0x7c] sm:$0xf]
        %v539 = vld [vmem:[%s473 + $0x80] sm:$0xf]
        %v540 = vld [vmem:[%s473 + $0x84] sm:$0xf]
        %v541 = vld [vmem:[%s473 + $0x88] sm:$0xf]
        %v542 = vld [vmem:[%s473 + $0x8c] sm:$0xf]
        %v543 = vld [vmem:[%s473 + $0x90] sm:$0xf]
        %v544 = vld [vmem:[%s473 + $0x94] sm:$0xf]
        %v545 = vld [vmem:[%s473 + $0x98] sm:$0xf]
        %v546 = vld [vmem:[%s473 + $0x9c] sm:$0xf]
        %v547 = vld [vmem:[%s473 + $0xa0] sm:$0xf]
        %v548 = vld [vmem:[%s473 + $0xa4] sm:$0xf]
        %v549 = vld [vmem:[%s473 + $0xa8] sm:$0xf]
        %v550 = vld [vmem:[%s473 + $0xac] sm:$0xf]
        %v551 = vld [vmem:[%s473 + $0xb0] sm:$0xf]
        %v552 = vld [vmem:[%s473 + $0xb4] sm:$0xf]
        %v553 = vld [vmem:[%s473 + $0xb8] sm:$0xf]
        %v554 = vld [vmem:[%s473 + $0xbc] sm:$0xf]
        %v555 = vld [vmem:[%s473 + $0xc0] sm:$0xf]
        %v556 = vld [vmem:[%s473 + $0xc4] sm:$0xf]
        %v557 = vld [vmem:[%s473 + $0xc8] sm:$0xf]
        %v558 = vld [vmem:[%s473 + $0xcc] sm:$0xf]
        %v559 = vld [vmem:[%s473 + $0xd0] sm:$0xf]
        %v560 = vld [vmem:[%s473 + $0xd4] sm:$0xf]
        %v561 = vld [vmem:[%s473 + $0xd8] sm:$0xf]
        %v562 = vld [vmem:[%s473 + $0xdc] sm:$0xf]
        %v563 = vld [vmem:[%s473 + $0xe0] sm:$0xf]
        %v564 = vld [vmem:[%s473 + $0xe4] sm:$0xf]
        %v565 = vld [vmem:[%s473 + $0xe8] sm:$0xf]
        %v566 = vld [vmem:[%s473 + $0xec] sm:$0xf]
        %v567 = vld [vmem:[%s473 + $0xf0] sm:$0xf]
        %v568 = vld [vmem:[%s473 + $0xf4] sm:$0xf]
        %v569 = vld [vmem:[%s473 + $0xf8] sm:$0xf]
        %v570 = vld [vmem:[%s473 + $0xfc] sm:$0xf]
        %v571 = vld [vmem:[%s473 + $0x100] sm:$0xf]
        %v572 = vld [vmem:[%s473 + $0x104] sm:$0xf]
        %v573 = vld [vmem:[%s473 + $0x108] sm:$0xf]
        %v574 = vld [vmem:[%s473 + $0x10c] sm:$0xf]
        %v575 = vld [vmem:[%s473 + $0x110] sm:$0xf]
        %v576 = vld [vmem:[%s473 + $0x114] sm:$0xf]
        %v577 = vld [vmem:[%s473 + $0x118] sm:$0xf]
        %v578 = vld [vmem:[%s473 + $0x11c] sm:$0xf]
        %v580 = vperm.slane %v506, 0
        %v654 = vunpack.c.l.b16 %v507
        %v655 = vunpack.c.l.b16 %v508
        %v656 = vunpack.c.l.b16 %v509
        %v657 = vunpack.c.l.b16 %v510
        %v658 = vunpack.c.l.b16 %v511
        %v659 = vunpack.c.l.b16 %v512
        %v660 = vunpack.c.l.b16 %v513
        %v661 = vunpack.c.l.b16 %v514
        %v662 = vunpack.c.l.b16 %v515
        %v663 = vunpack.c.l.b16 %v516
        %v664 = vunpack.c.l.b16 %v517
        %v665 = vunpack.c.l.b16 %v518
        %v666 = vunpack.c.l.b16 %v519
        %v667 = vunpack.c.l.b16 %v520
        %v668 = vunpack.c.l.b16 %v521
        %v669 = vunpack.c.l.b16 %v522
        %v670 = vunpack.c.l.b16 %v523
        %v671 = vunpack.c.l.b16 %v524
        %v672 = vunpack.c.l.b16 %v525
        %v673 = vunpack.c.l.b16 %v526
        %v674 = vunpack.c.l.b16 %v527
        %v675 = vunpack.c.l.b16 %v528
        %v676 = vunpack.c.l.b16 %v529
        %v677 = vunpack.c.l.b16 %v530
        %v678 = vunpack.c.l.b16 %v531
        %v679 = vunpack.c.l.b16 %v532
        %v680 = vunpack.c.l.b16 %v533
        %v681 = vunpack.c.l.b16 %v534
        %v682 = vunpack.c.l.b16 %v535
        %v683 = vunpack.c.l.b16 %v536
        %v684 = vunpack.c.l.b16 %v537
        %v685 = vunpack.c.l.b16 %v538
        %v686 = vunpack.c.l.b16 %v539
        %v687 = vunpack.c.l.b16 %v540
        %v688 = vunpack.c.l.b16 %v541
        %v689 = vunpack.c.l.b16 %v542
        %v690 = vunpack.c.l.b16 %v543
        %v691 = vunpack.c.l.b16 %v544
        %v692 = vunpack.c.l.b16 %v545
        %v693 = vunpack.c.l.b16 %v546
        %v694 = vunpack.c.l.b16 %v547
        %v695 = vunpack.c.l.b16 %v548
        %v696 = vunpack.c.l.b16 %v549
        %v697 = vunpack.c.l.b16 %v550
        %v698 = vunpack.c.l.b16 %v551
        %v699 = vunpack.c.l.b16 %v552
        %v700 = vunpack.c.l.b16 %v553
        %v701 = vunpack.c.l.b16 %v554
        %v702 = vunpack.c.l.b16 %v555
        %v703 = vunpack.c.l.b16 %v556
        %v704 = vunpack.c.l.b16 %v557
        %v705 = vunpack.c.l.b16 %v558
        %v706 = vunpack.c.l.b16 %v559
        %v707 = vunpack.c.l.b16 %v560
        %v708 = vunpack.c.l.b16 %v561
        %v709 = vunpack.c.l.b16 %v562
        %v710 = vunpack.c.l.b16 %v563
        %v711 = vunpack.c.l.b16 %v564
        %v712 = vunpack.c.l.b16 %v565
        %v713 = vunpack.c.l.b16 %v566
        %v714 = vunpack.c.l.b16 %v567
        %v715 = vunpack.c.l.b16 %v568
        %v716 = vunpack.c.l.b16 %v569
        %v717 = vunpack.c.l.b16 %v570
        %v718 = vunpack.c.l.b16 %v571
        %v719 = vunpack.c.l.b16 %v572
        %v720 = vunpack.c.l.b16 %v573
        %v721 = vunpack.c.l.b16 %v574
        %v722 = vunpack.c.l.b16 %v575
        %v723 = vunpack.c.l.b16 %v576
        %v724 = vunpack.c.l.b16 %v577
        %v725 = vunpack.c.l.b16 %v578
        %v726 = vpack.c.b16 %v655, %v654
        %v727 = vpack.c.b16 %v657, %v656
        %v728 = vpack.c.b16 %v659, %v658
        %v729 = vpack.c.b16 %v661, %v660
        %v730 = vpack.c.b16 %v663, %v662
        %v731 = vpack.c.b16 %v665, %v664
        %v732 = vpack.c.b16 %v667, %v666
        %v733 = vpack.c.b16 %v669, %v668
        %v734 = vpack.c.b16 %v671, %v670
        %v735 = vpack.c.b16 %v673, %v672
        %v736 = vpack.c.b16 %v675, %v674
        %v737 = vpack.c.b16 %v677, %v676
        %v738 = vpack.c.b16 %v679, %v678
        %v739 = vpack.c.b16 %v681, %v680
        %v740 = vpack.c.b16 %v683, %v682
        %v741 = vpack.c.b16 %v685, %v684
        %v742 = vpack.c.b16 %v687, %v686
        %v743 = vpack.c.b16 %v689, %v688
        %v744 = vpack.c.b16 %v691, %v690
        %v745 = vpack.c.b16 %v693, %v692
        %v746 = vpack.c.b16 %v695, %v694
        %v747 = vpack.c.b16 %v697, %v696
        %v748 = vpack.c.b16 %v699, %v698
        %v749 = vpack.c.b16 %v701, %v700
        %v750 = vpack.c.b16 %v703, %v702
        %v751 = vpack.c.b16 %v705, %v704
        %v752 = vpack.c.b16 %v707, %v706
        %v753 = vpack.c.b16 %v709, %v708
        %v754 = vpack.c.b16 %v711, %v710
        %v755 = vpack.c.b16 %v713, %v712
        %v756 = vpack.c.b16 %v715, %v714
        %v757 = vpack.c.b16 %v717, %v716
        %v758 = vpack.c.b16 %v719, %v718
        %v759 = vpack.c.b16 %v721, %v720
        %v760 = vpack.c.b16 %v723, %v722
        %v761 = vpack.c.b16 %v725, %v724
        %v766 = vunpack.c.l.b16 %v502
        %v767 = vunpack.c.l.b16 %v503
        %v768 = vunpack.c.l.b16 %v504
        %v769 = vunpack.c.l.b16 %v505
        %v770 = vpack.c.b16 %v767, %v766
        %v771 = vpack.c.b16 %v769, %v768
        %vm773 = vcmask 203776
        %v775 = vsel %vm773, %v726, 0
        %v778 = vsel %vm773, %v727, 0
        %v781 = vsel %vm773, %v728, 0
        %v784 = vsel %vm773, %v729, 0
        %v787 = vsel %vm773, %v730, 0
        %v790 = vsel %vm773, %v731, 0
        %v793 = vsel %vm773, %v732, 0
        %v796 = vsel %vm773, %v733, 0
        %v799 = vsel %vm773, %v734, 0
        %v802 = vsel %vm773, %v735, 0
        %v805 = vsel %vm773, %v736, 0
        %v808 = vsel %vm773, %v737, 0
        %v811 = vsel %vm773, %v738, 0
        %v814 = vsel %vm773, %v739, 0
        %v817 = vsel %vm773, %v740, 0
        %v820 = vsel %vm773, %v741, 0
        %v823 = vsel %vm773, %v742, 0
        %v826 = vsel %vm773, %v743, 0
        %v829 = vsel %vm773, %v744, 0
        %v832 = vsel %vm773, %v745, 0
        %v835 = vsel %vm773, %v746, 0
        %v838 = vsel %vm773, %v747, 0
        %v841 = vsel %vm773, %v748, 0
        %v844 = vsel %vm773, %v749, 0
        %v847 = vsel %vm773, %v750, 0
        %v850 = vsel %vm773, %v751, 0
        %v853 = vsel %vm773, %v752, 0
        %v856 = vsel %vm773, %v753, 0
        %v859 = vsel %vm773, %v754, 0
        %v862 = vsel %vm773, %v755, 0
        %v865 = vsel %vm773, %v756, 0
        %v868 = vsel %vm773, %v757, 0
        %v871 = vsel %vm773, %v758, 0
        %v874 = vsel %vm773, %v759, 0
        %v877 = vsel %vm773, %v760, 0
        %v880 = vsel %vm773, %v761, 0
        %vm882 = vcmask 1043456
        %vm883 = vcmask 1044480
        %v884 = vsel %vm882, 4294967295, 65535
        %v885 = vsel %vm883, %v884, 0
        %v887 = vand.u32 %v771, %v885
        %889 = vmatpush.bf16.msra.mxu0 0
        %890 = vmatpush.bf16.msra.mxu0 0
        %891 = vmatpush.bf16.msra.mxu0 0
        %892 = vmatpush.bf16.msra.mxu0 0
        %893 = vmatpush.bf16.msra.mxu0 0
        %894 = vmatpush.bf16.msra.mxu0 0
        %895 = vmatpush.bf16.msra.mxu0 %v887
        %896 = vmatpush.bf16.msra.mxu0 %v770
        %897 = vmatmul.bf16.gmra.mxu0 %v775
        %v898 = vpop.f32.mrf.mxu0
        %v899 = vadd.f32 %v580, %v898
        %v900 = vpop.f32.mrf.mxu0
        %v901 = vadd.f32 %v580, %v900
        %902 = vmatmul.bf16.gmra.mxu0 %v778
        %v903 = vpop.f32.mrf.mxu0
        %v904 = vadd.f32 %v580, %v903
        %v905 = vpop.f32.mrf.mxu0
        %v906 = vadd.f32 %v580, %v905
        %907 = vmatmul.bf16.gmra.mxu0 %v781
        %v908 = vpop.f32.mrf.mxu0
        %v909 = vadd.f32 %v580, %v908
        %v910 = vpop.f32.mrf.mxu0
        %v911 = vadd.f32 %v580, %v910
        %912 = vmatmul.bf16.gmra.mxu0 %v784
        %v913 = vpop.f32.mrf.mxu0
        %v914 = vadd.f32 %v580, %v913
        %v915 = vpop.f32.mrf.mxu0
        %v916 = vadd.f32 %v580, %v915
        %917 = vmatmul.bf16.gmra.mxu0 %v787
        %v918 = vpop.f32.mrf.mxu0
        %v919 = vadd.f32 %v580, %v918
        %v920 = vpop.f32.mrf.mxu0
        %v921 = vadd.f32 %v580, %v920
        %922 = vmatmul.bf16.gmra.mxu0 %v790
        %v923 = vpop.f32.mrf.mxu0
        %v924 = vadd.f32 %v580, %v923
        %v925 = vpop.f32.mrf.mxu0
        %v926 = vadd.f32 %v580, %v925
        %927 = vmatmul.bf16.gmra.mxu0 %v793
        %v928 = vpop.f32.mrf.mxu0
        %v929 = vadd.f32 %v580, %v928
        %v930 = vpop.f32.mrf.mxu0
        %v931 = vadd.f32 %v580, %v930
        %932 = vmatmul.bf16.gmra.mxu0 %v796
        %v933 = vpop.f32.mrf.mxu0
        %v934 = vadd.f32 %v580, %v933
        %v935 = vpop.f32.mrf.mxu0
        %v936 = vadd.f32 %v580, %v935
        %937 = vmatmul.bf16.gmra.mxu0 %v799
        %v938 = vpop.f32.mrf.mxu0
        %v939 = vadd.f32 %v580, %v938
        %v940 = vpop.f32.mrf.mxu0
        %v941 = vadd.f32 %v580, %v940
        %942 = vmatmul.bf16.gmra.mxu0 %v802
        %v943 = vpop.f32.mrf.mxu0
        %v944 = vadd.f32 %v580, %v943
        %v945 = vpop.f32.mrf.mxu0
        %v946 = vadd.f32 %v580, %v945
        %947 = vmatmul.bf16.gmra.mxu0 %v805
        %v948 = vpop.f32.mrf.mxu0
        %v949 = vadd.f32 %v580, %v948
        %v950 = vpop.f32.mrf.mxu0
        %v951 = vadd.f32 %v580, %v950
        %952 = vmatmul.bf16.gmra.mxu0 %v808
        %v953 = vpop.f32.mrf.mxu0
        %v954 = vadd.f32 %v580, %v953
        %v955 = vpop.f32.mrf.mxu0
        %v956 = vadd.f32 %v580, %v955
        %957 = vmatmul.bf16.gmra.mxu0 %v811
        %v958 = vpop.f32.mrf.mxu0
        %v959 = vadd.f32 %v580, %v958
        %v960 = vpop.f32.mrf.mxu0
        %v961 = vadd.f32 %v580, %v960
        %962 = vmatmul.bf16.gmra.mxu0 %v814
        %v963 = vpop.f32.mrf.mxu0
        %v964 = vadd.f32 %v580, %v963
        %v965 = vpop.f32.mrf.mxu0
        %v966 = vadd.f32 %v580, %v965
        %967 = vmatmul.bf16.gmra.mxu0 %v817
        %v968 = vpop.f32.mrf.mxu0
        %v969 = vadd.f32 %v580, %v968
        %v970 = vpop.f32.mrf.mxu0
        %v971 = vadd.f32 %v580, %v970
        %972 = vmatmul.bf16.gmra.mxu0 %v820
        %v973 = vpop.f32.mrf.mxu0
        %v974 = vadd.f32 %v580, %v973
        %v975 = vpop.f32.mrf.mxu0
        %v976 = vadd.f32 %v580, %v975
        %977 = vmatmul.bf16.gmra.mxu0 %v823
        %v978 = vpop.f32.mrf.mxu0
        %v979 = vadd.f32 %v580, %v978
        %v980 = vpop.f32.mrf.mxu0
        %v981 = vadd.f32 %v580, %v980
        %982 = vmatmul.bf16.gmra.mxu0 %v826
        %v983 = vpop.f32.mrf.mxu0
        %v984 = vadd.f32 %v580, %v983
        %v985 = vpop.f32.mrf.mxu0
        %v986 = vadd.f32 %v580, %v985
        %987 = vmatmul.bf16.gmra.mxu0 %v829
        %v988 = vpop.f32.mrf.mxu0
        %v989 = vadd.f32 %v580, %v988
        %v990 = vpop.f32.mrf.mxu0
        %v991 = vadd.f32 %v580, %v990
        %992 = vmatmul.bf16.gmra.mxu0 %v832
        %v993 = vpop.f32.mrf.mxu0
        %v994 = vadd.f32 %v580, %v993
        %v995 = vpop.f32.mrf.mxu0
        %v996 = vadd.f32 %v580, %v995
        %997 = vmatmul.bf16.gmra.mxu0 %v835
        %v998 = vpop.f32.mrf.mxu0
        %v999 = vadd.f32 %v580, %v998
        %v1000 = vpop.f32.mrf.mxu0
        %v1001 = vadd.f32 %v580, %v1000
        %1002 = vmatmul.bf16.gmra.mxu0 %v838
        %v1003 = vpop.f32.mrf.mxu0
        %v1004 = vadd.f32 %v580, %v1003
        %v1005 = vpop.f32.mrf.mxu0
        %v1006 = vadd.f32 %v580, %v1005
        %1007 = vmatmul.bf16.gmra.mxu0 %v841
        %v1008 = vpop.f32.mrf.mxu0
        %v1009 = vadd.f32 %v580, %v1008
        %v1010 = vpop.f32.mrf.mxu0
        %v1011 = vadd.f32 %v580, %v1010
        %1012 = vmatmul.bf16.gmra.mxu0 %v844
        %v1013 = vpop.f32.mrf.mxu0
        %v1014 = vadd.f32 %v580, %v1013
        %v1015 = vpop.f32.mrf.mxu0
        %v1016 = vadd.f32 %v580, %v1015
        %1017 = vmatmul.bf16.gmra.mxu0 %v847
        %v1018 = vpop.f32.mrf.mxu0
        %v1019 = vadd.f32 %v580, %v1018
        %v1020 = vpop.f32.mrf.mxu0
        %v1021 = vadd.f32 %v580, %v1020
        %1022 = vmatmul.bf16.gmra.mxu0 %v850
        %v1023 = vpop.f32.mrf.mxu0
        %v1024 = vadd.f32 %v580, %v1023
        %v1025 = vpop.f32.mrf.mxu0
        %v1026 = vadd.f32 %v580, %v1025
        %1027 = vmatmul.bf16.gmra.mxu0 %v853
        %v1028 = vpop.f32.mrf.mxu0
        %v1029 = vadd.f32 %v580, %v1028
        %v1030 = vpop.f32.mrf.mxu0
        %v1031 = vadd.f32 %v580, %v1030
        %1032 = vmatmul.bf16.gmra.mxu0 %v856
        %v1033 = vpop.f32.mrf.mxu0
        %v1034 = vadd.f32 %v580, %v1033
        %v1035 = vpop.f32.mrf.mxu0
        %v1036 = vadd.f32 %v580, %v1035
        %1037 = vmatmul.bf16.gmra.mxu0 %v859
        %v1038 = vpop.f32.mrf.mxu0
        %v1039 = vadd.f32 %v580, %v1038
        %v1040 = vpop.f32.mrf.mxu0
        %v1041 = vadd.f32 %v580, %v1040
        %1042 = vmatmul.bf16.gmra.mxu0 %v862
        %v1043 = vpop.f32.mrf.mxu0
        %v1044 = vadd.f32 %v580, %v1043
        %v1045 = vpop.f32.mrf.mxu0
        %v1046 = vadd.f32 %v580, %v1045
        %1047 = vmatmul.bf16.gmra.mxu0 %v865
        %v1048 = vpop.f32.mrf.mxu0
        %v1049 = vadd.f32 %v580, %v1048
        %v1050 = vpop.f32.mrf.mxu0
        %v1051 = vadd.f32 %v580, %v1050
        %1052 = vmatmul.bf16.gmra.mxu0 %v868
        %v1053 = vpop.f32.mrf.mxu0
        %v1054 = vadd.f32 %v580, %v1053
        %v1055 = vpop.f32.mrf.mxu0
        %v1056 = vadd.f32 %v580, %v1055
        %1057 = vmatmul.bf16.gmra.mxu0 %v871
        %v1058 = vpop.f32.mrf.mxu0
        %v1059 = vadd.f32 %v580, %v1058
        %v1060 = vpop.f32.mrf.mxu0
        %v1061 = vadd.f32 %v580, %v1060
        %1062 = vmatmul.bf16.gmra.mxu0 %v874
        %v1063 = vpop.f32.mrf.mxu0
        %v1064 = vadd.f32 %v580, %v1063
        %v1065 = vpop.f32.mrf.mxu0
        %v1066 = vadd.f32 %v580, %v1065
        %1067 = vmatmul.bf16.gmra.mxu0 %v877
        %v1068 = vpop.f32.mrf.mxu0
        %v1069 = vadd.f32 %v580, %v1068
        %v1070 = vpop.f32.mrf.mxu0
        %v1071 = vadd.f32 %v580, %v1070
        %1072 = vmatmul.bf16.gmra.mxu0 %v880
        %v1073 = vpop.f32.mrf.mxu0
        %v1074 = vadd.f32 %v580, %v1073
        %v1075 = vpop.f32.mrf.mxu0
        %v1076 = vadd.f32 %v580, %v1075
        %1077 = vdwg.mxu0
        %v1078 = vmax.f32 %v899, 0.0
        %v1079 = vmax.f32 %v901, 0.0
        %v1080 = vmax.f32 %v904, 0.0
        %v1081 = vmax.f32 %v906, 0.0
        %v1082 = vmax.f32 %v909, 0.0
        %v1083 = vmax.f32 %v911, 0.0
        %v1084 = vmax.f32 %v914, 0.0
        %v1085 = vmax.f32 %v916, 0.0
        %v1086 = vmax.f32 %v919, 0.0
        %v1087 = vmax.f32 %v921, 0.0
        %v1088 = vmax.f32 %v924, 0.0
        %v1089 = vmax.f32 %v926, 0.0
        %v1090 = vmax.f32 %v929, 0.0
        %v1091 = vmax.f32 %v931, 0.0
        %v1092 = vmax.f32 %v934, 0.0
        %v1093 = vmax.f32 %v936, 0.0
        %v1094 = vmax.f32 %v939, 0.0
        %v1095 = vmax.f32 %v941, 0.0
        %v1096 = vmax.f32 %v944, 0.0
        %v1097 = vmax.f32 %v946, 0.0
        %v1098 = vmax.f32 %v949, 0.0
        %v1099 = vmax.f32 %v951, 0.0
        %v1100 = vmax.f32 %v954, 0.0
        %v1101 = vmax.f32 %v956, 0.0
        %v1102 = vmax.f32 %v959, 0.0
        %v1103 = vmax.f32 %v961, 0.0
        %v1104 = vmax.f32 %v964, 0.0
        %v1105 = vmax.f32 %v966, 0.0
        %v1106 = vmax.f32 %v969, 0.0
        %v1107 = vmax.f32 %v971, 0.0
        %v1108 = vmax.f32 %v974, 0.0
        %v1109 = vmax.f32 %v976, 0.0
        %v1110 = vmax.f32 %v979, 0.0
        %v1111 = vmax.f32 %v981, 0.0
        %v1112 = vmax.f32 %v984, 0.0
        %v1113 = vmax.f32 %v986, 0.0
        %v1114 = vmax.f32 %v989, 0.0
        %v1115 = vmax.f32 %v991, 0.0
        %v1116 = vmax.f32 %v994, 0.0
        %v1117 = vmax.f32 %v996, 0.0
        %v1118 = vmax.f32 %v999, 0.0
        %v1119 = vmax.f32 %v1001, 0.0
        %v1120 = vmax.f32 %v1004, 0.0
        %v1121 = vmax.f32 %v1006, 0.0
        %v1122 = vmax.f32 %v1009, 0.0
        %v1123 = vmax.f32 %v1011, 0.0
        %v1124 = vmax.f32 %v1014, 0.0
        %v1125 = vmax.f32 %v1016, 0.0
        %v1126 = vmax.f32 %v1019, 0.0
        %v1127 = vmax.f32 %v1021, 0.0
        %v1128 = vmax.f32 %v1024, 0.0
        %v1129 = vmax.f32 %v1026, 0.0
        %v1130 = vmax.f32 %v1029, 0.0
        %v1131 = vmax.f32 %v1031, 0.0
        %v1132 = vmax.f32 %v1034, 0.0
        %v1133 = vmax.f32 %v1036, 0.0
        %v1134 = vmax.f32 %v1039, 0.0
        %v1135 = vmax.f32 %v1041, 0.0
        %v1136 = vmax.f32 %v1044, 0.0
        %v1137 = vmax.f32 %v1046, 0.0
        %v1138 = vmax.f32 %v1049, 0.0
        %v1139 = vmax.f32 %v1051, 0.0
        %v1140 = vmax.f32 %v1054, 0.0
        %v1141 = vmax.f32 %v1056, 0.0
        %v1142 = vmax.f32 %v1059, 0.0
        %v1143 = vmax.f32 %v1061, 0.0
        %v1144 = vmax.f32 %v1064, 0.0
        %v1145 = vmax.f32 %v1066, 0.0
        %v1146 = vmax.f32 %v1069, 0.0
        %v1147 = vmax.f32 %v1071, 0.0
        %v1148 = vmax.f32 %v1074, 0.0
        %v1149 = vmax.f32 %v1076, 0.0
        %v1150 = vmax.f32 %v1078, %v1096
        %v1151 = vmax.f32 %v1079, %v1097
        %v1152 = vmax.f32 %v1080, %v1098
        %v1153 = vmax.f32 %v1081, %v1099
        %v1154 = vmax.f32 %v1082, %v1100
        %v1155 = vmax.f32 %v1083, %v1101
        %v1156 = vmax.f32 %v1084, %v1102
        %v1157 = vmax.f32 %v1085, %v1103
        %v1158 = vmax.f32 %v1086, %v1104
        %v1159 = vmax.f32 %v1087, %v1105
        %v1160 = vmax.f32 %v1088, %v1106
        %v1161 = vmax.f32 %v1089, %v1107
        %v1162 = vmax.f32 %v1090, %v1108
        %v1163 = vmax.f32 %v1091, %v1109
        %v1164 = vmax.f32 %v1092, %v1110
        %v1165 = vmax.f32 %v1093, %v1111
        %v1166 = vmax.f32 %v1094, %v1112
        %v1167 = vmax.f32 %v1095, %v1113
        %v1168 = vmax.f32 %v1114, %v1132
        %v1169 = vmax.f32 %v1115, %v1133
        %v1170 = vmax.f32 %v1116, %v1134
        %v1171 = vmax.f32 %v1117, %v1135
        %v1172 = vmax.f32 %v1118, %v1136
        %v1173 = vmax.f32 %v1119, %v1137
        %v1174 = vmax.f32 %v1120, %v1138
        %v1175 = vmax.f32 %v1121, %v1139
        %v1176 = vmax.f32 %v1122, %v1140
        %v1177 = vmax.f32 %v1123, %v1141
        %v1178 = vmax.f32 %v1124, %v1142
        %v1179 = vmax.f32 %v1125, %v1143
        %v1180 = vmax.f32 %v1126, %v1144
        %v1181 = vmax.f32 %v1127, %v1145
        %v1182 = vmax.f32 %v1128, %v1146
        %v1183 = vmax.f32 %v1129, %v1147
        %v1184 = vmax.f32 %v1130, %v1148
        %v1185 = vmax.f32 %v1131, %v1149
        %v1186 = vmax.f32 %v1150, %v1168
        %v1187 = vmax.f32 %v1151, %v1169
        %v1188 = vmax.f32 %v1152, %v1170
        %v1189 = vmax.f32 %v1153, %v1171
        %v1190 = vmax.f32 %v1154, %v1172
        %v1191 = vmax.f32 %v1155, %v1173
        %v1192 = vmax.f32 %v1156, %v1174
        %v1193 = vmax.f32 %v1157, %v1175
        %v1194 = vmax.f32 %v1158, %v1176
        %v1195 = vmax.f32 %v1159, %v1177
        %v1196 = vmax.f32 %v1160, %v1178
        %v1197 = vmax.f32 %v1161, %v1179
        %v1198 = vmax.f32 %v1162, %v1180
        %v1199 = vmax.f32 %v1163, %v1181
        %v1200 = vmax.f32 %v1164, %v1182
        %v1201 = vmax.f32 %v1165, %v1183
        %v1202 = vmax.f32 %v1166, %v1184
        %v1203 = vmax.f32 %v1167, %v1185
        %v1204 = vpack.c.bf16 %v1186, %v1186
        %v1205 = vpack.c.bf16 %v1187, %v1187
        %v1206 = vpack.c.bf16 %v1188, %v1188
        %v1207 = vpack.c.bf16 %v1189, %v1189
        %v1208 = vpack.c.bf16 %v1190, %v1190
        %v1209 = vpack.c.bf16 %v1191, %v1191
        %v1210 = vpack.c.bf16 %v1192, %v1192
        %v1211 = vpack.c.bf16 %v1193, %v1193
        %v1212 = vpack.c.bf16 %v1194, %v1194
        %v1213 = vpack.c.bf16 %v1195, %v1195
        %v1214 = vpack.c.bf16 %v1196, %v1196
        %v1215 = vpack.c.bf16 %v1197, %v1197
        %v1216 = vpack.c.bf16 %v1198, %v1198
        %v1217 = vpack.c.bf16 %v1199, %v1199
        %v1218 = vpack.c.bf16 %v1200, %v1200
        %v1219 = vpack.c.bf16 %v1201, %v1201
        %v1220 = vpack.c.bf16 %v1202, %v1202
        %v1221 = vpack.c.bf16 %v1203, %v1203
        %1222 = vst [vmem:[%s499] sm:$0xf] %v1204
        %1223 = vst [vmem:[%s499 + $0x4] sm:$0xf] %v1205
        %1224 = vst [vmem:[%s499 + $0x8] sm:$0xf] %v1206
        %1225 = vst [vmem:[%s499 + $0xc] sm:$0xf] %v1207
        %1226 = vst [vmem:[%s499 + $0x10] sm:$0xf] %v1208
        %1227 = vst [vmem:[%s499 + $0x14] sm:$0xf] %v1209
        %1228 = vst [vmem:[%s499 + $0x18] sm:$0xf] %v1210
        %1229 = vst [vmem:[%s499 + $0x1c] sm:$0xf] %v1211
        %1230 = vst [vmem:[%s499 + $0x20] sm:$0xf] %v1212
        %1231 = vst [vmem:[%s499 + $0x24] sm:$0xf] %v1213
        %1232 = vst [vmem:[%s499 + $0x28] sm:$0xf] %v1214
        %1233 = vst [vmem:[%s499 + $0x2c] sm:$0xf] %v1215
        %1234 = vst [vmem:[%s499 + $0x30] sm:$0xf] %v1216
        %1235 = vst [vmem:[%s499 + $0x34] sm:$0xf] %v1217
        %1236 = vst [vmem:[%s499 + $0x38] sm:$0xf] %v1218
        %1237 = vst [vmem:[%s499 + $0x3c] sm:$0xf] %v1219
        %1238 = vst [vmem:[%s499 + $0x40] sm:$0xf] %v1220
        %1239 = vst [vmem:[%s499 + $0x44] sm:$0xf] %v1221
        %s1240 = smul.u32 18, %s14
        %p1241 = scmp.lt.s32.totalorder %s1240, 35
        %s1242 = scalar_select %p1241, %s1240, 35
        %s1243 = smul.addr %s1242, 4
        %s1244 = scalar_lea.vmem %s3, %s1243
        // Predicated region
        $region74: #{net_forward.7} parent=68 // pred_check
          %p1245 = pneg %p100
        $region75: #{net_forward.7} parent=68 // pred_check_branch
          %1247 = sbr.rel (%p1245) target = $region77
        $region76: #{net_forward.7} parent=68 // pred_region
          %s1248 = smul.u32 18, %s14
        $region77: #{net_forward.7} parent=68 // pred_fallthru
          _
      $region69: #{net_forward.7} parent=5 // pred_fallthru
        _
      %p1249 = scmp.le.s32.totalorder 2, %s9
      // Predicated region
      $region78: #{net_forward.7} parent=5 // pred_check
        %p1250 = pneg %p1249
      $region79: #{net_forward.7} parent=5 // pred_check_branch
        %1252 = sbr.rel (%p1250) target = $region81
      $region80: #{net_forward.7} parent=5 // pred_region
        %s1253 = ssub.s32 %s9, 2
        // Predicated region
        $region82: #{net_forward.7} parent=80 // pred_check
          %p1254 = pneg %p106
        $region83: #{net_forward.7} parent=80 // pred_check_branch
          %1256 = sbr.rel (%p1254) target = $region85
        $region84: #{net_forward.7} parent=80 // pred_region
          %s1257 = smul.u32 18, %s15
          %p1258 = scmp.lt.s32.totalorder %s1257, 35
          %s1259 = scalar_select %p1258, %s1257, 35
          %s1260 = smul.addr %s1259, 4
          %s1261 = scalar_lea.vmem %s3, %s1260
        $region85: #{net_forward.7} parent=80 // pred_fallthru
          _
      $region81: #{net_forward.7} parent=5 // pred_fallthru
        _
    $region6: #{net_forward.7} parent=1 // loop_footer
      %s13 = sadd.s32 1, %s9
    $region7: #{net_forward.7} parent=1 // loop_footer_branch
      %8 = sbr.rel target = $region3
    $region8: #{net_forward.7} parent=1 // loop_exit
      _

// kernel: net_forward.8
$region0: #{net_forward.8}
  #allocation0 [shape = 'u32[]', space=smem, size = 0x4, offset = 0x4, fixed_abs, tag = 'smem constant byte address 0x4 - core index']
  #allocation1 [shape = 'u32[72,128]{1,0:T(1,128)}', space=vmem, size = 0x9000, scoped, tag = 'internal scratch']
  %s0 = inlined_call_operand.vmem [shape: bf16[288,144], index: 0, kind: input, shape index: {}]
  %s1 = inlined_call_operand.vmem [shape: bf16[144,128], index: 1, kind: input, shape index: {}]
  %s2 = inlined_call_operand.vmem [shape: f32[1,128], index: 2, kind: input, shape index: {}]
  %s3 = inlined_call_operand.vmem [shape: bf16[288,128], index: 3, kind: output, shape index: {}]
  %s4 = sld [smem:[#allocation0]]
  $region45: #{net_forward.8} parent=0
    _
  %s6 = ssub.s32 1, %s4
  %s7 = scalar_select 0, %s6, %s4
  loop: start=0, step=1, limit=4
  $region2: #{net_forward.8} parent=0 // loop_pre_header
    _
  $region3: #{net_forward.8} parent=0 // loop_header
    %s9 = sphi 0, %s13
    %p10 = scmp.ge.s32.totalorder %s9, 4
    %s19 = sphi 0, %s21
    %s22 = sphi 0, %s19
    %s23 = sphi 0, %s22
    %s39 = sphi 0, %s23
    %s43 = sphi 0, %s43
    %s45 = sphi 0, %s43
    %s46 = sphi 0, %s45
    %s60 = sphi 0, %s46
    %s64 = sphi 0, %s64
    %s66 = sphi 0, %s64
    %s67 = sphi 0, %s66
    %s81 = sphi 0, %s67
    %s87 = sphi 0, %s89
    %s90 = sphi 0, %s87
    %s91 = sphi 0, %s90
    %s107 = sphi 0, %s91
  $region4: #{net_forward.8} parent=0 // loop_header_branch
    %12 = sbr.rel (%p10) target = $region8
  $region5: #{net_forward.8} parent=0 // loop_body
    %s14 = ssub.s32 %s9, 1
    %s15 = ssub.s32 %s9, 2
    %s16 = sadd.s32 %s9, 1
    %s17 = ssub.s32 %s9, %s16
    %p18 = scmp.eq.s32.totalorder %s17, 0
    %s20 = sadd.s32 %s19, 1
    %s21 = scalar_select %p18, %s19, %s20
    %p24 = pneg %p18
    %p25 = scmp.eq.s32.totalorder %s9, 1
    %p26 = por %p24, %p25
    %p27 = scmp.ne.s32.totalorder %s19, %s22
    %p28 = scmp.eq.s32.totalorder %s9, 0
    %p29 = por %p27, %p28
    %p30 = scmp.ne.s32.totalorder %s19, %s22
    %p31 = scmp.eq.s32.totalorder %s14, 1
    %p32 = por %p30, %p31
    %p33 = scmp.ne.s32.totalorder %s22, %s23
    %p34 = scmp.eq.s32.totalorder %s14, 0
    %p35 = por %p33, %p34
    %p36 = scmp.ne.s32.totalorder %s22, %s23
    %p37 = scmp.eq.s32.totalorder %s15, 1
    %p38 = por %p36, %p37
    %p40 = scmp.ne.s32.totalorder %s23, %s39
    %p41 = scmp.eq.s32.totalorder %s15, 0
    %p42 = por %p40, %p41
    %s44 = sadd.s32 %s43, 1
    %p47 = scmp.eq.s32.totalorder %s9, 1
    %p48 = scmp.ne.s32.totalorder %s43, %s45
    %p49 = scmp.eq.s32.totalorder %s9, 0
    %p50 = por %p48, %p49
    %p51 = scmp.ne.s32.totalorder %s43, %s45
    %p52 = scmp.eq.s32.totalorder %s14, 1
    %p53 = por %p51, %p52
    %p54 = scmp.ne.s32.totalorder %s45, %s46
    %p55 = scmp.eq.s32.totalorder %s14, 0
    %p56 = por %p54, %p55
    %p57 = scmp.ne.s32.totalorder %s45, %s46
    %p58 = scmp.eq.s32.totalorder %s15, 1
    %p59 = por %p57, %p58
    %p61 = scmp.ne.s32.totalorder %s46, %s60
    %p62 = scmp.eq.s32.totalorder %s15, 0
    %p63 = por %p61, %p62
    %s65 = sadd.s32 %s64, 1
    %p68 = scmp.eq.s32.totalorder %s9, 1
    %p69 = scmp.ne.s32.totalorder %s64, %s66
    %p70 = scmp.eq.s32.totalorder %s9, 0
    %p71 = por %p69, %p70
    %p72 = scmp.ne.s32.totalorder %s64, %s66
    %p73 = scmp.eq.s32.totalorder %s14, 1
    %p74 = por %p72, %p73
    %p75 = scmp.ne.s32.totalorder %s66, %s67
    %p76 = scmp.eq.s32.totalorder %s14, 0
    %p77 = por %p75, %p76
    %p78 = scmp.ne.s32.totalorder %s66, %s67
    %p79 = scmp.eq.s32.totalorder %s15, 1
    %p80 = por %p78, %p79
    %p82 = scmp.ne.s32.totalorder %s67, %s81
    %p83 = scmp.eq.s32.totalorder %s15, 0
    %p84 = por %p82, %p83
    %s85 = ssub.s32 %s9, %s16
    %p86 = scmp.eq.s32.totalorder %s85, 0
    %s88 = sadd.s32 %s87, 1
    %s89 = scalar_select %p86, %s87, %s88
    %p92 = pneg %p86
    %p93 = scmp.eq.s32.totalorder %s9, 1
    %p94 = por %p92, %p93
    %p95 = scmp.ne.s32.totalorder %s87, %s90
    %p96 = scmp.eq.s32.totalorder %s9, 0
    %p97 = por %p95, %p96
    %p98 = scmp.ne.s32.totalorder %s87, %s90
    %p99 = scmp.eq.s32.totalorder %s14, 1
    %p100 = por %p98, %p99
    %p101 = scmp.ne.s32.totalorder %s90, %s91
    %p102 = scmp.eq.s32.totalorder %s14, 0
    %p103 = por %p101, %p102
    %p104 = scmp.ne.s32.totalorder %s90, %s91
    %p105 = scmp.eq.s32.totalorder %s15, 1
    %p106 = por %p104, %p105
    %p108 = scmp.ne.s32.totalorder %s91, %s107
    %p109 = scmp.eq.s32.totalorder %s15, 0
    %p110 = por %p108, %p109
    %p111 = scmp.le.s32.totalorder 1, %s9
    %p112 = scmp.lt.s32.totalorder %s9, 3
    %p113 = pnand %p111, %p112
    %p114 = pneg %p113
    // Predicated region
    $region9: #{net_forward.8} parent=5 // pred_check
      _
    $region10: #{net_forward.8} parent=5 // pred_check_branch
      %116 = sbr.rel (%p113) target = $region12
    $region11: #{net_forward.8} parent=5 // pred_region
      %s117 = ssub.s32 %s9, 1
      // Predicated region
      $region13: #{net_forward.8} parent=11 // pred_check
        %p118 = pneg %p56
      $region14: #{net_forward.8} parent=11 // pred_check_branch
        %120 = sbr.rel (%p118) target = $region16
      $region15: #{net_forward.8} parent=11 // pred_region
        _
      $region16: #{net_forward.8} parent=11 // pred_fallthru
        _
      // Predicated region
      $region17: #{net_forward.8} parent=11 // pred_check
        %p121 = pneg %p77
      $region18: #{net_forward.8} parent=11 // pred_check_branch
        %123 = sbr.rel (%p121) target = $region20
      $region19: #{net_forward.8} parent=11 // pred_region
        _
      $region20: #{net_forward.8} parent=11 // pred_fallthru
        _
    $region12: #{net_forward.8} parent=5 // pred_fallthru
      _
    %p124 = scmp.lt.s32.totalorder %s9, 2
    // Predicated region
    $region21: #{net_forward.8} parent=5 // pred_check
      %p125 = pneg %p124
    $region22: #{net_forward.8} parent=5 // pred_check_branch
      %127 = sbr.rel (%p125) target = $region24
    $region23: #{net_forward.8} parent=5 // pred_region
      // Predicated region
      $region25: #{net_forward.8} parent=23 // pred_check
        %p128 = pneg %p29
      $region26: #{net_forward.8} parent=23 // pred_check_branch
        %130 = sbr.rel (%p128) target = $region28
      $region27: #{net_forward.8} parent=23 // pred_region
        %s131 = smul.u32 18, %s9
        %p132 = scmp.lt.s32.totalorder %s131, 35
        %s133 = scalar_select %p132, %s131, 35
        %s134 = smul.addr %s133, 2
        %s135 = smul.addr %s134, 4
        %s136 = scalar_lea.vmem %s0, %s135
        %s137 = smul.u32 18, %s9
      $region28: #{net_forward.8} parent=23 // pred_fallthru
        _
    $region24: #{net_forward.8} parent=5 // pred_fallthru
      _
    %p138 = scmp.le.s32.totalorder 1, %s9
    %p139 = scmp.lt.s32.totalorder %s9, 3
    %p140 = pnand %p138, %p139
    %p141 = pneg %p140
    // Predicated region
    $region29: #{net_forward.8} parent=5 // pred_check
      _
    $region30: #{net_forward.8} parent=5 // pred_check_branch
      %143 = sbr.rel (%p140) target = $region32
    $region31: #{net_forward.8} parent=5 // pred_region
      %s144 = ssub.s32 %s9, 1
      %s145 = smul.u32 18, %s14
      %p146 = scmp.lt.s32.totalorder %s145, 35
      %s147 = scalar_select %p146, %s145, 35
      %s148 = smul.addr %s147, 2
      %s149 = smul.addr %s148, 4
      %s150 = scalar_lea.vmem %s0, %s149
      %p151 = pneg %p35
      %p152 = pneg %p32
      %p153 = pneg %p56
      %p154 = pneg %p53
      %p155 = pneg %p77
      %p156 = pneg %p74
      %p157 = pneg %p103
      %p158 = pneg %p100
      %s159 = smul.u32 18, %s14
      %p160 = scmp.lt.s32.totalorder %s159, 35
      %s161 = scalar_select %p160, %s159, 35
      %s162 = smul.addr %s161, 4
      %s163 = scalar_lea.vmem %s3, %s162
      %s164 = smul.u32 18, %s14
      %p165 = scmp.lt.s32.totalorder %s164, 35
      %s166 = scalar_select %p165, %s164, 35
      %s167 = smul.addr %s166, 2
      %s168 = smul.addr %s167, 4
      %s169 = scalar_lea.vmem %s0, %s168
      %s170 = smul.u32 18, %s14
      %s171 = smul.u32 18, %s14
      %p172 = scmp.lt.s32.totalorder %s171, 35
      %s173 = scalar_select %p172, %s171, 35
      %s174 = smul.addr %s173, 4
      %s175 = scalar_lea.vmem %s3, %s174
      %s176 = smul.u32 18, %s14
      %v178 = vld [vmem:[%s169] sm:$0xff]
      %v179 = vld [vmem:[%s169 + $0x8] sm:$0xff]
      %v180 = vld [vmem:[%s169 + $0x10] sm:$0xff]
      %v181 = vld [vmem:[%s169 + $0x18] sm:$0xff]
      %v182 = vld [vmem:[%s169 + $0x20] sm:$0xff]
      %v183 = vld [vmem:[%s169 + $0x28] sm:$0xff]
      %v184 = vld [vmem:[%s169 + $0x30] sm:$0xff]
      %v185 = vld [vmem:[%s169 + $0x38] sm:$0xff]
      %v186 = vld [vmem:[%s169 + $0x40] sm:$0xff]
      %v187 = vld [vmem:[%s169 + $0x48] sm:$0xff]
      %v188 = vld [vmem:[%s169 + $0x50] sm:$0xff]
      %v189 = vld [vmem:[%s169 + $0x58] sm:$0xff]
      %v190 = vld [vmem:[%s169 + $0x60] sm:$0xff]
      %v191 = vld [vmem:[%s169 + $0x68] sm:$0xff]
      %v192 = vld [vmem:[%s169 + $0x70] sm:$0xff]
      %v193 = vld [vmem:[%s169 + $0x78] sm:$0xff]
      %v194 = vld [vmem:[%s169 + $0x80] sm:$0xff]
      %v195 = vld [vmem:[%s169 + $0x88] sm:$0xff]
      %v196 = vld [vmem:[%s1] sm:$0xf]
      %v197 = vld [vmem:[%s1 + $0x4] sm:$0xf]
      %v198 = vld [vmem:[%s1 + $0x8] sm:$0xf]
      %v199 = vld [vmem:[%s1 + $0xc] sm:$0xf]
      %v200 = vld [vmem:[%s1 + $0x10] sm:$0xf]
      %v201 = vld [vmem:[%s1 + $0x14] sm:$0xf]
      %v202 = vld [vmem:[%s1 + $0x18] sm:$0xf]
      %v203 = vld [vmem:[%s1 + $0x1c] sm:$0xf]
      %v204 = vld [vmem:[%s1 + $0x20] sm:$0xf]
      %v205 = vld [vmem:[%s1 + $0x24] sm:$0xf]
      %v206 = vld [vmem:[%s1 + $0x28] sm:$0xf]
      %v207 = vld [vmem:[%s1 + $0x2c] sm:$0xf]
      %v208 = vld [vmem:[%s1 + $0x30] sm:$0xf]
      %v209 = vld [vmem:[%s1 + $0x34] sm:$0xf]
      %v210 = vld [vmem:[%s1 + $0x38] sm:$0xf]
      %v211 = vld [vmem:[%s1 + $0x3c] sm:$0xf]
      %v212 = vld [vmem:[%s1 + $0x40] sm:$0xf]
      %v213 = vld [vmem:[%s1 + $0x44] sm:$0xf]
      %v214 = vld [vmem:[%s2] sm:$0x1]
      %v216 = vperm.slane %v214, 0
      %v236 = vunpack.c.l.b16 %v178
      %v237 = vunpack.c.h.b16 %v178
      %v238 = vunpack.c.l.b16 %v179
      %v239 = vunpack.c.h.b16 %v179
      %v240 = vunpack.c.l.b16 %v180
      %v241 = vunpack.c.h.b16 %v180
      %v242 = vunpack.c.l.b16 %v181
      %v243 = vunpack.c.h.b16 %v181
      %v244 = vunpack.c.l.b16 %v182
      %v245 = vunpack.c.h.b16 %v182
      %v246 = vunpack.c.l.b16 %v183
      %v247 = vunpack.c.h.b16 %v183
      %v248 = vunpack.c.l.b16 %v184
      %v249 = vunpack.c.h.b16 %v184
      %v250 = vunpack.c.l.b16 %v185
      %v251 = vunpack.c.h.b16 %v185
      %v252 = vunpack.c.l.b16 %v186
      %v253 = vunpack.c.h.b16 %v186
      %v254 = vunpack.c.l.b16 %v187
      %v255 = vunpack.c.h.b16 %v187
      %v256 = vunpack.c.l.b16 %v188
      %v257 = vunpack.c.h.b16 %v188
      %v258 = vunpack.c.l.b16 %v189
      %v259 = vunpack.c.h.b16 %v189
      %v260 = vunpack.c.l.b16 %v190
      %v261 = vunpack.c.h.b16 %v190
      %v262 = vunpack.c.l.b16 %v191
      %v263 = vunpack.c.h.b16 %v191
      %v264 = vunpack.c.l.b16 %v192
      %v265 = vunpack.c.h.b16 %v192
      %v266 = vunpack.c.l.b16 %v193
      %v267 = vunpack.c.h.b16 %v193
      %v268 = vunpack.c.l.b16 %v194
      %v269 = vunpack.c.h.b16 %v194
      %v270 = vunpack.c.l.b16 %v195
      %v271 = vunpack.c.h.b16 %v195
      %v272 = vpack.c.b16 %v238, %v236
      %v273 = vpack.c.b16 %v239, %v237
      %v274 = vpack.c.b16 %v242, %v240
      %v275 = vpack.c.b16 %v243, %v241
      %v276 = vpack.c.b16 %v246, %v244
      %v277 = vpack.c.b16 %v247, %v245
      %v278 = vpack.c.b16 %v250, %v248
      %v279 = vpack.c.b16 %v251, %v249
      %v280 = vpack.c.b16 %v254, %v252
      %v281 = vpack.c.b16 %v255, %v253
      %v282 = vpack.c.b16 %v258, %v256
      %v283 = vpack.c.b16 %v259, %v257
      %v284 = vpack.c.b16 %v262, %v260
      %v285 = vpack.c.b16 %v263, %v261
      %v286 = vpack.c.b16 %v266, %v264
      %v287 = vpack.c.b16 %v267, %v265
      %v288 = vpack.c.b16 %v270, %v268
      %v289 = vpack.c.b16 %v271, %v269
      %v317 = vunpack.c.l.b16 %v196
      %v318 = vunpack.c.l.b16 %v197
      %v319 = vunpack.c.l.b16 %v198
      %v320 = vunpack.c.l.b16 %v199
      %v321 = vunpack.c.l.b16 %v200
      %v322 = vunpack.c.l.b16 %v201
      %v323 = vunpack.c.l.b16 %v202
      %v324 = vunpack.c.l.b16 %v203
      %v325 = vunpack.c.l.b16 %v204
      %v326 = vunpack.c.l.b16 %v205
      %v327 = vunpack.c.l.b16 %v206
      %v328 = vunpack.c.l.b16 %v207
      %v329 = vunpack.c.l.b16 %v208
      %v330 = vunpack.c.l.b16 %v209
      %v331 = vunpack.c.l.b16 %v210
      %v332 = vunpack.c.l.b16 %v211
      %v333 = vunpack.c.l.b16 %v212
      %v334 = vunpack.c.l.b16 %v213
      %v335 = vpack.c.b16 %v318, %v317
      %v336 = vpack.c.b16 %v320, %v319
      %v337 = vpack.c.b16 %v322, %v321
      %v338 = vpack.c.b16 %v324, %v323
      %v339 = vpack.c.b16 %v326, %v325
      %v340 = vpack.c.b16 %v328, %v327
      %v341 = vpack.c.b16 %v330, %v329
      %v342 = vpack.c.b16 %v332, %v331
      %v343 = vpack.c.b16 %v334, %v333
      %vm353 = vcmask 130048
      %v355 = vsel %vm353, %v273, 0
      %v358 = vsel %vm353, %v275, 0
      %v361 = vsel %vm353, %v277, 0
      %v364 = vsel %vm353, %v279, 0
      %v367 = vsel %vm353, %v281, 0
      %v370 = vsel %vm353, %v283, 0
      %v373 = vsel %vm353, %v285, 0
      %v376 = vsel %vm353, %v287, 0
      %v379 = vsel %vm353, %v289, 0
      %381 = vmatpush.bf16.msra.mxu0 %v342
      %382 = vmatpush.bf16.msra.mxu0 %v341
      %383 = vmatpush.bf16.msra.mxu0 %v340
      %384 = vmatpush.bf16.msra.mxu0 %v339
      %385 = vmatpush.bf16.msra.mxu0 %v338
      %386 = vmatpush.bf16.msra.mxu0 %v337
      %387 = vmatpush.bf16.msra.mxu0 %v336
      %388 = vmatpush.bf16.msra.mxu0 %v335
      %389 = vmatmul.bf16.gmra.mxu0 %v272
      %v390 = vpop.f32.mrf.mxu0
      %v391 = vadd.f32 %v216, %v390
      %v392 = vpop.f32.mrf.mxu0
      %v393 = vadd.f32 %v216, %v392
      %394 = vmatmul.bf16.gmra.mxu0 %v274
      %v395 = vpop.f32.mrf.mxu0
      %v396 = vadd.f32 %v216, %v395
      %v397 = vpop.f32.mrf.mxu0
      %v398 = vadd.f32 %v216, %v397
      %399 = vmatmul.bf16.gmra.mxu0 %v276
      %v400 = vpop.f32.mrf.mxu0
      %v401 = vadd.f32 %v216, %v400
      %v402 = vpop.f32.mrf.mxu0
      %v403 = vadd.f32 %v216, %v402
      %404 = vmatmul.bf16.gmra.mxu0 %v278
      %v405 = vpop.f32.mrf.mxu0
      %v406 = vadd.f32 %v216, %v405
      %v407 = vpop.f32.mrf.mxu0
      %v408 = vadd.f32 %v216, %v407
      %409 = vmatmul.bf16.gmra.mxu0 %v280
      %v410 = vpop.f32.mrf.mxu0
      %v411 = vadd.f32 %v216, %v410
      %v412 = vpop.f32.mrf.mxu0
      %v413 = vadd.f32 %v216, %v412
      %414 = vmatmul.bf16.gmra.mxu0 %v282
      %v415 = vpop.f32.mrf.mxu0
      %v416 = vadd.f32 %v216, %v415
      %v417 = vpop.f32.mrf.mxu0
      %v418 = vadd.f32 %v216, %v417
      %419 = vmatmul.bf16.gmra.mxu0 %v284
      %v420 = vpop.f32.mrf.mxu0
      %v421 = vadd.f32 %v216, %v420
      %v422 = vpop.f32.mrf.mxu0
      %v423 = vadd.f32 %v216, %v422
      %424 = vmatmul.bf16.gmra.mxu0 %v286
      %v425 = vpop.f32.mrf.mxu0
      %v426 = vadd.f32 %v216, %v425
      %v427 = vpop.f32.mrf.mxu0
      %v428 = vadd.f32 %v216, %v427
      %429 = vmatmul.bf16.gmra.mxu0 %v288
      %v430 = vpop.f32.mrf.mxu0
      %v431 = vadd.f32 %v216, %v430
      %v432 = vpop.f32.mrf.mxu0
      %v433 = vadd.f32 %v216, %v432
      %434 = vdwg.mxu0
      %435 = vmatpush.bf16.msra.mxu0 0
      %436 = vmatpush.bf16.msra.mxu0 0
      %437 = vmatpush.bf16.msra.mxu0 0
      %438 = vmatpush.bf16.msra.mxu0 0
      %439 = vmatpush.bf16.msra.mxu0 0
      %440 = vmatpush.bf16.msra.mxu0 0
      %441 = vmatpush.bf16.msra.mxu0 0
      %442 = vmatpush.bf16.msra.mxu0 %v343
      %443 = vmatmul.bf16.gmra.mxu0 %v355
      %v444 = vpop.f32.mrf.mxu0
      %v445 = vadd.f32 %v391, %v444
      %v446 = vpop.f32.mrf.mxu0
      %v447 = vadd.f32 %v393, %v446
      %448 = vmatmul.bf16.gmra.mxu0 %v358
      %v449 = vpop.f32.mrf.mxu0
      %v450 = vadd.f32 %v396, %v449
      %v451 = vpop.f32.mrf.mxu0
      %v452 = vadd.f32 %v398, %v451
      %453 = vmatmul.bf16.gmra.mxu0 %v361
      %v454 = vpop.f32.mrf.mxu0
      %v455 = vadd.f32 %v401, %v454
      %v456 = vpop.f32.mrf.mxu0
      %v457 = vadd.f32 %v403, %v456
      %458 = vmatmul.bf16.gmra.mxu0 %v364
      %v459 = vpop.f32.mrf.mxu0
      %v460 = vadd.f32 %v406, %v459
      %v461 = vpop.f32.mrf.mxu0
      %v462 = vadd.f32 %v408, %v461
      %463 = vmatmul.bf16.gmra.mxu0 %v367
      %v464 = vpop.f32.mrf.mxu0
      %v465 = vadd.f32 %v411, %v464
      %v466 = vpop.f32.mrf.mxu0
      %v467 = vadd.f32 %v413, %v466
      %468 = vmatmul.bf16.gmra.mxu0 %v370
      %v469 = vpop.f32.mrf.mxu0
      %v470 = vadd.f32 %v416, %v469
      %v471 = vpop.f32.mrf.mxu0
      %v472 = vadd.f32 %v418, %v471
      %473 = vmatmul.bf16.gmra.mxu0 %v373
      %v474 = vpop.f32.mrf.mxu0
      %v475 = vadd.f32 %v421, %v474
      %v476 = vpop.f32.mrf.mxu0
      %v477 = vadd.f32 %v423, %v476
      %478 = vmatmul.bf16.gmra.mxu0 %v376
      %v479 = vpop.f32.mrf.mxu0
      %v480 = vadd.f32 %v426, %v479
      %v481 = vpop.f32.mrf.mxu0
      %v482 = vadd.f32 %v428, %v481
      %483 = vmatmul.bf16.gmra.mxu0 %v379
      %v484 = vpop.f32.mrf.mxu0
      %v485 = vadd.f32 %v431, %v484
      %v486 = vpop.f32.mrf.mxu0
      %v487 = vadd.f32 %v433, %v486
      %488 = vdwg.mxu0
      %v489 = vmax.f32 %v445, 0.0
      %v490 = vmax.f32 %v447, 0.0
      %v491 = vmax.f32 %v450, 0.0
      %v492 = vmax.f32 %v452, 0.0
      %v493 = vmax.f32 %v455, 0.0
      %v494 = vmax.f32 %v457, 0.0
      %v495 = vmax.f32 %v460, 0.0
      %v496 = vmax.f32 %v462, 0.0
      %v497 = vmax.f32 %v465, 0.0
      %v498 = vmax.f32 %v467, 0.0
      %v499 = vmax.f32 %v470, 0.0
      %v500 = vmax.f32 %v472, 0.0
      %v501 = vmax.f32 %v475, 0.0
      %v502 = vmax.f32 %v477, 0.0
      %v503 = vmax.f32 %v480, 0.0
      %v504 = vmax.f32 %v482, 0.0
      %v505 = vmax.f32 %v485, 0.0
      %v506 = vmax.f32 %v487, 0.0
      %v507 = vpack.c.bf16 %v489, %v489
      %v508 = vpack.c.bf16 %v490, %v490
      %v509 = vpack.c.bf16 %v491, %v491
      %v510 = vpack.c.bf16 %v492, %v492
      %v511 = vpack.c.bf16 %v493, %v493
      %v512 = vpack.c.bf16 %v494, %v494
      %v513 = vpack.c.bf16 %v495, %v495
      %v514 = vpack.c.bf16 %v496, %v496
      %v515 = vpack.c.bf16 %v497, %v497
      %v516 = vpack.c.bf16 %v498, %v498
      %v517 = vpack.c.bf16 %v499, %v499
      %v518 = vpack.c.bf16 %v500, %v500
      %v519 = vpack.c.bf16 %v501, %v501
      %v520 = vpack.c.bf16 %v502, %v502
      %v521 = vpack.c.bf16 %v503, %v503
      %v522 = vpack.c.bf16 %v504, %v504
      %v523 = vpack.c.bf16 %v505, %v505
      %v524 = vpack.c.bf16 %v506, %v506
      %525 = vst [vmem:[%s175] sm:$0xf] %v507
      %526 = vst [vmem:[%s175 + $0x4] sm:$0xf] %v508
      %527 = vst [vmem:[%s175 + $0x8] sm:$0xf] %v509
      %528 = vst [vmem:[%s175 + $0xc] sm:$0xf] %v510
      %529 = vst [vmem:[%s175 + $0x10] sm:$0xf] %v511
      %530 = vst [vmem:[%s175 + $0x14] sm:$0xf] %v512
      %531 = vst [vmem:[%s175 + $0x18] sm:$0xf] %v513
      %532 = vst [vmem:[%s175 + $0x1c] sm:$0xf] %v514
      %533 = vst [vmem:[%s175 + $0x20] sm:$0xf] %v515
      %534 = vst [vmem:[%s175 + $0x24] sm:$0xf] %v516
      %535 = vst [vmem:[%s175 + $0x28] sm:$0xf] %v517
      %536 = vst [vmem:[%s175 + $0x2c] sm:$0xf] %v518
      %537 = vst [vmem:[%s175 + $0x30] sm:$0xf] %v519
      %538 = vst [vmem:[%s175 + $0x34] sm:$0xf] %v520
      %539 = vst [vmem:[%s175 + $0x38] sm:$0xf] %v521
      %540 = vst [vmem:[%s175 + $0x3c] sm:$0xf] %v522
      %541 = vst [vmem:[%s175 + $0x40] sm:$0xf] %v523
      %542 = vst [vmem:[%s175 + $0x44] sm:$0xf] %v524
      %s543 = smul.u32 18, %s14
      %p544 = scmp.lt.s32.totalorder %s543, 35
      %s545 = scalar_select %p544, %s543, 35
      %s546 = smul.addr %s545, 4
      %s547 = scalar_lea.vmem %s3, %s546
      // Predicated region
      $region33: #{net_forward.8} parent=31 // pred_check
        %p548 = pneg %p100
      $region34: #{net_forward.8} parent=31 // pred_check_branch
        %550 = sbr.rel (%p548) target = $region36
      $region35: #{net_forward.8} parent=31 // pred_region
        %s551 = smul.u32 18, %s14
      $region36: #{net_forward.8} parent=31 // pred_fallthru
        _
    $region32: #{net_forward.8} parent=5 // pred_fallthru
      _
    %p552 = scmp.le.s32.totalorder 2, %s9
    // Predicated region
    $region37: #{net_forward.8} parent=5 // pred_check
      %p553 = pneg %p552
    $region38: #{net_forward.8} parent=5 // pred_check_branch
      %555 = sbr.rel (%p553) target = $region40
    $region39: #{net_forward.8} parent=5 // pred_region
      %s556 = ssub.s32 %s9, 2
      // Predicated region
      $region41: #{net_forward.8} parent=39 // pred_check
        %p557 = pneg %p106
      $region42: #{net_forward.8} parent=39 // pred_check_branch
        %559 = sbr.rel (%p557) target = $region44
      $region43: #{net_forward.8} parent=39 // pred_region
        %s560 = smul.u32 18, %s15
        %p561 = scmp.lt.s32.totalorder %s560, 35
        %s562 = scalar_select %p561, %s560, 35
        %s563 = smul.addr %s562, 4
        %s564 = scalar_lea.vmem %s3, %s563
      $region44: #{net_forward.8} parent=39 // pred_fallthru
        _
    $region40: #{net_forward.8} parent=5 // pred_fallthru
      _
  $region6: #{net_forward.8} parent=0 // loop_footer
    %s13 = sadd.s32 1, %s9
  $region7: #{net_forward.8} parent=0 // loop_footer_branch
    %8 = sbr.rel target = $region3
  $region8: #{net_forward.8} parent=0 // loop_exit
    _

// kernel: net_forward.9
$region0: #{net_forward.9}
  #allocation0 [shape = 'u32[]', space=smem, size = 0x4, offset = 0x4, fixed_abs, tag = 'smem constant byte address 0x4 - core index']
  #allocation1 [shape = 'u32[72,128]{1,0:T(1,128)}', space=vmem, size = 0x9000, scoped, tag = 'internal scratch']
  %s0 = inlined_call_operand.vmem [shape: bf16[288,144], index: 0, kind: input, shape index: {}]
  %s1 = inlined_call_operand.vmem [shape: bf16[144,128], index: 1, kind: input, shape index: {}]
  %s2 = inlined_call_operand.vmem [shape: f32[1,128], index: 2, kind: input, shape index: {}]
  %s3 = inlined_call_operand.vmem [shape: bf16[288,128], index: 3, kind: input, shape index: {}]
  %s4 = inlined_call_operand.vmem [shape: bf16[288,128], index: 4, kind: output, shape index: {}]
  %s5 = sld [smem:[#allocation0]]
  $region49: #{net_forward.9} parent=0
    _
  %s7 = ssub.s32 1, %s5
  %s8 = scalar_select 0, %s7, %s5
  loop: start=0, step=1, limit=4
  $region2: #{net_forward.9} parent=0 // loop_pre_header
    _
  $region3: #{net_forward.9} parent=0 // loop_header
    %s10 = sphi 0, %s14
    %p11 = scmp.ge.s32.totalorder %s10, 4
    %s20 = sphi 0, %s22
    %s23 = sphi 0, %s20
    %s24 = sphi 0, %s23
    %s40 = sphi 0, %s24
    %s44 = sphi 0, %s44
    %s46 = sphi 0, %s44
    %s47 = sphi 0, %s46
    %s61 = sphi 0, %s47
    %s65 = sphi 0, %s65
    %s67 = sphi 0, %s65
    %s68 = sphi 0, %s67
    %s82 = sphi 0, %s68
    %s88 = sphi 0, %s90
    %s91 = sphi 0, %s88
    %s92 = sphi 0, %s91
    %s108 = sphi 0, %s92
    %s114 = sphi 0, %s116
    %s117 = sphi 0, %s114
    %s118 = sphi 0, %s117
    %s134 = sphi 0, %s118
  $region4: #{net_forward.9} parent=0 // loop_header_branch
    %13 = sbr.rel (%p11) target = $region8
  $region5: #{net_forward.9} parent=0 // loop_body
    %s15 = ssub.s32 %s10, 1
    %s16 = ssub.s32 %s10, 2
    %s17 = sadd.s32 %s10, 1
    %s18 = ssub.s32 %s10, %s17
    %p19 = scmp.eq.s32.totalorder %s18, 0
    %s21 = sadd.s32 %s20, 1
    %s22 = scalar_select %p19, %s20, %s21
    %p25 = pneg %p19
    %p26 = scmp.eq.s32.totalorder %s10, 1
    %p27 = por %p25, %p26
    %p28 = scmp.ne.s32.totalorder %s20, %s23
    %p29 = scmp.eq.s32.totalorder %s10, 0
    %p30 = por %p28, %p29
    %p31 = scmp.ne.s32.totalorder %s20, %s23
    %p32 = scmp.eq.s32.totalorder %s15, 1
    %p33 = por %p31, %p32
    %p34 = scmp.ne.s32.totalorder %s23, %s24
    %p35 = scmp.eq.s32.totalorder %s15, 0
    %p36 = por %p34, %p35
    %p37 = scmp.ne.s32.totalorder %s23, %s24
    %p38 = scmp.eq.s32.totalorder %s16, 1
    %p39 = por %p37, %p38
    %p41 = scmp.ne.s32.totalorder %s24, %s40
    %p42 = scmp.eq.s32.totalorder %s16, 0
    %p43 = por %p41, %p42
    %s45 = sadd.s32 %s44, 1
    %p48 = scmp.eq.s32.totalorder %s10, 1
    %p49 = scmp.ne.s32.totalorder %s44, %s46
    %p50 = scmp.eq.s32.totalorder %s10, 0
    %p51 = por %p49, %p50
    %p52 = scmp.ne.s32.totalorder %s44, %s46
    %p53 = scmp.eq.s32.totalorder %s15, 1
    %p54 = por %p52, %p53
    %p55 = scmp.ne.s32.totalorder %s46, %s47
    %p56 = scmp.eq.s32.totalorder %s15, 0
    %p57 = por %p55, %p56
    %p58 = scmp.ne.s32.totalorder %s46, %s47
    %p59 = scmp.eq.s32.totalorder %s16, 1
    %p60 = por %p58, %p59
    %p62 = scmp.ne.s32.totalorder %s47, %s61
    %p63 = scmp.eq.s32.totalorder %s16, 0
    %p64 = por %p62, %p63
    %s66 = sadd.s32 %s65, 1
    %p69 = scmp.eq.s32.totalorder %s10, 1
    %p70 = scmp.ne.s32.totalorder %s65, %s67
    %p71 = scmp.eq.s32.totalorder %s10, 0
    %p72 = por %p70, %p71
    %p73 = scmp.ne.s32.totalorder %s65, %s67
    %p74 = scmp.eq.s32.totalorder %s15, 1
    %p75 = por %p73, %p74
    %p76 = scmp.ne.s32.totalorder %s67, %s68
    %p77 = scmp.eq.s32.totalorder %s15, 0
    %p78 = por %p76, %p77
    %p79 = scmp.ne.s32.totalorder %s67, %s68
    %p80 = scmp.eq.s32.totalorder %s16, 1
    %p81 = por %p79, %p80
    %p83 = scmp.ne.s32.totalorder %s68, %s82
    %p84 = scmp.eq.s32.totalorder %s16, 0
    %p85 = por %p83, %p84
    %s86 = ssub.s32 %s10, %s17
    %p87 = scmp.eq.s32.totalorder %s86, 0
    %s89 = sadd.s32 %s88, 1
    %s90 = scalar_select %p87, %s88, %s89
    %p93 = pneg %p87
    %p94 = scmp.eq.s32.totalorder %s10, 1
    %p95 = por %p93, %p94
    %p96 = scmp.ne.s32.totalorder %s88, %s91
    %p97 = scmp.eq.s32.totalorder %s10, 0
    %p98 = por %p96, %p97
    %p99 = scmp.ne.s32.totalorder %s88, %s91
    %p100 = scmp.eq.s32.totalorder %s15, 1
    %p101 = por %p99, %p100
    %p102 = scmp.ne.s32.totalorder %s91, %s92
    %p103 = scmp.eq.s32.totalorder %s15, 0
    %p104 = por %p102, %p103
    %p105 = scmp.ne.s32.totalorder %s91, %s92
    %p106 = scmp.eq.s32.totalorder %s16, 1
    %p107 = por %p105, %p106
    %p109 = scmp.ne.s32.totalorder %s92, %s108
    %p110 = scmp.eq.s32.totalorder %s16, 0
    %p111 = por %p109, %p110
    %s112 = ssub.s32 %s10, %s17
    %p113 = scmp.eq.s32.totalorder %s112, 0
    %s115 = sadd.s32 %s114, 1
    %s116 = scalar_select %p113, %s114, %s115
    %p119 = pneg %p113
    %p120 = scmp.eq.s32.totalorder %s10, 1
    %p121 = por %p119, %p120
    %p122 = scmp.ne.s32.totalorder %s114, %s117
    %p123 = scmp.eq.s32.totalorder %s10, 0
    %p124 = por %p122, %p123
    %p125 = scmp.ne.s32.totalorder %s114, %s117
    %p126 = scmp.eq.s32.totalorder %s15, 1
    %p127 = por %p125, %p126
    %p128 = scmp.ne.s32.totalorder %s117, %s118
    %p129 = scmp.eq.s32.totalorder %s15, 0
    %p130 = por %p128, %p129
    %p131 = scmp.ne.s32.totalorder %s117, %s118
    %p132 = scmp.eq.s32.totalorder %s16, 1
    %p133 = por %p131, %p132
    %p135 = scmp.ne.s32.totalorder %s118, %s134
    %p136 = scmp.eq.s32.totalorder %s16, 0
    %p137 = por %p135, %p136
    %p138 = scmp.le.s32.totalorder 1, %s10
    %p139 = scmp.lt.s32.totalorder %s10, 3
    %p140 = pnand %p138, %p139
    %p141 = pneg %p140
    // Predicated region
    $region9: #{net_forward.9} parent=5 // pred_check
      _
    $region10: #{net_forward.9} parent=5 // pred_check_branch
      %143 = sbr.rel (%p140) target = $region12
    $region11: #{net_forward.9} parent=5 // pred_region
      %s144 = ssub.s32 %s10, 1
      // Predicated region
      $region13: #{net_forward.9} parent=11 // pred_check
        %p145 = pneg %p57
      $region14: #{net_forward.9} parent=11 // pred_check_branch
        %147 = sbr.rel (%p145) target = $region16
      $region15: #{net_forward.9} parent=11 // pred_region
        _
      $region16: #{net_forward.9} parent=11 // pred_fallthru
        _
      // Predicated region
      $region17: #{net_forward.9} parent=11 // pred_check
        %p148 = pneg %p78
      $region18: #{net_forward.9} parent=11 // pred_check_branch
        %150 = sbr.rel (%p148) target = $region20
      $region19: #{net_forward.9} parent=11 // pred_region
        _
      $region20: #{net_forward.9} parent=11 // pred_fallthru
        _
    $region12: #{net_forward.9} parent=5 // pred_fallthru
      _
    %p151 = scmp.lt.s32.totalorder %s10, 2
    // Predicated region
    $region21: #{net_forward.9} parent=5 // pred_check
      %p152 = pneg %p151
    $region22: #{net_forward.9} parent=5 // pred_check_branch
      %154 = sbr.rel (%p152) target = $region24
    $region23: #{net_forward.9} parent=5 // pred_region
      // Predicated region
      $region25: #{net_forward.9} parent=23 // pred_check
        %p155 = pneg %p30
      $region26: #{net_forward.9} parent=23 // pred_check_branch
        %157 = sbr.rel (%p155) target = $region28
      $region27: #{net_forward.9} parent=23 // pred_region
        %s158 = smul.u32 18, %s10
        %p159 = scmp.lt.s32.totalorder %s158, 35
        %s160 = scalar_select %p159, %s158, 35
        %s161 = smul.addr %s160, 2
        %s162 = smul.addr %s161, 4
        %s163 = scalar_lea.vmem %s0, %s162
        %s164 = smul.u32 18, %s10
      $region28: #{net_forward.9} parent=23 // pred_fallthru
        _
      // Predicated region
      $region29: #{net_forward.9} parent=23 // pred_check
        %p165 = pneg %p98
      $region30: #{net_forward.9} parent=23 // pred_check_branch
        %167 = sbr.rel (%p165) target = $region32
      $region31: #{net_forward.9} parent=23 // pred_region
        %s168 = smul.u32 18, %s10
        %p169 = scmp.lt.s32.totalorder %s168, 35
        %s170 = scalar_select %p169, %s168, 35
        %s171 = smul.addr %s170, 4
        %s172 = scalar_lea.vmem %s3, %s171
        %s173 = smul.u32 18, %s10
      $region32: #{net_forward.9} parent=23 // pred_fallthru
        _
    $region24: #{net_forward.9} parent=5 // pred_fallthru
      _
    %p174 = scmp.le.s32.totalorder 1, %s10
    %p175 = scmp.lt.s32.totalorder %s10, 3
    %p176 = pnand %p174, %p175
    %p177 = pneg %p176
    // Predicated region
    $region33: #{net_forward.9} parent=5 // pred_check
      _
    $region34: #{net_forward.9} parent=5 // pred_check_branch
      %179 = sbr.rel (%p176) target = $region36
    $region35: #{net_forward.9} parent=5 // pred_region
      %s180 = ssub.s32 %s10, 1
      %s181 = smul.u32 18, %s15
      %p182 = scmp.lt.s32.totalorder %s181, 35
      %s183 = scalar_select %p182, %s181, 35
      %s184 = smul.addr %s183, 2
      %s185 = smul.addr %s184, 4
      %s186 = scalar_lea.vmem %s0, %s185
      %p187 = pneg %p36
      %p188 = pneg %p33
      %p189 = pneg %p57
      %p190 = pneg %p54
      %p191 = pneg %p78
      %p192 = pneg %p75
      %s193 = smul.u32 18, %s15
      %p194 = scmp.lt.s32.totalorder %s193, 35
      %s195 = scalar_select %p194, %s193, 35
      %s196 = smul.addr %s195, 4
      %s197 = scalar_lea.vmem %s3, %s196
      %p198 = pneg %p104
      %p199 = pneg %p101
      %p200 = pneg %p130
      %p201 = pneg %p127
      %s202 = smul.u32 18, %s15
      %p203 = scmp.lt.s32.totalorder %s202, 35
      %s204 = scalar_select %p203, %s202, 35
      %s205 = smul.addr %s204, 4
      %s206 = scalar_lea.vmem %s4, %s205
      %s207 = smul.u32 18, %s15
      %p208 = scmp.lt.s32.totalorder %s207, 35
      %s209 = scalar_select %p208, %s207, 35
      %s210 = smul.addr %s209, 2
      %s211 = smul.addr %s210, 4
      %s212 = scalar_lea.vmem %s0, %s211
      %s213 = smul.u32 18, %s15
      %s214 = smul.u32 18, %s15
      %p215 = scmp.lt.s32.totalorder %s214, 35
      %s216 = scalar_select %p215, %s214, 35
      %s217 = smul.addr %s216, 4
      %s218 = scalar_lea.vmem %s3, %s217
      %s219 = smul.u32 18, %s15
      %s220 = smul.u32 18, %s15
      %p221 = scmp.lt.s32.totalorder %s220, 35
      %s222 = scalar_select %p221, %s220, 35
      %s223 = smul.addr %s222, 4
      %s224 = scalar_lea.vmem %s4, %s223
      %s225 = smul.u32 18, %s15
      %v227 = vld [vmem:[%s212] sm:$0xff]
      %v228 = vld [vmem:[%s212 + $0x8] sm:$0xff]
      %v229 = vld [vmem:[%s212 + $0x10] sm:$0xff]
      %v230 = vld [vmem:[%s212 + $0x18] sm:$0xff]
      %v231 = vld [vmem:[%s212 + $0x20] sm:$0xff]
      %v232 = vld [vmem:[%s212 + $0x28] sm:$0xff]
      %v233 = vld [vmem:[%s212 + $0x30] sm:$0xff]
      %v234 = vld [vmem:[%s212 + $0x38] sm:$0xff]
      %v235 = vld [vmem:[%s212 + $0x40] sm:$0xff]
      %v236 = vld [vmem:[%s212 + $0x48] sm:$0xff]
      %v237 = vld [vmem:[%s212 + $0x50] sm:$0xff]
      %v238 = vld [vmem:[%s212 + $0x58] sm:$0xff]
      %v239 = vld [vmem:[%s212 + $0x60] sm:$0xff]
      %v240 = vld [vmem:[%s212 + $0x68] sm:$0xff]
      %v241 = vld [vmem:[%s212 + $0x70] sm:$0xff]
      %v242 = vld [vmem:[%s212 + $0x78] sm:$0xff]
      %v243 = vld [vmem:[%s212 + $0x80] sm:$0xff]
      %v244 = vld [vmem:[%s212 + $0x88] sm:$0xff]
      %v245 = vld [vmem:[%s1] sm:$0xf]
      %v246 = vld [vmem:[%s1 + $0x4] sm:$0xf]
      %v247 = vld [vmem:[%s1 + $0x8] sm:$0xf]
      %v248 = vld [vmem:[%s1 + $0xc] sm:$0xf]
      %v249 = vld [vmem:[%s1 + $0x10] sm:$0xf]
      %v250 = vld [vmem:[%s1 + $0x14] sm:$0xf]
      %v251 = vld [vmem:[%s1 + $0x18] sm:$0xf]
      %v252 = vld [vmem:[%s1 + $0x1c] sm:$0xf]
      %v253 = vld [vmem:[%s1 + $0x20] sm:$0xf]
      %v254 = vld [vmem:[%s1 + $0x24] sm:$0xf]
      %v255 = vld [vmem:[%s1 + $0x28] sm:$0xf]
      %v256 = vld [vmem:[%s1 + $0x2c] sm:$0xf]
      %v257 = vld [vmem:[%s1 + $0x30] sm:$0xf]
      %v258 = vld [vmem:[%s1 + $0x34] sm:$0xf]
      %v259 = vld [vmem:[%s1 + $0x38] sm:$0xf]
      %v260 = vld [vmem:[%s1 + $0x3c] sm:$0xf]
      %v261 = vld [vmem:[%s1 + $0x40] sm:$0xf]
      %v262 = vld [vmem:[%s1 + $0x44] sm:$0xf]
      %v263 = vld [vmem:[%s2] sm:$0x1]
      %v265 = vperm.slane %v263, 0
      %v285 = vunpack.c.l.b16 %v227
      %v286 = vunpack.c.h.b16 %v227
      %v287 = vunpack.c.l.b16 %v228
      %v288 = vunpack.c.h.b16 %v228
      %v289 = vunpack.c.l.b16 %v229
      %v290 = vunpack.c.h.b16 %v229
      %v291 = vunpack.c.l.b16 %v230
      %v292 = vunpack.c.h.b16 %v230
      %v293 = vunpack.c.l.b16 %v231
      %v294 = vunpack.c.h.b16 %v231
      %v295 = vunpack.c.l.b16 %v232
      %v296 = vunpack.c.h.b16 %v232
      %v297 = vunpack.c.l.b16 %v233
      %v298 = vunpack.c.h.b16 %v233
      %v299 = vunpack.c.l.b16 %v234
      %v300 = vunpack.c.h.b16 %v234
      %v301 = vunpack.c.l.b16 %v235
      %v302 = vunpack.c.h.b16 %v235
      %v303 = vunpack.c.l.b16 %v236
      %v304 = vunpack.c.h.b16 %v236
      %v305 = vunpack.c.l.b16 %v237
      %v306 = vunpack.c.h.b16 %v237
      %v307 = vunpack.c.l.b16 %v238
      %v308 = vunpack.c.h.b16 %v238
      %v309 = vunpack.c.l.b16 %v239
      %v310 = vunpack.c.h.b16 %v239
      %v311 = vunpack.c.l.b16 %v240
      %v312 = vunpack.c.h.b16 %v240
      %v313 = vunpack.c.l.b16 %v241
      %v314 = vunpack.c.h.b16 %v241
      %v315 = vunpack.c.l.b16 %v242
      %v316 = vunpack.c.h.b16 %v242
      %v317 = vunpack.c.l.b16 %v243
      %v318 = vunpack.c.h.b16 %v243
      %v319 = vunpack.c.l.b16 %v244
      %v320 = vunpack.c.h.b16 %v244
      %v321 = vpack.c.b16 %v287, %v285
      %v322 = vpack.c.b16 %v288, %v286
      %v323 = vpack.c.b16 %v291, %v289
      %v324 = vpack.c.b16 %v292, %v290
      %v325 = vpack.c.b16 %v295, %v293
      %v326 = vpack.c.b16 %v296, %v294
      %v327 = vpack.c.b16 %v299, %v297
      %v328 = vpack.c.b16 %v300, %v298
      %v329 = vpack.c.b16 %v303, %v301
      %v330 = vpack.c.b16 %v304, %v302
      %v331 = vpack.c.b16 %v307, %v305
      %v332 = vpack.c.b16 %v308, %v306
      %v333 = vpack.c.b16 %v311, %v309
      %v334 = vpack.c.b16 %v312, %v310
      %v335 = vpack.c.b16 %v315, %v313
      %v336 = vpack.c.b16 %v316, %v314
      %v337 = vpack.c.b16 %v319, %v317
      %v338 = vpack.c.b16 %v320, %v318
      %v366 = vunpack.c.l.b16 %v245
      %v367 = vunpack.c.l.b16 %v246
      %v368 = vunpack.c.l.b16 %v247
      %v369 = vunpack.c.l.b16 %v248
      %v370 = vunpack.c.l.b16 %v249
      %v371 = vunpack.c.l.b16 %v250
      %v372 = vunpack.c.l.b16 %v251
      %v373 = vunpack.c.l.b16 %v252
      %v374 = vunpack.c.l.b16 %v253
      %v375 = vunpack.c.l.b16 %v254
      %v376 = vunpack.c.l.b16 %v255
      %v377 = vunpack.c.l.b16 %v256
      %v378 = vunpack.c.l.b16 %v257
      %v379 = vunpack.c.l.b16 %v258
      %v380 = vunpack.c.l.b16 %v259
      %v381 = vunpack.c.l.b16 %v260
      %v382 = vunpack.c.l.b16 %v261
      %v383 = vunpack.c.l.b16 %v262
      %v384 = vpack.c.b16 %v367, %v366
      %v385 = vpack.c.b16 %v369, %v368
      %v386 = vpack.c.b16 %v371, %v370
      %v387 = vpack.c.b16 %v373, %v372
      %v388 = vpack.c.b16 %v375, %v374
      %v389 = vpack.c.b16 %v377, %v376
      %v390 = vpack.c.b16 %v379, %v378
      %v391 = vpack.c.b16 %v381, %v380
      %v392 = vpack.c.b16 %v383, %v382
      %vm402 = vcmask 130048
      %v404 = vsel %vm402, %v322, 0
      %v407 = vsel %vm402, %v324, 0
      %v410 = vsel %vm402, %v326, 0
      %v413 = vsel %vm402, %v328, 0
      %v416 = vsel %vm402, %v330, 0
      %v419 = vsel %vm402, %v332, 0
      %v422 = vsel %vm402, %v334, 0
      %v425 = vsel %vm402, %v336, 0
      %v428 = vsel %vm402, %v338, 0
      %430 = vmatpush.bf16.msra.mxu0 %v391
      %431 = vmatpush.bf16.msra.mxu0 %v390
      %432 = vmatpush.bf16.msra.mxu0 %v389
      %433 = vmatpush.bf16.msra.mxu0 %v388
      %434 = vmatpush.bf16.msra.mxu0 %v387
      %435 = vmatpush.bf16.msra.mxu0 %v386
      %436 = vmatpush.bf16.msra.mxu0 %v385
      %437 = vmatpush.bf16.msra.mxu0 %v384
      %438 = vmatmul.bf16.gmra.mxu0 %v321
      %v439 = vpop.f32.mrf.mxu0
      %v440 = vadd.f32 %v265, %v439
      %v441 = vpop.f32.mrf.mxu0
      %v442 = vadd.f32 %v265, %v441
      %443 = vmatmul.bf16.gmra.mxu0 %v323
      %v444 = vpop.f32.mrf.mxu0
      %v445 = vadd.f32 %v265, %v444
      %v446 = vpop.f32.mrf.mxu0
      %v447 = vadd.f32 %v265, %v446
      %448 = vmatmul.bf16.gmra.mxu0 %v325
      %v449 = vpop.f32.mrf.mxu0
      %v450 = vadd.f32 %v265, %v449
      %v451 = vpop.f32.mrf.mxu0
      %v452 = vadd.f32 %v265, %v451
      %453 = vmatmul.bf16.gmra.mxu0 %v327
      %v454 = vpop.f32.mrf.mxu0
      %v455 = vadd.f32 %v265, %v454
      %v456 = vpop.f32.mrf.mxu0
      %v457 = vadd.f32 %v265, %v456
      %458 = vmatmul.bf16.gmra.mxu0 %v329
      %v459 = vpop.f32.mrf.mxu0
      %v460 = vadd.f32 %v265, %v459
      %v461 = vpop.f32.mrf.mxu0
      %v462 = vadd.f32 %v265, %v461
      %463 = vmatmul.bf16.gmra.mxu0 %v331
      %v464 = vpop.f32.mrf.mxu0
      %v465 = vadd.f32 %v265, %v464
      %v466 = vpop.f32.mrf.mxu0
      %v467 = vadd.f32 %v265, %v466
      %468 = vmatmul.bf16.gmra.mxu0 %v333
      %v469 = vpop.f32.mrf.mxu0
      %v470 = vadd.f32 %v265, %v469
      %v471 = vpop.f32.mrf.mxu0
      %v472 = vadd.f32 %v265, %v471
      %473 = vmatmul.bf16.gmra.mxu0 %v335
      %v474 = vpop.f32.mrf.mxu0
      %v475 = vadd.f32 %v265, %v474
      %v476 = vpop.f32.mrf.mxu0
      %v477 = vadd.f32 %v265, %v476
      %478 = vmatmul.bf16.gmra.mxu0 %v337
      %v479 = vpop.f32.mrf.mxu0
      %v480 = vadd.f32 %v265, %v479
      %v481 = vpop.f32.mrf.mxu0
      %v482 = vadd.f32 %v265, %v481
      %483 = vdwg.mxu0
      %484 = vmatpush.bf16.msra.mxu0 0
      %485 = vmatpush.bf16.msra.mxu0 0
      %486 = vmatpush.bf16.msra.mxu0 0
      %487 = vmatpush.bf16.msra.mxu0 0
      %488 = vmatpush.bf16.msra.mxu0 0
      %489 = vmatpush.bf16.msra.mxu0 0
      %490 = vmatpush.bf16.msra.mxu0 0
      %491 = vmatpush.bf16.msra.mxu0 %v392
      %492 = vmatmul.bf16.gmra.mxu0 %v404
      %v493 = vpop.f32.mrf.mxu0
      %v494 = vadd.f32 %v440, %v493
      %v495 = vpop.f32.mrf.mxu0
      %v496 = vadd.f32 %v442, %v495
      %497 = vmatmul.bf16.gmra.mxu0 %v407
      %v498 = vpop.f32.mrf.mxu0
      %v499 = vadd.f32 %v445, %v498
      %v500 = vpop.f32.mrf.mxu0
      %v501 = vadd.f32 %v447, %v500
      %502 = vmatmul.bf16.gmra.mxu0 %v410
      %v503 = vpop.f32.mrf.mxu0
      %v504 = vadd.f32 %v450, %v503
      %v505 = vpop.f32.mrf.mxu0
      %v506 = vadd.f32 %v452, %v505
      %507 = vmatmul.bf16.gmra.mxu0 %v413
      %v508 = vpop.f32.mrf.mxu0
      %v509 = vadd.f32 %v455, %v508
      %v510 = vpop.f32.mrf.mxu0
      %v511 = vadd.f32 %v457, %v510
      %512 = vmatmul.bf16.gmra.mxu0 %v416
      %v513 = vpop.f32.mrf.mxu0
      %v514 = vadd.f32 %v460, %v513
      %v515 = vpop.f32.mrf.mxu0
      %v516 = vadd.f32 %v462, %v515
      %517 = vmatmul.bf16.gmra.mxu0 %v419
      %v518 = vpop.f32.mrf.mxu0
      %v519 = vadd.f32 %v465, %v518
      %v520 = vpop.f32.mrf.mxu0
      %v521 = vadd.f32 %v467, %v520
      %522 = vmatmul.bf16.gmra.mxu0 %v422
      %v523 = vpop.f32.mrf.mxu0
      %v524 = vadd.f32 %v470, %v523
      %v525 = vpop.f32.mrf.mxu0
      %v526 = vadd.f32 %v472, %v525
      %527 = vmatmul.bf16.gmra.mxu0 %v425
      %v528 = vpop.f32.mrf.mxu0
      %v529 = vadd.f32 %v475, %v528
      %v530 = vpop.f32.mrf.mxu0
      %v531 = vadd.f32 %v477, %v530
      %532 = vmatmul.bf16.gmra.mxu0 %v428
      %v533 = vpop.f32.mrf.mxu0
      %v534 = vadd.f32 %v480, %v533
      %v535 = vpop.f32.mrf.mxu0
      %v536 = vadd.f32 %v482, %v535
      %537 = vdwg.mxu0
      %v538 = vld [vmem:[%s218] sm:$0xf]
      %v539 = vld [vmem:[%s218 + $0x4] sm:$0xf]
      %v540 = vld [vmem:[%s218 + $0x8] sm:$0xf]
      %v541 = vld [vmem:[%s218 + $0xc] sm:$0xf]
      %v542 = vld [vmem:[%s218 + $0x10] sm:$0xf]
      %v543 = vld [vmem:[%s218 + $0x14] sm:$0xf]
      %v544 = vld [vmem:[%s218 + $0x18] sm:$0xf]
      %v545 = vld [vmem:[%s218 + $0x1c] sm:$0xf]
      %v546 = vld [vmem:[%s218 + $0x20] sm:$0xf]
      %v547 = vld [vmem:[%s218 + $0x24] sm:$0xf]
      %v548 = vld [vmem:[%s218 + $0x28] sm:$0xf]
      %v549 = vld [vmem:[%s218 + $0x2c] sm:$0xf]
      %v550 = vld [vmem:[%s218 + $0x30] sm:$0xf]
      %v551 = vld [vmem:[%s218 + $0x34] sm:$0xf]
      %v552 = vld [vmem:[%s218 + $0x38] sm:$0xf]
      %v553 = vld [vmem:[%s218 + $0x3c] sm:$0xf]
      %v554 = vld [vmem:[%s218 + $0x40] sm:$0xf]
      %v555 = vld [vmem:[%s218 + $0x44] sm:$0xf]
      %v556 = vunpack.c.l.bf16 %v538
      %v557 = vunpack.c.l.bf16 %v539
      %v558 = vunpack.c.l.bf16 %v540
      %v559 = vunpack.c.l.bf16 %v541
      %v560 = vunpack.c.l.bf16 %v542
      %v561 = vunpack.c.l.bf16 %v543
      %v562 = vunpack.c.l.bf16 %v544
      %v563 = vunpack.c.l.bf16 %v545
      %v564 = vunpack.c.l.bf16 %v546
      %v565 = vunpack.c.l.bf16 %v547
      %v566 = vunpack.c.l.bf16 %v548
      %v567 = vunpack.c.l.bf16 %v549
      %v568 = vunpack.c.l.bf16 %v550
      %v569 = vunpack.c.l.bf16 %v551
      %v570 = vunpack.c.l.bf16 %v552
      %v571 = vunpack.c.l.bf16 %v553
      %v572 = vunpack.c.l.bf16 %v554
      %v573 = vunpack.c.l.bf16 %v555
      %v574 = vadd.f32 %v494, %v556
      %v575 = vadd.f32 %v496, %v557
      %v576 = vadd.f32 %v499, %v558
      %v577 = vadd.f32 %v501, %v559
      %v578 = vadd.f32 %v504, %v560
      %v579 = vadd.f32 %v506, %v561
      %v580 = vadd.f32 %v509, %v562
      %v581 = vadd.f32 %v511, %v563
      %v582 = vadd.f32 %v514, %v564
      %v583 = vadd.f32 %v516, %v565
      %v584 = vadd.f32 %v519, %v566
      %v585 = vadd.f32 %v521, %v567
      %v586 = vadd.f32 %v524, %v568
      %v587 = vadd.f32 %v526, %v569
      %v588 = vadd.f32 %v529, %v570
      %v589 = vadd.f32 %v531, %v571
      %v590 = vadd.f32 %v534, %v572
      %v591 = vadd.f32 %v536, %v573
      %v592 = vmax.f32 %v574, 0.0
      %v593 = vmax.f32 %v575, 0.0
      %v594 = vmax.f32 %v576, 0.0
      %v595 = vmax.f32 %v577, 0.0
      %v596 = vmax.f32 %v578, 0.0
      %v597 = vmax.f32 %v579, 0.0
      %v598 = vmax.f32 %v580, 0.0
      %v599 = vmax.f32 %v581, 0.0
      %v600 = vmax.f32 %v582, 0.0
      %v601 = vmax.f32 %v583, 0.0
      %v602 = vmax.f32 %v584, 0.0
      %v603 = vmax.f32 %v585, 0.0
      %v604 = vmax.f32 %v586, 0.0
      %v605 = vmax.f32 %v587, 0.0
      %v606 = vmax.f32 %v588, 0.0
      %v607 = vmax.f32 %v589, 0.0
      %v608 = vmax.f32 %v590, 0.0
      %v609 = vmax.f32 %v591, 0.0
      %v610 = vpack.c.bf16 %v592, %v592
      %v611 = vpack.c.bf16 %v593, %v593
      %v612 = vpack.c.bf16 %v594, %v594
      %v613 = vpack.c.bf16 %v595, %v595
      %v614 = vpack.c.bf16 %v596, %v596
      %v615 = vpack.c.bf16 %v597, %v597
      %v616 = vpack.c.bf16 %v598, %v598
      %v617 = vpack.c.bf16 %v599, %v599
      %v618 = vpack.c.bf16 %v600, %v600
      %v619 = vpack.c.bf16 %v601, %v601
      %v620 = vpack.c.bf16 %v602, %v602
      %v621 = vpack.c.bf16 %v603, %v603
      %v622 = vpack.c.bf16 %v604, %v604
      %v623 = vpack.c.bf16 %v605, %v605
      %v624 = vpack.c.bf16 %v606, %v606
      %v625 = vpack.c.bf16 %v607, %v607
      %v626 = vpack.c.bf16 %v608, %v608
      %v627 = vpack.c.bf16 %v609, %v609
      %628 = vst [vmem:[%s224] sm:$0xf] %v610
      %629 = vst [vmem:[%s224 + $0x4] sm:$0xf] %v611
      %630 = vst [vmem:[%s224 + $0x8] sm:$0xf] %v612
      %631 = vst [vmem:[%s224 + $0xc] sm:$0xf] %v613
      %632 = vst [vmem:[%s224 + $0x10] sm:$0xf] %v614
      %633 = vst [vmem:[%s224 + $0x14] sm:$0xf] %v615
      %634 = vst [vmem:[%s224 + $0x18] sm:$0xf] %v616
      %635 = vst [vmem:[%s224 + $0x1c] sm:$0xf] %v617
      %636 = vst [vmem:[%s224 + $0x20] sm:$0xf] %v618
      %637 = vst [vmem:[%s224 + $0x24] sm:$0xf] %v619
      %638 = vst [vmem:[%s224 + $0x28] sm:$0xf] %v620
      %639 = vst [vmem:[%s224 + $0x2c] sm:$0xf] %v621
      %640 = vst [vmem:[%s224 + $0x30] sm:$0xf] %v622
      %641 = vst [vmem:[%s224 + $0x34] sm:$0xf] %v623
      %642 = vst [vmem:[%s224 + $0x38] sm:$0xf] %v624
      %643 = vst [vmem:[%s224 + $0x3c] sm:$0xf] %v625
      %644 = vst [vmem:[%s224 + $0x40] sm:$0xf] %v626
      %645 = vst [vmem:[%s224 + $0x44] sm:$0xf] %v627
      %s646 = smul.u32 18, %s15
      %p647 = scmp.lt.s32.totalorder %s646, 35
      %s648 = scalar_select %p647, %s646, 35
      %s649 = smul.addr %s648, 4
      %s650 = scalar_lea.vmem %s4, %s649
      // Predicated region
      $region37: #{net_forward.9} parent=35 // pred_check
        %p651 = pneg %p127
      $region38: #{net_forward.9} parent=35 // pred_check_branch
        %653 = sbr.rel (%p651) target = $region40
      $region39: #{net_forward.9} parent=35 // pred_region
        %s654 = smul.u32 18, %s15
      $region40: #{net_forward.9} parent=35 // pred_fallthru
        _
    $region36: #{net_forward.9} parent=5 // pred_fallthru
      _
    %p655 = scmp.le.s32.totalorder 2, %s10
    // Predicated region
    $region41: #{net_forward.9} parent=5 // pred_check
      %p656 = pneg %p655
    $region42: #{net_forward.9} parent=5 // pred_check_branch
      %658 = sbr.rel (%p656) target = $region44
    $region43: #{net_forward.9} parent=5 // pred_region
      %s659 = ssub.s32 %s10, 2
      // Predicated region
      $region45: #{net_forward.9} parent=43 // pred_check
        %p660 = pneg %p133
      $region46: #{net_forward.9} parent=43 // pred_check_branch
        %662 = sbr.rel (%p660) target = $region48
      $region47: #{net_forward.9} parent=43 // pred_region
        %s663 = smul.u32 18, %s16
        %p664 = scmp.lt.s32.totalorder %s663, 35
        %s665 = scalar_select %p664, %s663, 35
        %s666 = smul.addr %s665, 4
        %s667 = scalar_lea.vmem %s4, %s666
      $region48: #{net_forward.9} parent=43 // pred_fallthru
        _
    $region44: #{net_forward.9} parent=5 // pred_fallthru
      _
  $region6: #{net_forward.9} parent=0 // loop_footer
    %s14 = sadd.s32 1, %s10
  $region7: #{net_forward.9} parent=0 // loop_footer_branch
    %9 = sbr.rel target = $region3
  $region8: #{net_forward.9} parent=0 // loop_exit
    _

// kernel: net_forward.10
$region0: #{net_forward.10}
  #allocation0 [shape = 'u32[]', space=smem, size = 0x4, offset = 0x4, fixed_abs, tag = 'smem constant byte address 0x4 - core index']
  #allocation1 [shape = 'u32[72,128]{1,0:T(1,128)}', space=vmem, size = 0x9000, scoped, tag = 'internal scratch']
  %s0 = inlined_call_operand.vmem [shape: bf16[4,32,400], index: 0, kind: input, shape index: {}]
  %s1 = inlined_call_operand.vmem [shape: bf16[400,128], index: 1, kind: input, shape index: {}]
  %s2 = inlined_call_operand.vmem [shape: f32[1,128], index: 2, kind: input, shape index: {}]
  %s3 = inlined_call_operand.vmem [shape: bf16[32,128], index: 3, kind: output, shape index: {}]
  %s4 = sld [smem:[#allocation0]]
  $region68: #{net_forward.10} parent=0
    _
  %s6 = ssub.s32 1, %s4
  %s7 = scalar_select 0, %s6, %s4
  $region1: #{net_forward.10} parent=0
    #allocation2 [shape = 'u8[131072]{0}', space=vmem, size = 0x20000, scoped, tag = 'input window, operand 0']
    loop: start=0, step=1, limit=4
    $region2: #{net_forward.10} parent=1 // loop_pre_header
      _
    $region3: #{net_forward.10} parent=1 // loop_header
      %s9 = sphi 0, %s13
      %p10 = scmp.ge.s32.totalorder %s9, 4
      %s19 = sphi 0, %s21
      %s22 = sphi 0, %s19
      %s23 = sphi 0, %s22
      %s39 = sphi 0, %s23
      %s43 = sphi 0, %s43
      %s45 = sphi 0, %s43
      %s46 = sphi 0, %s45
      %s60 = sphi 0, %s46
      %s64 = sphi 0, %s64
      %s66 = sphi 0, %s64
      %s67 = sphi 0, %s66
      %s81 = sphi 0, %s67
      %s87 = sphi 0, %s89
      %s90 = sphi 0, %s87
      %s91 = sphi 0, %s90
      %s107 = sphi 0, %s91
    $region4: #{net_forward.10} parent=1 // loop_header_branch
      %12 = sbr.rel (%p10) target = $region8
    $region5: #{net_forward.10} parent=1 // loop_body
      %s14 = ssub.s32 %s9, 1
      %s15 = ssub.s32 %s9, 2
      %s16 = sadd.s32 %s9, 1
      %s17 = ssub.s32 %s9, %s16
      %p18 = scmp.eq.s32.totalorder %s17, 0
      %s20 = sadd.s32 %s19, 1
      %s21 = scalar_select %p18, %s19, %s20
      %p24 = pneg %p18
      %p25 = scmp.eq.s32.totalorder %s9, 1
      %p26 = por %p24, %p25
      %p27 = scmp.ne.s32.totalorder %s19, %s22
      %p28 = scmp.eq.s32.totalorder %s9, 0
      %p29 = por %p27, %p28
      %p30 = scmp.ne.s32.totalorder %s19, %s22
      %p31 = scmp.eq.s32.totalorder %s14, 1
      %p32 = por %p30, %p31
      %p33 = scmp.ne.s32.totalorder %s22, %s23
      %p34 = scmp.eq.s32.totalorder %s14, 0
      %p35 = por %p33, %p34
      %p36 = scmp.ne.s32.totalorder %s22, %s23
      %p37 = scmp.eq.s32.totalorder %s15, 1
      %p38 = por %p36, %p37
      %p40 = scmp.ne.s32.totalorder %s23, %s39
      %p41 = scmp.eq.s32.totalorder %s15, 0
      %p42 = por %p40, %p41
      %s44 = sadd.s32 %s43, 1
      %p47 = scmp.eq.s32.totalorder %s9, 1
      %p48 = scmp.ne.s32.totalorder %s43, %s45
      %p49 = scmp.eq.s32.totalorder %s9, 0
      %p50 = por %p48, %p49
      %p51 = scmp.ne.s32.totalorder %s43, %s45
      %p52 = scmp.eq.s32.totalorder %s14, 1
      %p53 = por %p51, %p52
      %p54 = scmp.ne.s32.totalorder %s45, %s46
      %p55 = scmp.eq.s32.totalorder %s14, 0
      %p56 = por %p54, %p55
      %p57 = scmp.ne.s32.totalorder %s45, %s46
      %p58 = scmp.eq.s32.totalorder %s15, 1
      %p59 = por %p57, %p58
      %p61 = scmp.ne.s32.totalorder %s46, %s60
      %p62 = scmp.eq.s32.totalorder %s15, 0
      %p63 = por %p61, %p62
      %s65 = sadd.s32 %s64, 1
      %p68 = scmp.eq.s32.totalorder %s9, 1
      %p69 = scmp.ne.s32.totalorder %s64, %s66
      %p70 = scmp.eq.s32.totalorder %s9, 0
      %p71 = por %p69, %p70
      %p72 = scmp.ne.s32.totalorder %s64, %s66
      %p73 = scmp.eq.s32.totalorder %s14, 1
      %p74 = por %p72, %p73
      %p75 = scmp.ne.s32.totalorder %s66, %s67
      %p76 = scmp.eq.s32.totalorder %s14, 0
      %p77 = por %p75, %p76
      %p78 = scmp.ne.s32.totalorder %s66, %s67
      %p79 = scmp.eq.s32.totalorder %s15, 1
      %p80 = por %p78, %p79
      %p82 = scmp.ne.s32.totalorder %s67, %s81
      %p83 = scmp.eq.s32.totalorder %s15, 0
      %p84 = por %p82, %p83
      %s85 = ssub.s32 %s9, %s16
      %p86 = scmp.eq.s32.totalorder %s85, 0
      %s88 = sadd.s32 %s87, 1
      %s89 = scalar_select %p86, %s87, %s88
      %p92 = pneg %p86
      %p93 = scmp.eq.s32.totalorder %s9, 1
      %p94 = por %p92, %p93
      %p95 = scmp.ne.s32.totalorder %s87, %s90
      %p96 = scmp.eq.s32.totalorder %s9, 0
      %p97 = por %p95, %p96
      %p98 = scmp.ne.s32.totalorder %s87, %s90
      %p99 = scmp.eq.s32.totalorder %s14, 1
      %p100 = por %p98, %p99
      %p101 = scmp.ne.s32.totalorder %s90, %s91
      %p102 = scmp.eq.s32.totalorder %s14, 0
      %p103 = por %p101, %p102
      %p104 = scmp.ne.s32.totalorder %s90, %s91
      %p105 = scmp.eq.s32.totalorder %s15, 1
      %p106 = por %p104, %p105
      %p108 = scmp.ne.s32.totalorder %s91, %s107
      %p109 = scmp.eq.s32.totalorder %s15, 0
      %p110 = por %p108, %p109
      %p111 = scmp.le.s32.totalorder 1, %s9
      %p112 = scmp.lt.s32.totalorder %s9, 3
      %p113 = pnand %p111, %p112
      %p114 = pneg %p113
      // Predicated region
      $region9: #{net_forward.10} parent=5 // pred_check
        _
      $region10: #{net_forward.10} parent=5 // pred_check_branch
        %116 = sbr.rel (%p113) target = $region12
      $region11: #{net_forward.10} parent=5 // pred_region
        %s117 = ssub.s32 %s9, 1
        // Predicated region
        $region13: #{net_forward.10} parent=11 // pred_check
          %p118 = pneg %p56
        $region14: #{net_forward.10} parent=11 // pred_check_branch
          %120 = sbr.rel (%p118) target = $region16
        $region15: #{net_forward.10} parent=11 // pred_region
          _
        $region16: #{net_forward.10} parent=11 // pred_fallthru
          _
        // Predicated region
        $region17: #{net_forward.10} parent=11 // pred_check
          %p121 = pneg %p77
        $region18: #{net_forward.10} parent=11 // pred_check_branch
          %123 = sbr.rel (%p121) target = $region20
        $region19: #{net_forward.10} parent=11 // pred_region
          _
        $region20: #{net_forward.10} parent=11 // pred_fallthru
          _
      $region12: #{net_forward.10} parent=5 // pred_fallthru
        _
      %p124 = scmp.lt.s32.totalorder %s9, 2
      // Predicated region
      $region21: #{net_forward.10} parent=5 // pred_check
        %p125 = pneg %p124
      $region22: #{net_forward.10} parent=5 // pred_check_branch
        %127 = sbr.rel (%p125) target = $region24
      $region23: #{net_forward.10} parent=5 // pred_region
        // Predicated region
        $region25: #{net_forward.10} parent=23 // pred_check
          %p128 = pneg %p29
        $region26: #{net_forward.10} parent=23 // pred_check_branch
          %130 = sbr.rel (%p128) target = $region28
        $region27: #{net_forward.10} parent=23 // pred_region
          %s131 = sand.u32 %s19, 1
          %s132 = sand.u32 %s19, 1
          %s133 = smul.addr %s132, 128
          %s134 = scalar_lea.vmem [#allocation2], %s133
          %s135 = smul.u32 2, %s9
          %s136 = smul.addr %s135, 4
          %s137 = smul.addr %s136, 4
          %s138 = scalar_lea.vmem %s0, %s137
          // Predicated region
          $region29: #{net_forward.10} parent=27 // pred_check
            _
          $region30: #{net_forward.10} parent=27 // pred_check_branch
            %140 = sbr.rel (0) target = $region32
          $region31: #{net_forward.10} parent=27 // pred_region
            // Predicated region
            $region33: #{net_forward.10} parent=31 // pred_check
              _
            $region34: #{net_forward.10} parent=31 // pred_check_branch
              %142 = sbr.rel (0) target = $region36
            $region35: #{net_forward.10} parent=31 // pred_region
              loop: start=0, step=1, limit=1
              $region37: #{net_forward.10} parent=35 // loop_pre_header
                _
              $region38: #{net_forward.10} parent=35 // loop_header
                %s144 = sphi 0, %s148
                %p145 = scmp.ge.s32.totalorder %s144, 1
                %s149 = sphi %s138, %s138
                %s150 = sphi %s134, %s134
              $region39: #{net_forward.10} parent=35 // loop_header_branch
                %147 = sbr.rel (%p145) target = $region43
              $region40: #{net_forward.10} parent=35 // loop_body
                %v151 = vld [vmem:[%s149] sm:$0xff]
                %152 = vst [vmem:[%s150] sm:$0xff] %v151
                %v153 = vld [vmem:[%s149 + $0x8] sm:$0xff]
                %154 = vst [vmem:[%s150 + $0x8] sm:$0xff] %v153
                %v155 = vld [vmem:[%s149 + $0x10] sm:$0xff]
                %156 = vst [vmem:[%s150 + $0x10] sm:$0xff] %v155
                %v157 = vld [vmem:[%s149 + $0x18] sm:$0xff]
                %158 = vst [vmem:[%s150 + $0x18] sm:$0xff] %v157
                %v159 = vld [vmem:[%s149 + $0x40] sm:$0xff]
                %160 = vst [vmem:[%s150 + $0x20] sm:$0xff] %v159
                %v161 = vld [vmem:[%s149 + $0x48] sm:$0xff]
                %162 = vst [vmem:[%s150 + $0x28] sm:$0xff] %v161
                %v163 = vld [vmem:[%s149 + $0x50] sm:$0xff]
                %164 = vst [vmem:[%s150 + $0x30] sm:$0xff] %v163
                %v165 = vld [vmem:[%s149 + $0x58] sm:$0xff]
                %166 = vst [vmem:[%s150 + $0x38] sm:$0xff] %v165
                %v167 = vld [vmem:[%s149 + $0x80] sm:$0xff]
                %168 = vst [vmem:[%s150 + $0x40] sm:$0xff] %v167
                %v169 = vld [vmem:[%s149 + $0x88] sm:$0xff]
                %170 = vst [vmem:[%s150 + $0x48] sm:$0xff] %v169
                %v171 = vld [vmem:[%s149 + $0x90] sm:$0xff]
                %172 = vst [vmem:[%s150 + $0x50] sm:$0xff] %v171
                %v173 = vld [vmem:[%s149 + $0x98] sm:$0xff]
                %174 = vst [vmem:[%s150 + $0x58] sm:$0xff] %v173
                %v175 = vld [vmem:[%s149 + $0xc0] sm:$0xff]
                %176 = vst [vmem:[%s150 + $0x60] sm:$0xff] %v175
                %v177 = vld [vmem:[%s149 + $0xc8] sm:$0xff]
                %178 = vst [vmem:[%s150 + $0x68] sm:$0xff] %v177
                %v179 = vld [vmem:[%s149 + $0xd0] sm:$0xff]
                %180 = vst [vmem:[%s150 + $0x70] sm:$0xff] %v179
                %v181 = vld [vmem:[%s149 + $0xd8] sm:$0xff]
                %182 = vst [vmem:[%s150 + $0x78] sm:$0xff] %v181
              $region41: #{net_forward.10} parent=35 // loop_footer
                %s148 = sadd.s32 1, %s144
              $region42: #{net_forward.10} parent=35 // loop_footer_branch
                %143 = sbr.rel target = $region38
              $region43: #{net_forward.10} parent=35 // loop_exit
                _
            $region36: #{net_forward.10} parent=31 // pred_fallthru
              _
            // Predicated region
            $region44: #{net_forward.10} parent=31 // pred_check
              _
            $region45: #{net_forward.10} parent=31 // pred_check_branch
              %184 = sbr.rel target = $region47
            $region46: #{net_forward.10} parent=31 // pred_region
              _
            $region47: #{net_forward.10} parent=31 // pred_fallthru
              _
          $region32: #{net_forward.10} parent=27 // pred_fallthru
            _
          %185 = vnop
        $region28: #{net_forward.10} parent=23 // pred_fallthru
          _
      $region24: #{net_forward.10} parent=5 // pred_fallthru
        _
      %p186 = scmp.le.s32.totalorder 1, %s9
      %p187 = scmp.lt.s32.totalorder %s9, 3
      %p188 = pnand %p186, %p187
      %p189 = pneg %p188
      // Predicated region
      $region48: #{net_forward.10} parent=5 // pred_check
        _
      $region49: #{net_forward.10} parent=5 // pred_check_branch
        %191 = sbr.rel (%p188) target = $region51
      $region50: #{net_forward.10} parent=5 // pred_region
        %s192 = ssub.s32 %s9, 1
        %s193 = sand.u32 %s22, 1
        %s194 = sand.u32 %s22, 1
        %s195 = smul.addr %s194, 128
        %s196 = scalar_lea.vmem [#allocation2], %s195
        // Predicated region
        $region52: #{net_forward.10} parent=50 // pred_check
          %p197 = pneg %p35
        $region53: #{net_forward.10} parent=50 // pred_check_branch
          %199 = sbr.rel (%p197) target = $region55
        $region54: #{net_forward.10} parent=50 // pred_region
          _
        $region55: #{net_forward.10} parent=50 // pred_fallthru
          _
        %s200 = sand.u32 %s22, 1
        %s201 = sand.u32 %s22, 1
        %s202 = smul.addr %s201, 128
        %s203 = scalar_lea.vmem [#allocation2], %s202
        %p204 = pneg %p35
        %p205 = pneg %p32
        %p206 = pneg %p56
        %p207 = pneg %p53
        %p208 = pneg %p77
        %p209 = pneg %p74
        %p210 = pneg %p103
        %p211 = pneg %p100
        %s212 = smul.u32 2, %s14
        %p213 = scmp.lt.s32.totalorder %s212, 3
        %s214 = scalar_select %p213, %s212, 3
        %s215 = smul.addr %s214, 4
        %s216 = scalar_lea.vmem %s3, %s215
        %s217 = smul.u32 2, %s14
        %s218 = smul.u32 2, %s14
        %p219 = scmp.lt.s32.totalorder %s218, 3
        %s220 = scalar_select %p219, %s218, 3
        %s221 = smul.addr %s220, 4
        %s222 = scalar_lea.vmem %s3, %s221
        %s223 = smul.u32 2, %s14
        %v225 = vld [vmem:[%s1] sm:$0xf]
        %v226 = vld [vmem:[%s1 + $0x4] sm:$0xf]
        %v227 = vld [vmem:[%s1 + $0x8] sm:$0xf]
        %v228 = vld [vmem:[%s1 + $0xc] sm:$0xf]
        %v229 = vld [vmem:[%s1 + $0x10] sm:$0xf]
        %v230 = vld [vmem:[%s1 + $0x14] sm:$0xf]
        %v231 = vld [vmem:[%s1 + $0x18] sm:$0xf]
        %v232 = vld [vmem:[%s1 + $0x1c] sm:$0xf]
        %v233 = vld [vmem:[%s1 + $0x20] sm:$0xf]
        %v234 = vld [vmem:[%s1 + $0x24] sm:$0xf]
        %v235 = vld [vmem:[%s1 + $0x28] sm:$0xf]
        %v236 = vld [vmem:[%s1 + $0x2c] sm:$0xf]
        %v237 = vld [vmem:[%s1 + $0x30] sm:$0xf]
        %v238 = vld [vmem:[%s1 + $0x34] sm:$0xf]
        %v239 = vld [vmem:[%s1 + $0x38] sm:$0xf]
        %v240 = vld [vmem:[%s1 + $0x3c] sm:$0xf]
        %v241 = vld [vmem:[%s1 + $0x40] sm:$0xf]
        %v242 = vld [vmem:[%s1 + $0x44] sm:$0xf]
        %v243 = vld [vmem:[%s1 + $0x48] sm:$0xf]
        %v244 = vld [vmem:[%s1 + $0x4c] sm:$0xf]
        %v245 = vld [vmem:[%s1 + $0x50] sm:$0xf]
        %v246 = vld [vmem:[%s1 + $0x54] sm:$0xf]
        %v247 = vld [vmem:[%s1 + $0x58] sm:$0xf]
        %v248 = vld [vmem:[%s1 + $0x5c] sm:$0xf]
        %v249 = vld [vmem:[%s1 + $0x60] sm:$0xf]
        %v250 = vld [vmem:[%s1 + $0x64] sm:$0xf]
        %v251 = vld [vmem:[%s1 + $0x68] sm:$0xf]
        %v252 = vld [vmem:[%s1 + $0x6c] sm:$0xf]
        %v253 = vld [vmem:[%s1 + $0x70] sm:$0xf]
        %v254 = vld [vmem:[%s1 + $0x74] sm:$0xf]
        %v255 = vld [vmem:[%s1 + $0x78] sm:$0xf]
        %v256 = vld [vmem:[%s1 + $0x7c] sm:$0xf]
        %v257 = vld [vmem:[%s1 + $0x80] sm:$0xf]
        %v258 = vld [vmem:[%s1 + $0x84] sm:$0xf]
        %v259 = vld [vmem:[%s1 + $0x88] sm:$0xf]
        %v260 = vld [vmem:[%s1 + $0x8c] sm:$0xf]
        %v261 = vld [vmem:[%s1 + $0x90] sm:$0xf]
        %v262 = vld [vmem:[%s1 + $0x94] sm:$0xf]
        %v263 = vld [vmem:[%s1 + $0x98] sm:$0xf]
        %v264 = vld [vmem:[%s1 + $0x9c] sm:$0xf]
        %v265 = vld [vmem:[%s1 + $0xa0] sm:$0xf]
        %v266 = vld [vmem:[%s1 + $0xa4] sm:$0xf]
        %v267 = vld [vmem:[%s1 + $0xa8] sm:$0xf]
        %v268 = vld [vmem:[%s1 + $0xac] sm:$0xf]
        %v269 = vld [vmem:[%s1 + $0xb0] sm:$0xf]
        %v270 = vld [vmem:[%s1 + $0xb4] sm:$0xf]
        %v271 = vld [vmem:[%s1 + $0xb8] sm:$0xf]
        %v272 = vld [vmem:[%s1 + $0xbc] sm:$0xf]
        %v273 = vld [vmem:[%s1 + $0xc0] sm:$0xf]
        %v274 = vld [vmem:[%s1 + $0xc4] sm:$0xf]
        %v275 = vld [vmem:[%s2] sm:$0x1]
        %v276 = vld [vmem:[%s196] sm:$0xff]
        %v277 = vld [vmem:[%s196 + $0x8] sm:$0xff]
        %v278 = vld [vmem:[%s196 + $0x10] sm:$0xff]
        %v279 = vld [vmem:[%s196 + $0x18] sm:$0xff]
        %v280 = vld [vmem:[%s196 + $0x20] sm:$0xff]
        %v281 = vld [vmem:[%s196 + $0x28] sm:$0xff]
        %v282 = vld [vmem:[%s196 + $0x30] sm:$0xff]
        %v283 = vld [vmem:[%s196 + $0x38] sm:$0xff]
        %v284 = vld [vmem:[%s196 + $0x40] sm:$0xff]
        %v285 = vld [vmem:[%s196 + $0x48] sm:$0xff]
        %v286 = vld [vmem:[%s196 + $0x50] sm:$0xff]
        %v287 = vld [vmem:[%s196 + $0x58] sm:$0xff]
        %v288 = vld [vmem:[%s196 + $0x60] sm:$0xff]
        %v289 = vld [vmem:[%s196 + $0x68] sm:$0xff]
        %v290 = vld [vmem:[%s196 + $0x70] sm:$0xff]
        %v291 = vld [vmem:[%s196 + $0x78] sm:$0xff]
        %v293 = vperm.slane %v275, 0
        %v311 = vunpack.c.l.b16 %v276
        %v312 = vunpack.c.h.b16 %v276
        %v313 = vunpack.c.l.b16 %v277
        %v314 = vunpack.c.h.b16 %v277
        %v315 = vunpack.c.l.b16 %v278
        %v316 = vunpack.c.h.b16 %v278
        %v317 = vunpack.c.l.b16 %v279
        %v318 = vunpack.c.h.b16 %v279
        %v319 = vunpack.c.l.b16 %v280
        %v320 = vunpack.c.h.b16 %v280
        %v321 = vunpack.c.l.b16 %v281
        %v322 = vunpack.c.h.b16 %v281
        %v323 = vunpack.c.l.b16 %v282
        %v324 = vunpack.c.h.b16 %v282
        %v325 = vunpack.c.l.b16 %v283
        %v326 = vunpack.c.h.b16 %v283
        %v327 = vunpack.c.l.b16 %v284
        %v328 = vunpack.c.h.b16 %v284
        %v329 = vunpack.c.l.b16 %v285
        %v330 = vunpack.c.h.b16 %v285
        %v331 = vunpack.c.l.b16 %v286
        %v332 = vunpack.c.h.b16 %v286
        %v333 = vunpack.c.l.b16 %v287
        %v334 = vunpack.c.h.b16 %v287
        %v335 = vunpack.c.l.b16 %v288
        %v336 = vunpack.c.h.b16 %v288
        %v337 = vunpack.c.l.b16 %v289
        %v338 = vunpack.c.h.b16 %v289
        %v339 = vunpack.c.l.b16 %v290
        %v340 = vunpack.c.h.b16 %v290
        %v341 = vunpack.c.l.b16 %v291
        %v342 = vunpack.c.h.b16 %v291
        %v343 = vpack.c.b16 %v315, %v311
        %v344 = vpack.c.b16 %v316, %v312
        %v345 = vpack.c.b16 %v317, %v313
        %v346 = vpack.c.b16 %v318, %v314
        %v347 = vpack.c.b16 %v323, %v319
        %v348 = vpack.c.b16 %v324, %v320
        %v349 = vpack.c.b16 %v325, %v321
        %v350 = vpack.c.b16 %v326, %v322
        %v351 = vpack.c.b16 %v331, %v327
        %v352 = vpack.c.b16 %v332, %v328
        %v353 = vpack.c.b16 %v333, %v329
        %v354 = vpack.c.b16 %v334, %v330
        %v355 = vpack.c.b16 %v339, %v335
        %v356 = vpack.c.b16 %v340, %v336
        %v357 = vpack.c.b16 %v341, %v337
        %v358 = vpack.c.b16 %v342, %v338
        %v421 = vunpack.c.l.b16 %v225
        %v422 = vunpack.c.l.b16 %v226
        %v423 = vunpack.c.l.b16 %v227
        %v424 = vunpack.c.l.b16 %v228
        %v425 = vunpack.c.l.b16 %v229
        %v426 = vunpack.c.l.b16 %v230
        %v427 = vunpack.c.l.b16 %v231
        %v428 = vunpack.c.l.b16 %v232
        %v429 = vunpack.c.l.b16 %v233
        %v430 = vunpack.c.l.b16 %v234
        %v431 = vunpack.c.l.b16 %v235
        %v432 = vunpack.c.l.b16 %v236
        %v433 = vunpack.c.l.b16 %v237
        %v434 = vunpack.c.l.b16 %v238
        %v435 = vunpack.c.l.b16 %v239
        %v436 = vunpack.c.l.b16 %v240
        %v437 = vunpack.c.l.b16 %v241
        %v438 = vunpack.c.l.b16 %v242
        %v439 = vunpack.c.l.b16 %v243
        %v440 = vunpack.c.l.b16 %v244
        %v441 = vunpack.c.l.b16 %v245
        %v442 = vunpack.c.l.b16 %v246
        %v443 = vunpack.c.l.b16 %v247
        %v444 = vunpack.c.l.b16 %v248
        %v445 = vunpack.c.l.b16 %v249
        %v446 = vunpack.c.l.b16 %v250
        %v447 = vunpack.c.l.b16 %v251
        %v448 = vunpack.c.l.b16 %v252
        %v449 = vunpack.c.l.b16 %v253
        %v450 = vunpack.c.l.b16 %v254
        %v451 = vunpack.c.l.b16 %v255
        %v452 = vunpack.c.l.b16 %v256
        %v453 = vunpack.c.l.b16 %v257
        %v454 = vunpack.c.l.b16 %v258
        %v455 = vunpack.c.l.b16 %v259
        %v456 = vunpack.c.l.b16 %v260
        %v457 = vunpack.c.l.b16 %v261
        %v458 = vunpack.c.l.b16 %v262
        %v459 = vunpack.c.l.b16 %v263
        %v460 = vunpack.c.l.b16 %v264
        %v461 = vunpack.c.l.b16 %v265
        %v462 = vunpack.c.l.b16 %v266
        %v463 = vunpack.c.l.b16 %v267
        %v464 = vunpack.c.l.b16 %v268
        %v465 = vunpack.c.l.b16 %v269
        %v466 = vunpack.c.l.b16 %v270
        %v467 = vunpack.c.l.b16 %v271
        %v468 = vunpack.c.l.b16 %v272
        %v469 = vunpack.c.l.b16 %v273
        %v470 = vunpack.c.l.b16 %v274
        %v471 = vpack.c.b16 %v422, %v421
        %v472 = vpack.c.b16 %v424, %v423
        %v473 = vpack.c.b16 %v426, %v425
        %v474 = vpack.c.b16 %v428, %v427
        %v475 = vpack.c.b16 %v430, %v429
        %v476 = vpack.c.b16 %v432, %v431
        %v477 = vpack.c.b16 %v434, %v433
        %v478 = vpack.c.b16 %v436, %v435
        %v479 = vpack.c.b16 %v438, %v437
        %v480 = vpack.c.b16 %v440, %v439
        %v481 = vpack.c.b16 %v442, %v441
        %v482 = vpack.c.b16 %v444, %v443
        %v483 = vpack.c.b16 %v446, %v445
        %v484 = vpack.c.b16 %v448, %v447
        %v485 = vpack.c.b16 %v450, %v449
        %v486 = vpack.c.b16 %v452, %v451
        %v487 = vpack.c.b16 %v454, %v453
        %v488 = vpack.c.b16 %v456, %v455
        %v489 = vpack.c.b16 %v458, %v457
        %v490 = vpack.c.b16 %v460, %v459
        %v491 = vpack.c.b16 %v462, %v461
        %v492 = vpack.c.b16 %v464, %v463
        %v493 = vpack.c.b16 %v466, %v465
        %v494 = vpack.c.b16 %v468, %v467
        %v495 = vpack.c.b16 %v470, %v469
        %vm521 = vcmask 130048
        %v523 = vsel %vm521, %v346, 0
        %v526 = vsel %vm521, %v350, 0
        %v529 = vsel %vm521, %v354, 0
        %v532 = vsel %vm521, %v358, 0
        %534 = vmatpush.bf16.msra.mxu0 %v478
        %535 = vmatpush.bf16.msra.mxu0 %v477
        %536 = vmatpush.bf16.msra.mxu0 %v476
        %537 = vmatpush.bf16.msra.mxu0 %v475
        %538 = vmatpush.bf16.msra.mxu0 %v474
        %539 = vmatpush.bf16.msra.mxu0 %v473
        %540 = vmatpush.bf16.msra.mxu0 %v472
        %541 = vmatpush.bf16.msra.mxu0 %v471
        %542 = vmatmul.bf16.gmra.mxu0 %v343
        %v543 = vpop.f32.mrf.mxu0
        %v544 = vadd.f32 %v293, %v543
        %v545 = vpop.f32.mrf.mxu0
        %v546 = vadd.f32 %v293, %v545
        %547 = vmatmul.bf16.gmra.mxu0 %v347
        %v548 = vpop.f32.mrf.mxu0
        %v549 = vadd.f32 %v293, %v548
        %v550 = vpop.f32.mrf.mxu0
        %v551 = vadd.f32 %v293, %v550
        %552 = vmatmul.bf16.gmra.mxu0 %v351
        %v553 = vpop.f32.mrf.mxu0
        %v554 = vadd.f32 %v293, %v553
        %v555 = vpop.f32.mrf.mxu0
        %v556 = vadd.f32 %v293, %v555
        %557 = vmatmul.bf16.gmra.mxu0 %v355
        %v558 = vpop.f32.mrf.mxu0
        %v559 = vadd.f32 %v293, %v558
        %v560 = vpop.f32.mrf.mxu0
        %v561 = vadd.f32 %v293, %v560
        %562 = vdwg.mxu0
        %563 = vmatpush.bf16.msra.mxu0 %v486
        %564 = vmatpush.bf16.msra.mxu0 %v485
        %565 = vmatpush.bf16.msra.mxu0 %v484
        %566 = vmatpush.bf16.msra.mxu0 %v483
        %567 = vmatpush.bf16.msra.mxu0 %v482
        %568 = vmatpush.bf16.msra.mxu0 %v481
        %569 = vmatpush.bf16.msra.mxu0 %v480
        %570 = vmatpush.bf16.msra.mxu0 %v479
        %571 = vmatmul.bf16.gmra.mxu0 %v344
        %v572 = vpop.f32.mrf.mxu0
        %v573 = vadd.f32 %v544, %v572
        %v574 = vpop.f32.mrf.mxu0
        %v575 = vadd.f32 %v546, %v574
        %576 = vmatmul.bf16.gmra.mxu0 %v348
        %v577 = vpop.f32.mrf.mxu0
        %v578 = vadd.f32 %v549, %v577
        %v579 = vpop.f32.mrf.mxu0
        %v580 = vadd.f32 %v551, %v579
        %581 = vmatmul.bf16.gmra.mxu0 %v352
        %v582 = vpop.f32.mrf.mxu0
        %v583 = vadd.f32 %v554, %v582
        %v584 = vpop.f32.mrf.mxu0
        %v585 = vadd.f32 %v556, %v584
        %586 = vmatmul.bf16.gmra.mxu0 %v356
        %v587 = vpop.f32.mrf.mxu0
        %v588 = vadd.f32 %v559, %v587
        %v589 = vpop.f32.mrf.mxu0
        %v590 = vadd.f32 %v561, %v589
        %591 = vdwg.mxu0
        %592 = vmatpush.bf16.msra.mxu0 %v494
        %593 = vmatpush.bf16.msra.mxu0 %v493
        %594 = vmatpush.bf16.msra.mxu0 %v492
        %595 = vmatpush.bf16.msra.mxu0 %v491
        %596 = vmatpush.bf16.msra.mxu0 %v490
        %597 = vmatpush.bf16.msra.mxu0 %v489
        %598 = vmatpush.bf16.msra.mxu0 %v488
        %599 = vmatpush.bf16.msra.mxu0 %v487
        %600 = vmatmul.bf16.gmra.mxu0 %v345
        %v601 = vpop.f32.mrf.mxu0
        %v602 = vadd.f32 %v573, %v601
        %v603 = vpop.f32.mrf.mxu0
        %v604 = vadd.f32 %v575, %v603
        %605 = vmatmul.bf16.gmra.mxu0 %v349
        %v606 = vpop.f32.mrf.mxu0
        %v607 = vadd.f32 %v578, %v606
        %v608 = vpop.f32.mrf.mxu0
        %v609 = vadd.f32 %v580, %v608
        %610 = vmatmul.bf16.gmra.mxu0 %v353
        %v611 = vpop.f32.mrf.mxu0
        %v612 = vadd.f32 %v583, %v611
        %v613 = vpop.f32.mrf.mxu0
        %v614 = vadd.f32 %v585, %v613
        %615 = vmatmul.bf16.gmra.mxu0 %v357
        %v616 = vpop.f32.mrf.mxu0
        %v617 = vadd.f32 %v588, %v616
        %v618 = vpop.f32.mrf.mxu0
        %v619 = vadd.f32 %v590, %v618
        %620 = vdwg.mxu0
        %621 = vmatpush.bf16.msra.mxu0 0
        %622 = vmatpush.bf16.msra.mxu0 0
        %623 = vmatpush.bf16.msra.mxu0 0
        %624 = vmatpush.bf16.msra.mxu0 0
        %625 = vmatpush.bf16.msra.mxu0 0
        %626 = vmatpush.bf16.msra.mxu0 0
        %627 = vmatpush.bf16.msra.mxu0 0
        %628 = vmatpush.bf16.msra.mxu0 %v495
        %629 = vmatmul.bf16.gmra.mxu0 %v523
        %v630 = vpop.f32.mrf.mxu0
        %v631 = vadd.f32 %v602, %v630
        %v632 = vpop.f32.mrf.mxu0
        %v633 = vadd.f32 %v604, %v632
        %634 = vmatmul.bf16.gmra.mxu0 %v526
        %v635 = vpop.f32.mrf.mxu0
        %v636 = vadd.f32 %v607, %v635
        %v637 = vpop.f32.mrf.mxu0
        %v638 = vadd.f32 %v609, %v637
        %639 = vmatmul.bf16.gmra.mxu0 %v529
        %v640 = vpop.f32.mrf.mxu0
        %v641 = vadd.f32 %v612, %v640
        %v642 = vpop.f32.mrf.mxu0
        %v643 = vadd.f32 %v614, %v642
        %644 = vmatmul.bf16.gmra.mxu0 %v532
        %v645 = vpop.f32.mrf.mxu0
        %v646 = vadd.f32 %v617, %v645
        %v647 = vpop.f32.mrf.mxu0
        %v648 = vadd.f32 %v619, %v647
        %649 = vdwg.mxu0
        %v650 = vmax.f32 %v631, 0.0
        %v651 = vmax.f32 %v633, 0.0
        %v652 = vmax.f32 %v636, 0.0
        %v653 = vmax.f32 %v638, 0.0
        %v654 = vmax.f32 %v641, 0.0
        %v655 = vmax.f32 %v643, 0.0
        %v656 = vmax.f32 %v646, 0.0
        %v657 = vmax.f32 %v648, 0.0
        %v658 = vmax.f32 %v650, %v652
        %v659 = vmax.f32 %v651, %v653
        %v660 = vmax.f32 %v654, %v656
        %v661 = vmax.f32 %v655, %v657
        %v662 = vmax.f32 %v658, %v660
        %v663 = vmax.f32 %v659, %v661
        %v664 = vpack.c.bf16 %v662, %v662
        %v665 = vpack.c.bf16 %v663, %v663
        %666 = vst [vmem:[%s222] sm:$0xf] %v664
        %667 = vst [vmem:[%s222 + $0x4] sm:$0xf] %v665
        %s668 = smul.u32 2, %s14
        %p669 = scmp.lt.s32.totalorder %s668, 3
        %s670 = scalar_select %p669, %s668, 3
        %s671 = smul.addr %s670, 4
        %s672 = scalar_lea.vmem %s3, %s671
        // Predicated region
        $region56: #{net_forward.10} parent=50 // pred_check
          %p673 = pneg %p100
        $region57: #{net_forward.10} parent=50 // pred_check_branch
          %675 = sbr.rel (%p673) target = $region59
        $region58: #{net_forward.10} parent=50 // pred_region
          %s676 = smul.u32 2, %s14
        $region59: #{net_forward.10} parent=50 // pred_fallthru
          _
      $region51: #{net_forward.10} parent=5 // pred_fallthru
        _
      %p677 = scmp.le.s32.totalorder 2, %s9
      // Predicated region
      $region60: #{net_forward.10} parent=5 // pred_check
        %p678 = pneg %p677
      $region61: #{net_forward.10} parent=5 // pred_check_branch
        %680 = sbr.rel (%p678) target = $region63
      $region62: #{net_forward.10} parent=5 // pred_region
        %s681 = ssub.s32 %s9, 2
        // Predicated region
        $region64: #{net_forward.10} parent=62 // pred_check
          %p682 = pneg %p106
        $region65: #{net_forward.10} parent=62 // pred_check_branch
          %684 = sbr.rel (%p682) target = $region67
        $region66: #{net_forward.10} parent=62 // pred_region
          %s685 = smul.u32 2, %s15
          %p686 = scmp.lt.s32.totalorder %s685, 3
          %s687 = scalar_select %p686, %s685, 3
          %s688 = smul.addr %s687, 4
          %s689 = scalar_lea.vmem %s3, %s688
        $region67: #{net_forward.10} parent=62 // pred_fallthru
          _
      $region63: #{net_forward.10} parent=5 // pred_fallthru
        _
    $region6: #{net_forward.10} parent=1 // loop_footer
      %s13 = sadd.s32 1, %s9
    $region7: #{net_forward.10} parent=1 // loop_footer_branch
      %8 = sbr.rel target = $region3
    $region8: #{net_forward.10} parent=1 // loop_exit
      _

// kernel: net_forward.12
$region0: #{net_forward.12}
  #allocation0 [shape = 'u32[]', space=smem, size = 0x4, offset = 0x4, fixed_abs, tag = 'smem constant byte address 0x4 - core index']
  #allocation1 [shape = 'u32[72,128]{1,0:T(1,128)}', space=vmem, size = 0x9000, scoped, tag = 'internal scratch']
  %s0 = inlined_call_operand.vmem [shape: bf16[32,288], index: 0, kind: input, shape index: {}]
  %s1 = inlined_call_operand.vmem [shape: bf16[288,128], index: 1, kind: input, shape index: {}]
  %s2 = inlined_call_operand.vmem [shape: f32[1,128], index: 2, kind: input, shape index: {}]
  %s3 = inlined_call_operand.vmem [shape: bf16[32,128], index: 3, kind: input, shape index: {}]
  %s4 = inlined_call_operand.vmem [shape: bf16[32,128], index: 4, kind: output, shape index: {}]
  %s5 = sld [smem:[#allocation0]]
  $region49: #{net_forward.12} parent=0
    _
  %s7 = ssub.s32 1, %s5
  %s8 = scalar_select 0, %s7, %s5
  loop: start=0, step=1, limit=4
  $region2: #{net_forward.12} parent=0 // loop_pre_header
    _
  $region3: #{net_forward.12} parent=0 // loop_header
    %s10 = sphi 0, %s14
    %p11 = scmp.ge.s32.totalorder %s10, 4
    %s20 = sphi 0, %s22
    %s23 = sphi 0, %s20
    %s24 = sphi 0, %s23
    %s40 = sphi 0, %s24
    %s44 = sphi 0, %s44
    %s46 = sphi 0, %s44
    %s47 = sphi 0, %s46
    %s61 = sphi 0, %s47
    %s65 = sphi 0, %s65
    %s67 = sphi 0, %s65
    %s68 = sphi 0, %s67
    %s82 = sphi 0, %s68
    %s88 = sphi 0, %s90
    %s91 = sphi 0, %s88
    %s92 = sphi 0, %s91
    %s108 = sphi 0, %s92
    %s114 = sphi 0, %s116
    %s117 = sphi 0, %s114
    %s118 = sphi 0, %s117
    %s134 = sphi 0, %s118
  $region4: #{net_forward.12} parent=0 // loop_header_branch
    %13 = sbr.rel (%p11) target = $region8
  $region5: #{net_forward.12} parent=0 // loop_body
    %s15 = ssub.s32 %s10, 1
    %s16 = ssub.s32 %s10, 2
    %s17 = sadd.s32 %s10, 1
    %s18 = ssub.s32 %s10, %s17
    %p19 = scmp.eq.s32.totalorder %s18, 0
    %s21 = sadd.s32 %s20, 1
    %s22 = scalar_select %p19, %s20, %s21
    %p25 = pneg %p19
    %p26 = scmp.eq.s32.totalorder %s10, 1
    %p27 = por %p25, %p26
    %p28 = scmp.ne.s32.totalorder %s20, %s23
    %p29 = scmp.eq.s32.totalorder %s10, 0
    %p30 = por %p28, %p29
    %p31 = scmp.ne.s32.totalorder %s20, %s23
    %p32 = scmp.eq.s32.totalorder %s15, 1
    %p33 = por %p31, %p32
    %p34 = scmp.ne.s32.totalorder %s23, %s24
    %p35 = scmp.eq.s32.totalorder %s15, 0
    %p36 = por %p34, %p35
    %p37 = scmp.ne.s32.totalorder %s23, %s24
    %p38 = scmp.eq.s32.totalorder %s16, 1
    %p39 = por %p37, %p38
    %p41 = scmp.ne.s32.totalorder %s24, %s40
    %p42 = scmp.eq.s32.totalorder %s16, 0
    %p43 = por %p41, %p42
    %s45 = sadd.s32 %s44, 1
    %p48 = scmp.eq.s32.totalorder %s10, 1
    %p49 = scmp.ne.s32.totalorder %s44, %s46
    %p50 = scmp.eq.s32.totalorder %s10, 0
    %p51 = por %p49, %p50
    %p52 = scmp.ne.s32.totalorder %s44, %s46
    %p53 = scmp.eq.s32.totalorder %s15, 1
    %p54 = por %p52, %p53
    %p55 = scmp.ne.s32.totalorder %s46, %s47
    %p56 = scmp.eq.s32.totalorder %s15, 0
    %p57 = por %p55, %p56
    %p58 = scmp.ne.s32.totalorder %s46, %s47
    %p59 = scmp.eq.s32.totalorder %s16, 1
    %p60 = por %p58, %p59
    %p62 = scmp.ne.s32.totalorder %s47, %s61
    %p63 = scmp.eq.s32.totalorder %s16, 0
    %p64 = por %p62, %p63
    %s66 = sadd.s32 %s65, 1
    %p69 = scmp.eq.s32.totalorder %s10, 1
    %p70 = scmp.ne.s32.totalorder %s65, %s67
    %p71 = scmp.eq.s32.totalorder %s10, 0
    %p72 = por %p70, %p71
    %p73 = scmp.ne.s32.totalorder %s65, %s67
    %p74 = scmp.eq.s32.totalorder %s15, 1
    %p75 = por %p73, %p74
    %p76 = scmp.ne.s32.totalorder %s67, %s68
    %p77 = scmp.eq.s32.totalorder %s15, 0
    %p78 = por %p76, %p77
    %p79 = scmp.ne.s32.totalorder %s67, %s68
    %p80 = scmp.eq.s32.totalorder %s16, 1
    %p81 = por %p79, %p80
    %p83 = scmp.ne.s32.totalorder %s68, %s82
    %p84 = scmp.eq.s32.totalorder %s16, 0
    %p85 = por %p83, %p84
    %s86 = ssub.s32 %s10, %s17
    %p87 = scmp.eq.s32.totalorder %s86, 0
    %s89 = sadd.s32 %s88, 1
    %s90 = scalar_select %p87, %s88, %s89
    %p93 = pneg %p87
    %p94 = scmp.eq.s32.totalorder %s10, 1
    %p95 = por %p93, %p94
    %p96 = scmp.ne.s32.totalorder %s88, %s91
    %p97 = scmp.eq.s32.totalorder %s10, 0
    %p98 = por %p96, %p97
    %p99 = scmp.ne.s32.totalorder %s88, %s91
    %p100 = scmp.eq.s32.totalorder %s15, 1
    %p101 = por %p99, %p100
    %p102 = scmp.ne.s32.totalorder %s91, %s92
    %p103 = scmp.eq.s32.totalorder %s15, 0
    %p104 = por %p102, %p103
    %p105 = scmp.ne.s32.totalorder %s91, %s92
    %p106 = scmp.eq.s32.totalorder %s16, 1
    %p107 = por %p105, %p106
    %p109 = scmp.ne.s32.totalorder %s92, %s108
    %p110 = scmp.eq.s32.totalorder %s16, 0
    %p111 = por %p109, %p110
    %s112 = ssub.s32 %s10, %s17
    %p113 = scmp.eq.s32.totalorder %s112, 0
    %s115 = sadd.s32 %s114, 1
    %s116 = scalar_select %p113, %s114, %s115
    %p119 = pneg %p113
    %p120 = scmp.eq.s32.totalorder %s10, 1
    %p121 = por %p119, %p120
    %p122 = scmp.ne.s32.totalorder %s114, %s117
    %p123 = scmp.eq.s32.totalorder %s10, 0
    %p124 = por %p122, %p123
    %p125 = scmp.ne.s32.totalorder %s114, %s117
    %p126 = scmp.eq.s32.totalorder %s15, 1
    %p127 = por %p125, %p126
    %p128 = scmp.ne.s32.totalorder %s117, %s118
    %p129 = scmp.eq.s32.totalorder %s15, 0
    %p130 = por %p128, %p129
    %p131 = scmp.ne.s32.totalorder %s117, %s118
    %p132 = scmp.eq.s32.totalorder %s16, 1
    %p133 = por %p131, %p132
    %p135 = scmp.ne.s32.totalorder %s118, %s134
    %p136 = scmp.eq.s32.totalorder %s16, 0
    %p137 = por %p135, %p136
    %p138 = scmp.le.s32.totalorder 1, %s10
    %p139 = scmp.lt.s32.totalorder %s10, 3
    %p140 = pnand %p138, %p139
    %p141 = pneg %p140
    // Predicated region
    $region9: #{net_forward.12} parent=5 // pred_check
      _
    $region10: #{net_forward.12} parent=5 // pred_check_branch
      %143 = sbr.rel (%p140) target = $region12
    $region11: #{net_forward.12} parent=5 // pred_region
      %s144 = ssub.s32 %s10, 1
      // Predicated region
      $region13: #{net_forward.12} parent=11 // pred_check
        %p145 = pneg %p57
      $region14: #{net_forward.12} parent=11 // pred_check_branch
        %147 = sbr.rel (%p145) target = $region16
      $region15: #{net_forward.12} parent=11 // pred_region
        _
      $region16: #{net_forward.12} parent=11 // pred_fallthru
        _
      // Predicated region
      $region17: #{net_forward.12} parent=11 // pred_check
        %p148 = pneg %p78
      $region18: #{net_forward.12} parent=11 // pred_check_branch
        %150 = sbr.rel (%p148) target = $region20
      $region19: #{net_forward.12} parent=11 // pred_region
        _
      $region20: #{net_forward.12} parent=11 // pred_fallthru
        _
    $region12: #{net_forward.12} parent=5 // pred_fallthru
      _
    %p151 = scmp.lt.s32.totalorder %s10, 2
    // Predicated region
    $region21: #{net_forward.12} parent=5 // pred_check
      %p152 = pneg %p151
    $region22: #{net_forward.12} parent=5 // pred_check_branch
      %154 = sbr.rel (%p152) target = $region24
    $region23: #{net_forward.12} parent=5 // pred_region
      // Predicated region
      $region25: #{net_forward.12} parent=23 // pred_check
        %p155 = pneg %p30
      $region26: #{net_forward.12} parent=23 // pred_check_branch
        %157 = sbr.rel (%p155) target = $region28
      $region27: #{net_forward.12} parent=23 // pred_region
        %s158 = smul.u32 2, %s10
        %p159 = scmp.lt.s32.totalorder %s158, 3
        %s160 = scalar_select %p159, %s158, 3
        %s161 = smul.addr %s160, 3
        %s162 = smul.addr %s161, 4
        %s163 = scalar_lea.vmem %s0, %s162
        %s164 = smul.u32 2, %s10
      $region28: #{net_forward.12} parent=23 // pred_fallthru
        _
      // Predicated region
      $region29: #{net_forward.12} parent=23 // pred_check
        %p165 = pneg %p98
      $region30: #{net_forward.12} parent=23 // pred_check_branch
        %167 = sbr.rel (%p165) target = $region32
      $region31: #{net_forward.12} parent=23 // pred_region
        %s168 = smul.u32 2, %s10
        %p169 = scmp.lt.s32.totalorder %s168, 3
        %s170 = scalar_select %p169, %s168, 3
        %s171 = smul.addr %s170, 4
        %s172 = scalar_lea.vmem %s3, %s171
        %s173 = smul.u32 2, %s10
      $region32: #{net_forward.12} parent=23 // pred_fallthru
        _
    $region24: #{net_forward.12} parent=5 // pred_fallthru
      _
    %p174 = scmp.le.s32.totalorder 1, %s10
    %p175 = scmp.lt.s32.totalorder %s10, 3
    %p176 = pnand %p174, %p175
    %p177 = pneg %p176
    // Predicated region
    $region33: #{net_forward.12} parent=5 // pred_check
      _
    $region34: #{net_forward.12} parent=5 // pred_check_branch
      %179 = sbr.rel (%p176) target = $region36
    $region35: #{net_forward.12} parent=5 // pred_region
      %s180 = ssub.s32 %s10, 1
      %s181 = smul.u32 2, %s15
      %p182 = scmp.lt.s32.totalorder %s181, 3
      %s183 = scalar_select %p182, %s181, 3
      %s184 = smul.addr %s183, 3
      %s185 = smul.addr %s184, 4
      %s186 = scalar_lea.vmem %s0, %s185
      %p187 = pneg %p36
      %p188 = pneg %p33
      %p189 = pneg %p57
      %p190 = pneg %p54
      %p191 = pneg %p78
      %p192 = pneg %p75
      %s193 = smul.u32 2, %s15
      %p194 = scmp.lt.s32.totalorder %s193, 3
      %s195 = scalar_select %p194, %s193, 3
      %s196 = smul.addr %s195, 4
      %s197 = scalar_lea.vmem %s3, %s196
      %p198 = pneg %p104
      %p199 = pneg %p101
      %p200 = pneg %p130
      %p201 = pneg %p127
      %s202 = smul.u32 2, %s15
      %p203 = scmp.lt.s32.totalorder %s202, 3
      %s204 = scalar_select %p203, %s202, 3
      %s205 = smul.addr %s204, 4
      %s206 = scalar_lea.vmem %s4, %s205
      %s207 = smul.u32 2, %s15
      %p208 = scmp.lt.s32.totalorder %s207, 3
      %s209 = scalar_select %p208, %s207, 3
      %s210 = smul.addr %s209, 3
      %s211 = smul.addr %s210, 4
      %s212 = scalar_lea.vmem %s0, %s211
      %s213 = smul.u32 2, %s15
      %s214 = smul.u32 2, %s15
      %p215 = scmp.lt.s32.totalorder %s214, 3
      %s216 = scalar_select %p215, %s214, 3
      %s217 = smul.addr %s216, 4
      %s218 = scalar_lea.vmem %s3, %s217
      %s219 = smul.u32 2, %s15
      %s220 = smul.u32 2, %s15
      %p221 = scmp.lt.s32.totalorder %s220, 3
      %s222 = scalar_select %p221, %s220, 3
      %s223 = smul.addr %s222, 4
      %s224 = scalar_lea.vmem %s4, %s223
      %s225 = smul.u32 2, %s15
      %v227 = vld [vmem:[%s212] sm:$0xff]
      %v228 = vld [vmem:[%s212 + $0x8] sm:$0xf]
      %v229 = vld [vmem:[%s212 + $0xc] sm:$0xff]
      %v230 = vld [vmem:[%s212 + $0x14] sm:$0xf]
      %v231 = vld [vmem:[%s1] sm:$0xf]
      %v232 = vld [vmem:[%s1 + $0x4] sm:$0xf]
      %v233 = vld [vmem:[%s1 + $0x8] sm:$0xf]
      %v234 = vld [vmem:[%s1 + $0xc] sm:$0xf]
      %v235 = vld [vmem:[%s1 + $0x10] sm:$0xf]
      %v236 = vld [vmem:[%s1 + $0x14] sm:$0xf]
      %v237 = vld [vmem:[%s1 + $0x18] sm:$0xf]
      %v238 = vld [vmem:[%s1 + $0x1c] sm:$0xf]
      %v239 = vld [vmem:[%s1 + $0x20] sm:$0xf]
      %v240 = vld [vmem:[%s1 + $0x24] sm:$0xf]
      %v241 = vld [vmem:[%s1 + $0x28] sm:$0xf]
      %v242 = vld [vmem:[%s1 + $0x2c] sm:$0xf]
      %v243 = vld [vmem:[%s1 + $0x30] sm:$0xf]
      %v244 = vld [vmem:[%s1 + $0x34] sm:$0xf]
      %v245 = vld [vmem:[%s1 + $0x38] sm:$0xf]
      %v246 = vld [vmem:[%s1 + $0x3c] sm:$0xf]
      %v247 = vld [vmem:[%s1 + $0x40] sm:$0xf]
      %v248 = vld [vmem:[%s1 + $0x44] sm:$0xf]
      %v249 = vld [vmem:[%s1 + $0x48] sm:$0xf]
      %v250 = vld [vmem:[%s1 + $0x4c] sm:$0xf]
      %v251 = vld [vmem:[%s1 + $0x50] sm:$0xf]
      %v252 = vld [vmem:[%s1 + $0x54] sm:$0xf]
      %v253 = vld [vmem:[%s1 + $0x58] sm:$0xf]
      %v254 = vld [vmem:[%s1 + $0x5c] sm:$0xf]
      %v255 = vld [vmem:[%s1 + $0x60] sm:$0xf]
      %v256 = vld [vmem:[%s1 + $0x64] sm:$0xf]
      %v257 = vld [vmem:[%s1 + $0x68] sm:$0xf]
      %v258 = vld [vmem:[%s1 + $0x6c] sm:$0xf]
      %v259 = vld [vmem:[%s1 + $0x70] sm:$0xf]
      %v260 = vld [vmem:[%s1 + $0x74] sm:$0xf]
      %v261 = vld [vmem:[%s1 + $0x78] sm:$0xf]
      %v262 = vld [vmem:[%s1 + $0x7c] sm:$0xf]
      %v263 = vld [vmem:[%s1 + $0x80] sm:$0xf]
      %v264 = vld [vmem:[%s1 + $0x84] sm:$0xf]
      %v265 = vld [vmem:[%s1 + $0x88] sm:$0xf]
      %v266 = vld [vmem:[%s1 + $0x8c] sm:$0xf]
      %v267 = vld [vmem:[%s2] sm:$0x1]
      %v269 = vperm.slane %v267, 0
      %v275 = vunpack.c.l.b16 %v227
      %v276 = vunpack.c.h.b16 %v227
      %v277 = vunpack.c.l.b16 %v228
      %v278 = vunpack.c.l.b16 %v229
      %v279 = vunpack.c.h.b16 %v229
      %v280 = vunpack.c.l.b16 %v230
      %v281 = vpack.c.b16 %v278, %v275
      %v282 = vpack.c.b16 %v279, %v276
      %v283 = vpack.c.b16 %v280, %v277
      %v322 = vunpack.c.l.b16 %v231
      %v323 = vunpack.c.l.b16 %v232
      %v324 = vunpack.c.l.b16 %v233
      %v325 = vunpack.c.l.b16 %v234
      %v326 = vunpack.c.l.b16 %v235
      %v327 = vunpack.c.l.b16 %v236
      %v328 = vunpack.c.l.b16 %v237
      %v329 = vunpack.c.l.b16 %v238
      %v330 = vunpack.c.l.b16 %v239
      %v331 = vunpack.c.l.b16 %v240
      %v332 = vunpack.c.l.b16 %v241
      %v333 = vunpack.c.l.b16 %v242
      %v334 = vunpack.c.l.b16 %v243
      %v335 = vunpack.c.l.b16 %v244
      %v336 = vunpack.c.l.b16 %v245
      %v337 = vunpack.c.l.b16 %v246
      %v338 = vunpack.c.l.b16 %v247
      %v339 = vunpack.c.l.b16 %v248
      %v340 = vunpack.c.l.b16 %v249
      %v341 = vunpack.c.l.b16 %v250
      %v342 = vunpack.c.l.b16 %v251
      %v343 = vunpack.c.l.b16 %v252
      %v344 = vunpack.c.l.b16 %v253
      %v345 = vunpack.c.l.b16 %v254
      %v346 = vunpack.c.l.b16 %v255
      %v347 = vunpack.c.l.b16 %v256
      %v348 = vunpack.c.l.b16 %v257
      %v349 = vunpack.c.l.b16 %v258
      %v350 = vunpack.c.l.b16 %v259
      %v351 = vunpack.c.l.b16 %v260
      %v352 = vunpack.c.l.b16 %v261
      %v353 = vunpack.c.l.b16 %v262
      %v354 = vunpack.c.l.b16 %v263
      %v355 = vunpack.c.l.b16 %v264
      %v356 = vunpack.c.l.b16 %v265
      %v357 = vunpack.c.l.b16 %v266
      %v358 = vpack.c.b16 %v323, %v322
      %v359 = vpack.c.b16 %v325, %v324
      %v360 = vpack.c.b16 %v327, %v326
      %v361 = vpack.c.b16 %v329, %v328
      %v362 = vpack.c.b16 %v331, %v330
      %v363 = vpack.c.b16 %v333, %v332
      %v364 = vpack.c.b16 %v335, %v334
      %v365 = vpack.c.b16 %v337, %v336
      %v366 = vpack.c.b16 %v339, %v338
      %v367 = vpack.c.b16 %v341, %v340
      %v368 = vpack.c.b16 %v343, %v342
      %v369 = vpack.c.b16 %v345, %v344
      %v370 = vpack.c.b16 %v347, %v346
      %v371 = vpack.c.b16 %v349, %v348
      %v372 = vpack.c.b16 %v351, %v350
      %v373 = vpack.c.b16 %v353, %v352
      %v374 = vpack.c.b16 %v355, %v354
      %v375 = vpack.c.b16 %v357, %v356
      %vm394 = vcmask 261120
      %v396 = vsel %vm394, %v283, 0
      %398 = vmatpush.bf16.msra.mxu0 %v365
      %399 = vmatpush.bf16.msra.mxu0 %v364
      %400 = vmatpush.bf16.msra.mxu0 %v363
      %401 = vmatpush.bf16.msra.mxu0 %v362
      %402 = vmatpush.bf16.msra.mxu0 %v361
      %403 = vmatpush.bf16.msra.mxu0 %v360
      %404 = vmatpush.bf16.msra.mxu0 %v359
      %405 = vmatpush.bf16.msra.mxu0 %v358
      %406 = vmatmul.bf16.gmra.mxu0 %v281
      %v407 = vpop.f32.mrf.mxu0
      %v408 = vadd.f32 %v269, %v407
      %v409 = vpop.f32.mrf.mxu0
      %v410 = vadd.f32 %v269, %v409
      %411 = vdwg.mxu0
      %412 = vmatpush.bf16.msra.mxu0 %v373
      %413 = vmatpush.bf16.msra.mxu0 %v372
      %414 = vmatpush.bf16.msra.mxu0 %v371
      %415 = vmatpush.bf16.msra.mxu0 %v370
      %416 = vmatpush.bf16.msra.mxu0 %v369
      %417 = vmatpush.bf16.msra.mxu0 %v368
      %418 = vmatpush.bf16.msra.mxu0 %v367
      %419 = vmatpush.bf16.msra.mxu0 %v366
      %420 = vmatmul.bf16.gmra.mxu0 %v282
      %v421 = vpop.f32.mrf.mxu0
      %v422 = vadd.f32 %v408, %v421
      %v423 = vpop.f32.mrf.mxu0
      %v424 = vadd.f32 %v410, %v423
      %425 = vdwg.mxu0
      %426 = vmatpush.bf16.msra.mxu0 0
      %427 = vmatpush.bf16.msra.mxu0 0
      %428 = vmatpush.bf16.msra.mxu0 0
      %429 = vmatpush.bf16.msra.mxu0 0
      %430 = vmatpush.bf16.msra.mxu0 0
      %431 = vmatpush.bf16.msra.mxu0 0
      %432 = vmatpush.bf16.msra.mxu0 %v375
      %433 = vmatpush.bf16.msra.mxu0 %v374
      %434 = vmatmul.bf16.gmra.mxu0 %v396
      %v435 = vpop.f32.mrf.mxu0
      %v436 = vadd.f32 %v422, %v435
      %v437 = vpop.f32.mrf.mxu0
      %v438 = vadd.f32 %v424, %v437
      %439 = vdwg.mxu0
      %v440 = vld [vmem:[%s218] sm:$0xf]
      %v441 = vld [vmem:[%s218 + $0x4] sm:$0xf]
      %v442 = vunpack.c.l.bf16 %v440
      %v443 = vunpack.c.l.bf16 %v441
      %v444 = vadd.f32 %v436, %v442
      %v445 = vadd.f32 %v438, %v443
      %v446 = vmax.f32 %v444, 0.0
      %v447 = vmax.f32 %v445, 0.0
      %v448 = vpack.c.bf16 %v446, %v446
      %v449 = vpack.c.bf16 %v447, %v447
      %450 = vst [vmem:[%s224] sm:$0xf] %v448
      %451 = vst [vmem:[%s224 + $0x4] sm:$0xf] %v449
      %s452 = smul.u32 2, %s15
      %p453 = scmp.lt.s32.totalorder %s452, 3
      %s454 = scalar_select %p453, %s452, 3
      %s455 = smul.addr %s454, 4
      %s456 = scalar_lea.vmem %s4, %s455
      // Predicated region
      $region37: #{net_forward.12} parent=35 // pred_check
        %p457 = pneg %p127
      $region38: #{net_forward.12} parent=35 // pred_check_branch
        %459 = sbr.rel (%p457) target = $region40
      $region39: #{net_forward.12} parent=35 // pred_region
        %s460 = smul.u32 2, %s15
      $region40: #{net_forward.12} parent=35 // pred_fallthru
        _
    $region36: #{net_forward.12} parent=5 // pred_fallthru
      _
    %p461 = scmp.le.s32.totalorder 2, %s10
    // Predicated region
    $region41: #{net_forward.12} parent=5 // pred_check
      %p462 = pneg %p461
    $region42: #{net_forward.12} parent=5 // pred_check_branch
      %464 = sbr.rel (%p462) target = $region44
    $region43: #{net_forward.12} parent=5 // pred_region
      %s465 = ssub.s32 %s10, 2
      // Predicated region
      $region45: #{net_forward.12} parent=43 // pred_check
        %p466 = pneg %p133
      $region46: #{net_forward.12} parent=43 // pred_check_branch
        %468 = sbr.rel (%p466) target = $region48
      $region47: #{net_forward.12} parent=43 // pred_region
        %s469 = smul.u32 2, %s16
        %p470 = scmp.lt.s32.totalorder %s469, 3
        %s471 = scalar_select %p470, %s469, 3
        %s472 = smul.addr %s471, 4
        %s473 = scalar_lea.vmem %s4, %s472
      $region48: #{net_forward.12} parent=43 // pred_fallthru
        _
    $region44: #{net_forward.12} parent=5 // pred_fallthru
      _
  $region6: #{net_forward.12} parent=0 // loop_footer
    %s14 = sadd.s32 1, %s10
  $region7: #{net_forward.12} parent=0 // loop_footer_branch
    %9 = sbr.rel target = $region3
  $region8: #{net_forward.12} parent=0 // loop_exit
    _

// kernel: net_forward.11
$region0: #{net_forward.11}
  #allocation0 [shape = 'u32[]', space=smem, size = 0x4, offset = 0x4, fixed_abs, tag = 'smem constant byte address 0x4 - core index']
  #allocation1 [shape = 'u32[72,128]{1,0:T(1,128)}', space=vmem, size = 0x9000, scoped, tag = 'internal scratch']
  %s0 = inlined_call_operand.vmem [shape: bf16[32,288], index: 0, kind: input, shape index: {}]
  %s1 = inlined_call_operand.vmem [shape: bf16[288,128], index: 1, kind: input, shape index: {}]
  %s2 = inlined_call_operand.vmem [shape: f32[1,128], index: 2, kind: input, shape index: {}]
  %s3 = inlined_call_operand.vmem [shape: bf16[32,128], index: 3, kind: output, shape index: {}]
  %s4 = sld [smem:[#allocation0]]
  $region45: #{net_forward.11} parent=0
    _
  %s6 = ssub.s32 1, %s4
  %s7 = scalar_select 0, %s6, %s4
  loop: start=0, step=1, limit=4
  $region2: #{net_forward.11} parent=0 // loop_pre_header
    _
  $region3: #{net_forward.11} parent=0 // loop_header
    %s9 = sphi 0, %s13
    %p10 = scmp.ge.s32.totalorder %s9, 4
    %s19 = sphi 0, %s21
    %s22 = sphi 0, %s19
    %s23 = sphi 0, %s22
    %s39 = sphi 0, %s23
    %s43 = sphi 0, %s43
    %s45 = sphi 0, %s43
    %s46 = sphi 0, %s45
    %s60 = sphi 0, %s46
    %s64 = sphi 0, %s64
    %s66 = sphi 0, %s64
    %s67 = sphi 0, %s66
    %s81 = sphi 0, %s67
    %s87 = sphi 0, %s89
    %s90 = sphi 0, %s87
    %s91 = sphi 0, %s90
    %s107 = sphi 0, %s91
  $region4: #{net_forward.11} parent=0 // loop_header_branch
    %12 = sbr.rel (%p10) target = $region8
  $region5: #{net_forward.11} parent=0 // loop_body
    %s14 = ssub.s32 %s9, 1
    %s15 = ssub.s32 %s9, 2
    %s16 = sadd.s32 %s9, 1
    %s17 = ssub.s32 %s9, %s16
    %p18 = scmp.eq.s32.totalorder %s17, 0
    %s20 = sadd.s32 %s19, 1
    %s21 = scalar_select %p18, %s19, %s20
    %p24 = pneg %p18
    %p25 = scmp.eq.s32.totalorder %s9, 1
    %p26 = por %p24, %p25
    %p27 = scmp.ne.s32.totalorder %s19, %s22
    %p28 = scmp.eq.s32.totalorder %s9, 0
    %p29 = por %p27, %p28
    %p30 = scmp.ne.s32.totalorder %s19, %s22
    %p31 = scmp.eq.s32.totalorder %s14, 1
    %p32 = por %p30, %p31
    %p33 = scmp.ne.s32.totalorder %s22, %s23
    %p34 = scmp.eq.s32.totalorder %s14, 0
    %p35 = por %p33, %p34
    %p36 = scmp.ne.s32.totalorder %s22, %s23
    %p37 = scmp.eq.s32.totalorder %s15, 1
    %p38 = por %p36, %p37
    %p40 = scmp.ne.s32.totalorder %s23, %s39
    %p41 = scmp.eq.s32.totalorder %s15, 0
    %p42 = por %p40, %p41
    %s44 = sadd.s32 %s43, 1
    %p47 = scmp.eq.s32.totalorder %s9, 1
    %p48 = scmp.ne.s32.totalorder %s43, %s45
    %p49 = scmp.eq.s32.totalorder %s9, 0
    %p50 = por %p48, %p49
    %p51 = scmp.ne.s32.totalorder %s43, %s45
    %p52 = scmp.eq.s32.totalorder %s14, 1
    %p53 = por %p51, %p52
    %p54 = scmp.ne.s32.totalorder %s45, %s46
    %p55 = scmp.eq.s32.totalorder %s14, 0
    %p56 = por %p54, %p55
    %p57 = scmp.ne.s32.totalorder %s45, %s46
    %p58 = scmp.eq.s32.totalorder %s15, 1
    %p59 = por %p57, %p58
    %p61 = scmp.ne.s32.totalorder %s46, %s60
    %p62 = scmp.eq.s32.totalorder %s15, 0
    %p63 = por %p61, %p62
    %s65 = sadd.s32 %s64, 1
    %p68 = scmp.eq.s32.totalorder %s9, 1
    %p69 = scmp.ne.s32.totalorder %s64, %s66
    %p70 = scmp.eq.s32.totalorder %s9, 0
    %p71 = por %p69, %p70
    %p72 = scmp.ne.s32.totalorder %s64, %s66
    %p73 = scmp.eq.s32.totalorder %s14, 1
    %p74 = por %p72, %p73
    %p75 = scmp.ne.s32.totalorder %s66, %s67
    %p76 = scmp.eq.s32.totalorder %s14, 0
    %p77 = por %p75, %p76
    %p78 = scmp.ne.s32.totalorder %s66, %s67
    %p79 = scmp.eq.s32.totalorder %s15, 1
    %p80 = por %p78, %p79
    %p82 = scmp.ne.s32.totalorder %s67, %s81
    %p83 = scmp.eq.s32.totalorder %s15, 0
    %p84 = por %p82, %p83
    %s85 = ssub.s32 %s9, %s16
    %p86 = scmp.eq.s32.totalorder %s85, 0
    %s88 = sadd.s32 %s87, 1
    %s89 = scalar_select %p86, %s87, %s88
    %p92 = pneg %p86
    %p93 = scmp.eq.s32.totalorder %s9, 1
    %p94 = por %p92, %p93
    %p95 = scmp.ne.s32.totalorder %s87, %s90
    %p96 = scmp.eq.s32.totalorder %s9, 0
    %p97 = por %p95, %p96
    %p98 = scmp.ne.s32.totalorder %s87, %s90
    %p99 = scmp.eq.s32.totalorder %s14, 1
    %p100 = por %p98, %p99
    %p101 = scmp.ne.s32.totalorder %s90, %s91
    %p102 = scmp.eq.s32.totalorder %s14, 0
    %p103 = por %p101, %p102
    %p104 = scmp.ne.s32.totalorder %s90, %s91
    %p105 = scmp.eq.s32.totalorder %s15, 1
    %p106 = por %p104, %p105
    %p108 = scmp.ne.s32.totalorder %s91, %s107
    %p109 = scmp.eq.s32.totalorder %s15, 0
    %p110 = por %p108, %p109
    %p111 = scmp.le.s32.totalorder 1, %s9
    %p112 = scmp.lt.s32.totalorder %s9, 3
    %p113 = pnand %p111, %p112
    %p114 = pneg %p113
    // Predicated region
    $region9: #{net_forward.11} parent=5 // pred_check
      _
    $region10: #{net_forward.11} parent=5 // pred_check_branch
      %116 = sbr.rel (%p113) target = $region12
    $region11: #{net_forward.11} parent=5 // pred_region
      %s117 = ssub.s32 %s9, 1
      // Predicated region
      $region13: #{net_forward.11} parent=11 // pred_check
        %p118 = pneg %p56
      $region14: #{net_forward.11} parent=11 // pred_check_branch
        %120 = sbr.rel (%p118) target = $region16
      $region15: #{net_forward.11} parent=11 // pred_region
        _
      $region16: #{net_forward.11} parent=11 // pred_fallthru
        _
      // Predicated region
      $region17: #{net_forward.11} parent=11 // pred_check
        %p121 = pneg %p77
      $region18: #{net_forward.11} parent=11 // pred_check_branch
        %123 = sbr.rel (%p121) target = $region20
      $region19: #{net_forward.11} parent=11 // pred_region
        _
      $region20: #{net_forward.11} parent=11 // pred_fallthru
        _
    $region12: #{net_forward.11} parent=5 // pred_fallthru
      _
    %p124 = scmp.lt.s32.totalorder %s9, 2
    // Predicated region
    $region21: #{net_forward.11} parent=5 // pred_check
      %p125 = pneg %p124
    $region22: #{net_forward.11} parent=5 // pred_check_branch
      %127 = sbr.rel (%p125) target = $region24
    $region23: #{net_forward.11} parent=5 // pred_region
      // Predicated region
      $region25: #{net_forward.11} parent=23 // pred_check
        %p128 = pneg %p29
      $region26: #{net_forward.11} parent=23 // pred_check_branch
        %130 = sbr.rel (%p128) target = $region28
      $region27: #{net_forward.11} parent=23 // pred_region
        %s131 = smul.u32 2, %s9
        %p132 = scmp.lt.s32.totalorder %s131, 3
        %s133 = scalar_select %p132, %s131, 3
        %s134 = smul.addr %s133, 3
        %s135 = smul.addr %s134, 4
        %s136 = scalar_lea.vmem %s0, %s135
        %s137 = smul.u32 2, %s9
      $region28: #{net_forward.11} parent=23 // pred_fallthru
        _
    $region24: #{net_forward.11} parent=5 // pred_fallthru
      _
    %p138 = scmp.le.s32.totalorder 1, %s9
    %p139 = scmp.lt.s32.totalorder %s9, 3
    %p140 = pnand %p138, %p139
    %p141 = pneg %p140
    // Predicated region
    $region29: #{net_forward.11} parent=5 // pred_check
      _
    $region30: #{net_forward.11} parent=5 // pred_check_branch
      %143 = sbr.rel (%p140) target = $region32
    $region31: #{net_forward.11} parent=5 // pred_region
      %s144 = ssub.s32 %s9, 1
      %s145 = smul.u32 2, %s14
      %p146 = scmp.lt.s32.totalorder %s145, 3
      %s147 = scalar_select %p146, %s145, 3
      %s148 = smul.addr %s147, 3
      %s149 = smul.addr %s148, 4
      %s150 = scalar_lea.vmem %s0, %s149
      %p151 = pneg %p35
      %p152 = pneg %p32
      %p153 = pneg %p56
      %p154 = pneg %p53
      %p155 = pneg %p77
      %p156 = pneg %p74
      %p157 = pneg %p103
      %p158 = pneg %p100
      %s159 = smul.u32 2, %s14
      %p160 = scmp.lt.s32.totalorder %s159, 3
      %s161 = scalar_select %p160, %s159, 3
      %s162 = smul.addr %s161, 4
      %s163 = scalar_lea.vmem %s3, %s162
      %s164 = smul.u32 2, %s14
      %p165 = scmp.lt.s32.totalorder %s164, 3
      %s166 = scalar_select %p165, %s164, 3
      %s167 = smul.addr %s166, 3
      %s168 = smul.addr %s167, 4
      %s169 = scalar_lea.vmem %s0, %s168
      %s170 = smul.u32 2, %s14
      %s171 = smul.u32 2, %s14
      %p172 = scmp.lt.s32.totalorder %s171, 3
      %s173 = scalar_select %p172, %s171, 3
      %s174 = smul.addr %s173, 4
      %s175 = scalar_lea.vmem %s3, %s174
      %s176 = smul.u32 2, %s14
      %v178 = vld [vmem:[%s169] sm:$0xff]
      %v179 = vld [vmem:[%s169 + $0x8] sm:$0xf]
      %v180 = vld [vmem:[%s169 + $0xc] sm:$0xff]
      %v181 = vld [vmem:[%s169 + $0x14] sm:$0xf]
      %v182 = vld [vmem:[%s1] sm:$0xf]
      %v183 = vld [vmem:[%s1 + $0x4] sm:$0xf]
      %v184 = vld [vmem:[%s1 + $0x8] sm:$0xf]
      %v185 = vld [vmem:[%s1 + $0xc] sm:$0xf]
      %v186 = vld [vmem:[%s1 + $0x10] sm:$0xf]
      %v187 = vld [vmem:[%s1 + $0x14] sm:$0xf]
      %v188 = vld [vmem:[%s1 + $0x18] sm:$0xf]
      %v189 = vld [vmem:[%s1 + $0x1c] sm:$0xf]
      %v190 = vld [vmem:[%s1 + $0x20] sm:$0xf]
      %v191 = vld [vmem:[%s1 + $0x24] sm:$0xf]
      %v192 = vld [vmem:[%s1 + $0x28] sm:$0xf]
      %v193 = vld [vmem:[%s1 + $0x2c] sm:$0xf]
      %v194 = vld [vmem:[%s1 + $0x30] sm:$0xf]
      %v195 = vld [vmem:[%s1 + $0x34] sm:$0xf]
      %v196 = vld [vmem:[%s1 + $0x38] sm:$0xf]
      %v197 = vld [vmem:[%s1 + $0x3c] sm:$0xf]
      %v198 = vld [vmem:[%s1 + $0x40] sm:$0xf]
      %v199 = vld [vmem:[%s1 + $0x44] sm:$0xf]
      %v200 = vld [vmem:[%s1 + $0x48] sm:$0xf]
      %v201 = vld [vmem:[%s1 + $0x4c] sm:$0xf]
      %v202 = vld [vmem:[%s1 + $0x50] sm:$0xf]
      %v203 = vld [vmem:[%s1 + $0x54] sm:$0xf]
      %v204 = vld [vmem:[%s1 + $0x58] sm:$0xf]
      %v205 = vld [vmem:[%s1 + $0x5c] sm:$0xf]
      %v206 = vld [vmem:[%s1 + $0x60] sm:$0xf]
      %v207 = vld [vmem:[%s1 + $0x64] sm:$0xf]
      %v208 = vld [vmem:[%s1 + $0x68] sm:$0xf]
      %v209 = vld [vmem:[%s1 + $0x6c] sm:$0xf]
      %v210 = vld [vmem:[%s1 + $0x70] sm:$0xf]
      %v211 = vld [vmem:[%s1 + $0x74] sm:$0xf]
      %v212 = vld [vmem:[%s1 + $0x78] sm:$0xf]
      %v213 = vld [vmem:[%s1 + $0x7c] sm:$0xf]
      %v214 = vld [vmem:[%s1 + $0x80] sm:$0xf]
      %v215 = vld [vmem:[%s1 + $0x84] sm:$0xf]
      %v216 = vld [vmem:[%s1 + $0x88] sm:$0xf]
      %v217 = vld [vmem:[%s1 + $0x8c] sm:$0xf]
      %v218 = vld [vmem:[%s2] sm:$0x1]
      %v220 = vperm.slane %v218, 0
      %v226 = vunpack.c.l.b16 %v178
      %v227 = vunpack.c.h.b16 %v178
      %v228 = vunpack.c.l.b16 %v179
      %v229 = vunpack.c.l.b16 %v180
      %v230 = vunpack.c.h.b16 %v180
      %v231 = vunpack.c.l.b16 %v181
      %v232 = vpack.c.b16 %v229, %v226
      %v233 = vpack.c.b16 %v230, %v227
      %v234 = vpack.c.b16 %v231, %v228
      %v273 = vunpack.c.l.b16 %v182
      %v274 = vunpack.c.l.b16 %v183
      %v275 = vunpack.c.l.b16 %v184
      %v276 = vunpack.c.l.b16 %v185
      %v277 = vunpack.c.l.b16 %v186
      %v278 = vunpack.c.l.b16 %v187
      %v279 = vunpack.c.l.b16 %v188
      %v280 = vunpack.c.l.b16 %v189
      %v281 = vunpack.c.l.b16 %v190
      %v282 = vunpack.c.l.b16 %v191
      %v283 = vunpack.c.l.b16 %v192
      %v284 = vunpack.c.l.b16 %v193
      %v285 = vunpack.c.l.b16 %v194
      %v286 = vunpack.c.l.b16 %v195
      %v287 = vunpack.c.l.b16 %v196
      %v288 = vunpack.c.l.b16 %v197
      %v289 = vunpack.c.l.b16 %v198
      %v290 = vunpack.c.l.b16 %v199
      %v291 = vunpack.c.l.b16 %v200
      %v292 = vunpack.c.l.b16 %v201
      %v293 = vunpack.c.l.b16 %v202
      %v294 = vunpack.c.l.b16 %v203
      %v295 = vunpack.c.l.b16 %v204
      %v296 = vunpack.c.l.b16 %v205
      %v297 = vunpack.c.l.b16 %v206
      %v298 = vunpack.c.l.b16 %v207
      %v299 = vunpack.c.l.b16 %v208
      %v300 = vunpack.c.l.b16 %v209
      %v301 = vunpack.c.l.b16 %v210
      %v302 = vunpack.c.l.b16 %v211
      %v303 = vunpack.c.l.b16 %v212
      %v304 = vunpack.c.l.b16 %v213
      %v305 = vunpack.c.l.b16 %v214
      %v306 = vunpack.c.l.b16 %v215
      %v307 = vunpack.c.l.b16 %v216
      %v308 = vunpack.c.l.b16 %v217
      %v309 = vpack.c.b16 %v274, %v273
      %v310 = vpack.c.b16 %v276, %v275
      %v311 = vpack.c.b16 %v278, %v277
      %v312 = vpack.c.b16 %v280, %v279
      %v313 = vpack.c.b16 %v282, %v281
      %v314 = vpack.c.b16 %v284, %v283
      %v315 = vpack.c.b16 %v286, %v285
      %v316 = vpack.c.b16 %v288, %v287
      %v317 = vpack.c.b16 %v290, %v289
      %v318 = vpack.c.b16 %v292, %v291
      %v319 = vpack.c.b16 %v294, %v293
      %v320 = vpack.c.b16 %v296, %v295
      %v321 = vpack.c.b16 %v298, %v297
      %v322 = vpack.c.b16 %v300, %v299
      %v323 = vpack.c.b16 %v302, %v301
      %v324 = vpack.c.b16 %v304, %v303
      %v325 = vpack.c.b16 %v306, %v305
      %v326 = vpack.c.b16 %v308, %v307
      %vm345 = vcmask 261120
      %v347 = vsel %vm345, %v234, 0
      %349 = vmatpush.bf16.msra.mxu0 %v316
      %350 = vmatpush.bf16.msra.mxu0 %v315
      %351 = vmatpush.bf16.msra.mxu0 %v314
      %352 = vmatpush.bf16.msra.mxu0 %v313
      %353 = vmatpush.bf16.msra.mxu0 %v312
      %354 = vmatpush.bf16.msra.mxu0 %v311
      %355 = vmatpush.bf16.msra.mxu0 %v310
      %356 = vmatpush.bf16.msra.mxu0 %v309
      %357 = vmatmul.bf16.gmra.mxu0 %v232
      %v358 = vpop.f32.mrf.mxu0
      %v359 = vadd.f32 %v220, %v358
      %v360 = vpop.f32.mrf.mxu0
      %v361 = vadd.f32 %v220, %v360
      %362 = vdwg.mxu0
      %363 = vmatpush.bf16.msra.mxu0 %v324
      %364 = vmatpush.bf16.msra.mxu0 %v323
      %365 = vmatpush.bf16.msra.mxu0 %v322
      %366 = vmatpush.bf16.msra.mxu0 %v321
      %367 = vmatpush.bf16.msra.mxu0 %v320
      %368 = vmatpush.bf16.msra.mxu0 %v319
      %369 = vmatpush.bf16.msra.mxu0 %v318
      %370 = vmatpush.bf16.msra.mxu0 %v317
      %371 = vmatmul.bf16.gmra.mxu0 %v233
      %v372 = vpop.f32.mrf.mxu0
      %v373 = vadd.f32 %v359, %v372
      %v374 = vpop.f32.mrf.mxu0
      %v375 = vadd.f32 %v361, %v374
      %376 = vdwg.mxu0
      %377 = vmatpush.bf16.msra.mxu0 0
      %378 = vmatpush.bf16.msra.mxu0 0
      %379 = vmatpush.bf16.msra.mxu0 0
      %380 = vmatpush.bf16.msra.mxu0 0
      %381 = vmatpush.bf16.msra.mxu0 0
      %382 = vmatpush.bf16.msra.mxu0 0
      %383 = vmatpush.bf16.msra.mxu0 %v326
      %384 = vmatpush.bf16.msra.mxu0 %v325
      %385 = vmatmul.bf16.gmra.mxu0 %v347
      %v386 = vpop.f32.mrf.mxu0
      %v387 = vadd.f32 %v373, %v386
      %v388 = vpop.f32.mrf.mxu0
      %v389 = vadd.f32 %v375, %v388
      %390 = vdwg.mxu0
      %v391 = vmax.f32 %v387, 0.0
      %v392 = vmax.f32 %v389, 0.0
      %v393 = vpack.c.bf16 %v391, %v391
      %v394 = vpack.c.bf16 %v392, %v392
      %395 = vst [vmem:[%s175] sm:$0xf] %v393
      %396 = vst [vmem:[%s175 + $0x4] sm:$0xf] %v394
      %s397 = smul.u32 2, %s14
      %p398 = scmp.lt.s32.totalorder %s397, 3
      %s399 = scalar_select %p398, %s397, 3
      %s400 = smul.addr %s399, 4
      %s401 = scalar_lea.vmem %s3, %s400
      // Predicated region
      $region33: #{net_forward.11} parent=31 // pred_check
        %p402 = pneg %p100
      $region34: #{net_forward.11} parent=31 // pred_check_branch
        %404 = sbr.rel (%p402) target = $region36
      $region35: #{net_forward.11} parent=31 // pred_region
        %s405 = smul.u32 2, %s14
      $region36: #{net_forward.11} parent=31 // pred_fallthru
        _
    $region32: #{net_forward.11} parent=5 // pred_fallthru
      _
    %p406 = scmp.le.s32.totalorder 2, %s9
    // Predicated region
    $region37: #{net_forward.11} parent=5 // pred_check
      %p407 = pneg %p406
    $region38: #{net_forward.11} parent=5 // pred_check_branch
      %409 = sbr.rel (%p407) target = $region40
    $region39: #{net_forward.11} parent=5 // pred_region
      %s410 = ssub.s32 %s9, 2
      // Predicated region
      $region41: #{net_forward.11} parent=39 // pred_check
        %p411 = pneg %p106
      $region42: #{net_forward.11} parent=39 // pred_check_branch
        %413 = sbr.rel (%p411) target = $region44
      $region43: #{net_forward.11} parent=39 // pred_region
        %s414 = smul.u32 2, %s15
        %p415 = scmp.lt.s32.totalorder %s414, 3
        %s416 = scalar_select %p415, %s414, 3
        %s417 = smul.addr %s416, 4
        %s418 = scalar_lea.vmem %s3, %s417
      $region44: #{net_forward.11} parent=39 // pred_fallthru
        _
    $region40: #{net_forward.11} parent=5 // pred_fallthru
      _
  $region6: #{net_forward.11} parent=0 // loop_footer
    %s13 = sadd.s32 1, %s9
  $region7: #{net_forward.11} parent=0 // loop_footer_branch
    %8 = sbr.rel target = $region3
  $region8: #{net_forward.11} parent=0 // loop_exit
    _

// kernel: net_forward.13
$region0: #{net_forward.13}
  #allocation0 [shape = 'u32[]', space=smem, size = 0x4, offset = 0x4, fixed_abs, tag = 'smem constant byte address 0x4 - core index']
  #allocation1 [shape = 'u32[72,128]{1,0:T(1,128)}', space=vmem, size = 0x9000, scoped, tag = 'internal scratch']
  %s0 = inlined_call_operand.vmem [shape: bf16[2,2048], index: 0, kind: input, shape index: {}]
  %s1 = inlined_call_operand.vmem [shape: bf16[2048,128], index: 1, kind: input, shape index: {}]
  %s2 = inlined_call_operand.vmem [shape: f32[1,128], index: 2, kind: input, shape index: {}]
  %s3 = inlined_call_operand.hbm [shape: f32[2,128], index: 3, kind: output, shape index: {}]
  %s4 = sld [smem:[#allocation0]]
  $region22: #{net_forward.13} parent=0
    _
  %s6 = ssub.s32 1, %s4
  %s7 = scalar_select 0, %s6, %s4
  $region1: #{net_forward.13} parent=0
    #allocation2 [shape = 'u8[1024]{0}', space=vmem, size = 0x400, scoped, tag = 'output window, operand 0, single buffered']
    #allocation3 [shape = 's32[1]{0}', space=sflag, size = 0x4, scoped, tag = 'scoped memory for net_forward.13']
    %8 = vsyncpa [#allocation3], 0
    // Predicated region
    $region2: #{net_forward.13} parent=1 // pred_check
      _
    $region3: #{net_forward.13} parent=1 // pred_check_branch
      %10 = sbr.rel (0) target = $region5
    $region4: #{net_forward.13} parent=1 // pred_region
      _
    $region5: #{net_forward.13} parent=1 // pred_fallthru
      _
    // Predicated region
    $region6: #{net_forward.13} parent=1 // pred_check
      _
    $region7: #{net_forward.13} parent=1 // pred_check_branch
      %12 = sbr.rel (0) target = $region9
    $region8: #{net_forward.13} parent=1 // pred_region
      _
    $region9: #{net_forward.13} parent=1 // pred_fallthru
      _
    // Predicated region
    $region10: #{net_forward.13} parent=1 // pred_check
      _
    $region11: #{net_forward.13} parent=1 // pred_check_branch
      %14 = sbr.rel (0) target = $region13
    $region12: #{net_forward.13} parent=1 // pred_region
      _
    $region13: #{net_forward.13} parent=1 // pred_fallthru
      _
    %v15 = vld [vmem:[%s0] sm:$0xff]
    %v16 = vld [vmem:[%s0 + $0x8] sm:$0xff]
    %v17 = vld [vmem:[%s1] sm:$0xf]
    %v18 = vld [vmem:[%s1 + $0x4] sm:$0xf]
    %v19 = vld [vmem:[%s1 + $0x8] sm:$0xf]
    %v20 = vld [vmem:[%s1 + $0xc] sm:$0xf]
    %v21 = vld [vmem:[%s1 + $0x10] sm:$0xf]
    %v22 = vld [vmem:[%s1 + $0x14] sm:$0xf]
    %v23 = vld [vmem:[%s1 + $0x18] sm:$0xf]
    %v24 = vld [vmem:[%s1 + $0x1c] sm:$0xf]
    %v25 = vld [vmem:[%s1 + $0x20] sm:$0xf]
    %v26 = vld [vmem:[%s1 + $0x24] sm:$0xf]
    %v27 = vld [vmem:[%s1 + $0x28] sm:$0xf]
    %v28 = vld [vmem:[%s1 + $0x2c] sm:$0xf]
    %v29 = vld [vmem:[%s1 + $0x30] sm:$0xf]
    %v30 = vld [vmem:[%s1 + $0x34] sm:$0xf]
    %v31 = vld [vmem:[%s1 + $0x38] sm:$0xf]
    %v32 = vld [vmem:[%s1 + $0x3c] sm:$0xf]
    %v33 = vld [vmem:[%s1 + $0x40] sm:$0xf]
    %v34 = vld [vmem:[%s1 + $0x44] sm:$0xf]
    %v35 = vld [vmem:[%s1 + $0x48] sm:$0xf]
    %v36 = vld [vmem:[%s1 + $0x4c] sm:$0xf]
    %v37 = vld [vmem:[%s1 + $0x50] sm:$0xf]
    %v38 = vld [vmem:[%s1 + $0x54] sm:$0xf]
    %v39 = vld [vmem:[%s1 + $0x58] sm:$0xf]
    %v40 = vld [vmem:[%s1 + $0x5c] sm:$0xf]
    %v41 = vld [vmem:[%s1 + $0x60] sm:$0xf]
    %v42 = vld [vmem:[%s1 + $0x64] sm:$0xf]
    %v43 = vld [vmem:[%s1 + $0x68] sm:$0xf]
    %v44 = vld [vmem:[%s1 + $0x6c] sm:$0xf]
    %v45 = vld [vmem:[%s1 + $0x70] sm:$0xf]
    %v46 = vld [vmem:[%s1 + $0x74] sm:$0xf]
    %v47 = vld [vmem:[%s1 + $0x78] sm:$0xf]
    %v48 = vld [vmem:[%s1 + $0x7c] sm:$0xf]
    %v49 = vld [vmem:[%s1 + $0x80] sm:$0xf]
    %v50 = vld [vmem:[%s1 + $0x84] sm:$0xf]
    %v51 = vld [vmem:[%s1 + $0x88] sm:$0xf]
    %v52 = vld [vmem:[%s1 + $0x8c] sm:$0xf]
    %v53 = vld [vmem:[%s1 + $0x90] sm:$0xf]
    %v54 = vld [vmem:[%s1 + $0x94] sm:$0xf]
    %v55 = vld [vmem:[%s1 + $0x98] sm:$0xf]
    %v56 = vld [vmem:[%s1 + $0x9c] sm:$0xf]
    %v57 = vld [vmem:[%s1 + $0xa0] sm:$0xf]
    %v58 = vld [vmem:[%s1 + $0xa4] sm:$0xf]
    %v59 = vld [vmem:[%s1 + $0xa8] sm:$0xf]
    %v60 = vld [vmem:[%s1 + $0xac] sm:$0xf]
    %v61 = vld [vmem:[%s1 + $0xb0] sm:$0xf]
    %v62 = vld [vmem:[%s1 + $0xb4] sm:$0xf]
    %v63 = vld [vmem:[%s1 + $0xb8] sm:$0xf]
    %v64 = vld [vmem:[%s1 + $0xbc] sm:$0xf]
    %v65 = vld [vmem:[%s1 + $0xc0] sm:$0xf]
    %v66 = vld [vmem:[%s1 + $0xc4] sm:$0xf]
    %v67 = vld [vmem:[%s1 + $0xc8] sm:$0xf]
    %v68 = vld [vmem:[%s1 + $0xcc] sm:$0xf]
    %v69 = vld [vmem:[%s1 + $0xd0] sm:$0xf]
    %v70 = vld [vmem:[%s1 + $0xd4] sm:$0xf]
    %v71 = vld [vmem:[%s1 + $0xd8] sm:$0xf]
    %v72 = vld [vmem:[%s1 + $0xdc] sm:$0xf]
    %v73 = vld [vmem:[%s1 + $0xe0] sm:$0xf]
    %v74 = vld [vmem:[%s1 + $0xe4] sm:$0xf]
    %v75 = vld [vmem:[%s1 + $0xe8] sm:$0xf]
    %v76 = vld [vmem:[%s1 + $0xec] sm:$0xf]
    %v77 = vld [vmem:[%s1 + $0xf0] sm:$0xf]
    %v78 = vld [vmem:[%s1 + $0xf4] sm:$0xf]
    %v79 = vld [vmem:[%s1 + $0xf8] sm:$0xf]
    %v80 = vld [vmem:[%s1 + $0xfc] sm:$0xf]
    %v81 = vld [vmem:[%s1 + $0x100] sm:$0xf]
    %v82 = vld [vmem:[%s1 + $0x104] sm:$0xf]
    %v83 = vld [vmem:[%s1 + $0x108] sm:$0xf]
    %v84 = vld [vmem:[%s1 + $0x10c] sm:$0xf]
    %v85 = vld [vmem:[%s1 + $0x110] sm:$0xf]
    %v86 = vld [vmem:[%s1 + $0x114] sm:$0xf]
    %v87 = vld [vmem:[%s1 + $0x118] sm:$0xf]
    %v88 = vld [vmem:[%s1 + $0x11c] sm:$0xf]
    %v89 = vld [vmem:[%s1 + $0x120] sm:$0xf]
    %v90 = vld [vmem:[%s1 + $0x124] sm:$0xf]
    %v91 = vld [vmem:[%s1 + $0x128] sm:$0xf]
    %v92 = vld [vmem:[%s1 + $0x12c] sm:$0xf]
    %v93 = vld [vmem:[%s1 + $0x130] sm:$0xf]
    %v94 = vld [vmem:[%s1 + $0x134] sm:$0xf]
    %v95 = vld [vmem:[%s1 + $0x138] sm:$0xf]
    %v96 = vld [vmem:[%s1 + $0x13c] sm:$0xf]
    %v97 = vld [vmem:[%s1 + $0x140] sm:$0xf]
    %v98 = vld [vmem:[%s1 + $0x144] sm:$0xf]
    %v99 = vld [vmem:[%s1 + $0x148] sm:$0xf]
    %v100 = vld [vmem:[%s1 + $0x14c] sm:$0xf]
    %v101 = vld [vmem:[%s1 + $0x150] sm:$0xf]
    %v102 = vld [vmem:[%s1 + $0x154] sm:$0xf]
    %v103 = vld [vmem:[%s1 + $0x158] sm:$0xf]
    %v104 = vld [vmem:[%s1 + $0x15c] sm:$0xf]
    %v105 = vld [vmem:[%s1 + $0x160] sm:$0xf]
    %v106 = vld [vmem:[%s1 + $0x164] sm:$0xf]
    %v107 = vld [vmem:[%s1 + $0x168] sm:$0xf]
    %v108 = vld [vmem:[%s1 + $0x16c] sm:$0xf]
    %v109 = vld [vmem:[%s1 + $0x170] sm:$0xf]
    %v110 = vld [vmem:[%s1 + $0x174] sm:$0xf]
    %v111 = vld [vmem:[%s1 + $0x178] sm:$0xf]
    %v112 = vld [vmem:[%s1 + $0x17c] sm:$0xf]
    %v113 = vld [vmem:[%s1 + $0x180] sm:$0xf]
    %v114 = vld [vmem:[%s1 + $0x184] sm:$0xf]
    %v115 = vld [vmem:[%s1 + $0x188] sm:$0xf]
    %v116 = vld [vmem:[%s1 + $0x18c] sm:$0xf]
    %v117 = vld [vmem:[%s1 + $0x190] sm:$0xf]
    %v118 = vld [vmem:[%s1 + $0x194] sm:$0xf]
    %v119 = vld [vmem:[%s1 + $0x198] sm:$0xf]
    %v120 = vld [vmem:[%s1 + $0x19c] sm:$0xf]
    %v121 = vld [vmem:[%s1 + $0x1a0] sm:$0xf]
    %v122 = vld [vmem:[%s1 + $0x1a4] sm:$0xf]
    %v123 = vld [vmem:[%s1 + $0x1a8] sm:$0xf]
    %v124 = vld [vmem:[%s1 + $0x1ac] sm:$0xf]
    %v125 = vld [vmem:[%s1 + $0x1b0] sm:$0xf]
    %v126 = vld [vmem:[%s1 + $0x1b4] sm:$0xf]
    %v127 = vld [vmem:[%s1 + $0x1b8] sm:$0xf]
    %v128 = vld [vmem:[%s1 + $0x1bc] sm:$0xf]
    %v129 = vld [vmem:[%s1 + $0x1c0] sm:$0xf]
    %v130 = vld [vmem:[%s1 + $0x1c4] sm:$0xf]
    %v131 = vld [vmem:[%s1 + $0x1c8] sm:$0xf]
    %v132 = vld [vmem:[%s1 + $0x1cc] sm:$0xf]
    %v133 = vld [vmem:[%s1 + $0x1d0] sm:$0xf]
    %v134 = vld [vmem:[%s1 + $0x1d4] sm:$0xf]
    %v135 = vld [vmem:[%s1 + $0x1d8] sm:$0xf]
    %v136 = vld [vmem:[%s1 + $0x1dc] sm:$0xf]
    %v137 = vld [vmem:[%s1 + $0x1e0] sm:$0xf]
    %v138 = vld [vmem:[%s1 + $0x1e4] sm:$0xf]
    %v139 = vld [vmem:[%s1 + $0x1e8] sm:$0xf]
    %v140 = vld [vmem:[%s1 + $0x1ec] sm:$0xf]
    %v141 = vld [vmem:[%s1 + $0x1f0] sm:$0xf]
    %v142 = vld [vmem:[%s1 + $0x1f4] sm:$0xf]
    %v143 = vld [vmem:[%s1 + $0x1f8] sm:$0xf]
    %v144 = vld [vmem:[%s1 + $0x1fc] sm:$0xf]
    %v145 = vld [vmem:[%s1 + $0x200] sm:$0xf]
    %v146 = vld [vmem:[%s1 + $0x204] sm:$0xf]
    %v147 = vld [vmem:[%s1 + $0x208] sm:$0xf]
    %v148 = vld [vmem:[%s1 + $0x20c] sm:$0xf]
    %v149 = vld [vmem:[%s1 + $0x210] sm:$0xf]
    %v150 = vld [vmem:[%s1 + $0x214] sm:$0xf]
    %v151 = vld [vmem:[%s1 + $0x218] sm:$0xf]
    %v152 = vld [vmem:[%s1 + $0x21c] sm:$0xf]
    %v153 = vld [vmem:[%s1 + $0x220] sm:$0xf]
    %v154 = vld [vmem:[%s1 + $0x224] sm:$0xf]
    %v155 = vld [vmem:[%s1 + $0x228] sm:$0xf]
    %v156 = vld [vmem:[%s1 + $0x22c] sm:$0xf]
    %v157 = vld [vmem:[%s1 + $0x230] sm:$0xf]
    %v158 = vld [vmem:[%s1 + $0x234] sm:$0xf]
    %v159 = vld [vmem:[%s1 + $0x238] sm:$0xf]
    %v160 = vld [vmem:[%s1 + $0x23c] sm:$0xf]
    %v161 = vld [vmem:[%s1 + $0x240] sm:$0xf]
    %v162 = vld [vmem:[%s1 + $0x244] sm:$0xf]
    %v163 = vld [vmem:[%s1 + $0x248] sm:$0xf]
    %v164 = vld [vmem:[%s1 + $0x24c] sm:$0xf]
    %v165 = vld [vmem:[%s1 + $0x250] sm:$0xf]
    %v166 = vld [vmem:[%s1 + $0x254] sm:$0xf]
    %v167 = vld [vmem:[%s1 + $0x258] sm:$0xf]
    %v168 = vld [vmem:[%s1 + $0x25c] sm:$0xf]
    %v169 = vld [vmem:[%s1 + $0x260] sm:$0xf]
    %v170 = vld [vmem:[%s1 + $0x264] sm:$0xf]
    %v171 = vld [vmem:[%s1 + $0x268] sm:$0xf]
    %v172 = vld [vmem:[%s1 + $0x26c] sm:$0xf]
    %v173 = vld [vmem:[%s1 + $0x270] sm:$0xf]
    %v174 = vld [vmem:[%s1 + $0x274] sm:$0xf]
    %v175 = vld [vmem:[%s1 + $0x278] sm:$0xf]
    %v176 = vld [vmem:[%s1 + $0x27c] sm:$0xf]
    %v177 = vld [vmem:[%s1 + $0x280] sm:$0xf]
    %v178 = vld [vmem:[%s1 + $0x284] sm:$0xf]
    %v179 = vld [vmem:[%s1 + $0x288] sm:$0xf]
    %v180 = vld [vmem:[%s1 + $0x28c] sm:$0xf]
    %v181 = vld [vmem:[%s1 + $0x290] sm:$0xf]
    %v182 = vld [vmem:[%s1 + $0x294] sm:$0xf]
    %v183 = vld [vmem:[%s1 + $0x298] sm:$0xf]
    %v184 = vld [vmem:[%s1 + $0x29c] sm:$0xf]
    %v185 = vld [vmem:[%s1 + $0x2a0] sm:$0xf]
    %v186 = vld [vmem:[%s1 + $0x2a4] sm:$0xf]
    %v187 = vld [vmem:[%s1 + $0x2a8] sm:$0xf]
    %v188 = vld [vmem:[%s1 + $0x2ac] sm:$0xf]
    %v189 = vld [vmem:[%s1 + $0x2b0] sm:$0xf]
    %v190 = vld [vmem:[%s1 + $0x2b4] sm:$0xf]
    %v191 = vld [vmem:[%s1 + $0x2b8] sm:$0xf]
    %v192 = vld [vmem:[%s1 + $0x2bc] sm:$0xf]
    %v193 = vld [vmem:[%s1 + $0x2c0] sm:$0xf]
    %v194 = vld [vmem:[%s1 + $0x2c4] sm:$0xf]
    %v195 = vld [vmem:[%s1 + $0x2c8] sm:$0xf]
    %v196 = vld [vmem:[%s1 + $0x2cc] sm:$0xf]
    %v197 = vld [vmem:[%s1 + $0x2d0] sm:$0xf]
    %v198 = vld [vmem:[%s1 + $0x2d4] sm:$0xf]
    %v199 = vld [vmem:[%s1 + $0x2d8] sm:$0xf]
    %v200 = vld [vmem:[%s1 + $0x2dc] sm:$0xf]
    %v201 = vld [vmem:[%s1 + $0x2e0] sm:$0xf]
    %v202 = vld [vmem:[%s1 + $0x2e4] sm:$0xf]
    %v203 = vld [vmem:[%s1 + $0x2e8] sm:$0xf]
    %v204 = vld [vmem:[%s1 + $0x2ec] sm:$0xf]
    %v205 = vld [vmem:[%s1 + $0x2f0] sm:$0xf]
    %v206 = vld [vmem:[%s1 + $0x2f4] sm:$0xf]
    %v207 = vld [vmem:[%s1 + $0x2f8] sm:$0xf]
    %v208 = vld [vmem:[%s1 + $0x2fc] sm:$0xf]
    %v209 = vld [vmem:[%s1 + $0x300] sm:$0xf]
    %v210 = vld [vmem:[%s1 + $0x304] sm:$0xf]
    %v211 = vld [vmem:[%s1 + $0x308] sm:$0xf]
    %v212 = vld [vmem:[%s1 + $0x30c] sm:$0xf]
    %v213 = vld [vmem:[%s1 + $0x310] sm:$0xf]
    %v214 = vld [vmem:[%s1 + $0x314] sm:$0xf]
    %v215 = vld [vmem:[%s1 + $0x318] sm:$0xf]
    %v216 = vld [vmem:[%s1 + $0x31c] sm:$0xf]
    %v217 = vld [vmem:[%s1 + $0x320] sm:$0xf]
    %v218 = vld [vmem:[%s1 + $0x324] sm:$0xf]
    %v219 = vld [vmem:[%s1 + $0x328] sm:$0xf]
    %v220 = vld [vmem:[%s1 + $0x32c] sm:$0xf]
    %v221 = vld [vmem:[%s1 + $0x330] sm:$0xf]
    %v222 = vld [vmem:[%s1 + $0x334] sm:$0xf]
    %v223 = vld [vmem:[%s1 + $0x338] sm:$0xf]
    %v224 = vld [vmem:[%s1 + $0x33c] sm:$0xf]
    %v225 = vld [vmem:[%s1 + $0x340] sm:$0xf]
    %v226 = vld [vmem:[%s1 + $0x344] sm:$0xf]
    %v227 = vld [vmem:[%s1 + $0x348] sm:$0xf]
    %v228 = vld [vmem:[%s1 + $0x34c] sm:$0xf]
    %v229 = vld [vmem:[%s1 + $0x350] sm:$0xf]
    %v230 = vld [vmem:[%s1 + $0x354] sm:$0xf]
    %v231 = vld [vmem:[%s1 + $0x358] sm:$0xf]
    %v232 = vld [vmem:[%s1 + $0x35c] sm:$0xf]
    %v233 = vld [vmem:[%s1 + $0x360] sm:$0xf]
    %v234 = vld [vmem:[%s1 + $0x364] sm:$0xf]
    %v235 = vld [vmem:[%s1 + $0x368] sm:$0xf]
    %v236 = vld [vmem:[%s1 + $0x36c] sm:$0xf]
    %v237 = vld [vmem:[%s1 + $0x370] sm:$0xf]
    %v238 = vld [vmem:[%s1 + $0x374] sm:$0xf]
    %v239 = vld [vmem:[%s1 + $0x378] sm:$0xf]
    %v240 = vld [vmem:[%s1 + $0x37c] sm:$0xf]
    %v241 = vld [vmem:[%s1 + $0x380] sm:$0xf]
    %v242 = vld [vmem:[%s1 + $0x384] sm:$0xf]
    %v243 = vld [vmem:[%s1 + $0x388] sm:$0xf]
    %v244 = vld [vmem:[%s1 + $0x38c] sm:$0xf]
    %v245 = vld [vmem:[%s1 + $0x390] sm:$0xf]
    %v246 = vld [vmem:[%s1 + $0x394] sm:$0xf]
    %v247 = vld [vmem:[%s1 + $0x398] sm:$0xf]
    %v248 = vld [vmem:[%s1 + $0x39c] sm:$0xf]
    %v249 = vld [vmem:[%s1 + $0x3a0] sm:$0xf]
    %v250 = vld [vmem:[%s1 + $0x3a4] sm:$0xf]
    %v251 = vld [vmem:[%s1 + $0x3a8] sm:$0xf]
    %v252 = vld [vmem:[%s1 + $0x3ac] sm:$0xf]
    %v253 = vld [vmem:[%s1 + $0x3b0] sm:$0xf]
    %v254 = vld [vmem:[%s1 + $0x3b4] sm:$0xf]
    %v255 = vld [vmem:[%s1 + $0x3b8] sm:$0xf]
    %v256 = vld [vmem:[%s1 + $0x3bc] sm:$0xf]
    %v257 = vld [vmem:[%s1 + $0x3c0] sm:$0xf]
    %v258 = vld [vmem:[%s1 + $0x3c4] sm:$0xf]
    %v259 = vld [vmem:[%s1 + $0x3c8] sm:$0xf]
    %v260 = vld [vmem:[%s1 + $0x3cc] sm:$0xf]
    %v261 = vld [vmem:[%s1 + $0x3d0] sm:$0xf]
    %v262 = vld [vmem:[%s1 + $0x3d4] sm:$0xf]
    %v263 = vld [vmem:[%s1 + $0x3d8] sm:$0xf]
    %v264 = vld [vmem:[%s1 + $0x3dc] sm:$0xf]
    %v265 = vld [vmem:[%s1 + $0x3e0] sm:$0xf]
    %v266 = vld [vmem:[%s1 + $0x3e4] sm:$0xf]
    %v267 = vld [vmem:[%s1 + $0x3e8] sm:$0xf]
    %v268 = vld [vmem:[%s1 + $0x3ec] sm:$0xf]
    %v269 = vld [vmem:[%s1 + $0x3f0] sm:$0xf]
    %v270 = vld [vmem:[%s1 + $0x3f4] sm:$0xf]
    %v271 = vld [vmem:[%s1 + $0x3f8] sm:$0xf]
    %v272 = vld [vmem:[%s1 + $0x3fc] sm:$0xf]
    %v273 = vld [vmem:[%s2] sm:$0x1]
    %v275 = vperm.slane %v273, 0
    %278 = vst [vmem:[#allocation1] ss:$9 sm:$0xff] %v15
    %v279 = vld [vmem:[#allocation1] sm:$0xff]
    %v280 = vld [vmem:[#allocation1 + $0x9] sm:$0xff]
    %v281 = vld [vmem:[#allocation1 + $0x12] sm:$0xff]
    %v282 = vld [vmem:[#allocation1 + $0x1b] sm:$0xff]
    %v283 = vld [vmem:[#allocation1 + $0x24] sm:$0xff]
    %v284 = vld [vmem:[#allocation1 + $0x2d] sm:$0xff]
    %v285 = vld [vmem:[#allocation1 + $0x36] sm:$0xff]
    %v286 = vld [vmem:[#allocation1 + $0x3f] sm:$0xff]
    %288 = vst [vmem:[#allocation1] ss:$9 sm:$0xff] %v16
    %v289 = vld [vmem:[#allocation1] sm:$0xff]
    %v290 = vld [vmem:[#allocation1 + $0x9] sm:$0xff]
    %v291 = vld [vmem:[#allocation1 + $0x12] sm:$0xff]
    %v292 = vld [vmem:[#allocation1 + $0x1b] sm:$0xff]
    %v293 = vld [vmem:[#allocation1 + $0x24] sm:$0xff]
    %v294 = vld [vmem:[#allocation1 + $0x2d] sm:$0xff]
    %v295 = vld [vmem:[#allocation1 + $0x36] sm:$0xff]
    %v296 = vld [vmem:[#allocation1 + $0x3f] sm:$0xff]
    %v569 = vunpack.c.l.b16 %v17
    %v570 = vunpack.c.l.b16 %v18
    %v571 = vunpack.c.l.b16 %v19
    %v572 = vunpack.c.l.b16 %v20
    %v573 = vunpack.c.l.b16 %v21
    %v574 = vunpack.c.l.b16 %v22
    %v575 = vunpack.c.l.b16 %v23
    %v576 = vunpack.c.l.b16 %v24
    %v577 = vunpack.c.l.b16 %v25
    %v578 = vunpack.c.l.b16 %v26
    %v579 = vunpack.c.l.b16 %v27
    %v580 = vunpack.c.l.b16 %v28
    %v581 = vunpack.c.l.b16 %v29
    %v582 = vunpack.c.l.b16 %v30
    %v583 = vunpack.c.l.b16 %v31
    %v584 = vunpack.c.l.b16 %v32
    %v585 = vunpack.c.l.b16 %v33
    %v586 = vunpack.c.l.b16 %v34
    %v587 = vunpack.c.l.b16 %v35
    %v588 = vunpack.c.l.b16 %v36
    %v589 = vunpack.c.l.b16 %v37
    %v590 = vunpack.c.l.b16 %v38
    %v591 = vunpack.c.l.b16 %v39
    %v592 = vunpack.c.l.b16 %v40
    %v593 = vunpack.c.l.b16 %v41
    %v594 = vunpack.c.l.b16 %v42
    %v595 = vunpack.c.l.b16 %v43
    %v596 = vunpack.c.l.b16 %v44
    %v597 = vunpack.c.l.b16 %v45
    %v598 = vunpack.c.l.b16 %v46
    %v599 = vunpack.c.l.b16 %v47
    %v600 = vunpack.c.l.b16 %v48
    %v601 = vunpack.c.l.b16 %v49
    %v602 = vunpack.c.l.b16 %v50
    %v603 = vunpack.c.l.b16 %v51
    %v604 = vunpack.c.l.b16 %v52
    %v605 = vunpack.c.l.b16 %v53
    %v606 = vunpack.c.l.b16 %v54
    %v607 = vunpack.c.l.b16 %v55
    %v608 = vunpack.c.l.b16 %v56
    %v609 = vunpack.c.l.b16 %v57
    %v610 = vunpack.c.l.b16 %v58
    %v611 = vunpack.c.l.b16 %v59
    %v612 = vunpack.c.l.b16 %v60
    %v613 = vunpack.c.l.b16 %v61
    %v614 = vunpack.c.l.b16 %v62
    %v615 = vunpack.c.l.b16 %v63
    %v616 = vunpack.c.l.b16 %v64
    %v617 = vunpack.c.l.b16 %v65
    %v618 = vunpack.c.l.b16 %v66
    %v619 = vunpack.c.l.b16 %v67
    %v620 = vunpack.c.l.b16 %v68
    %v621 = vunpack.c.l.b16 %v69
    %v622 = vunpack.c.l.b16 %v70
    %v623 = vunpack.c.l.b16 %v71
    %v624 = vunpack.c.l.b16 %v72
    %v625 = vunpack.c.l.b16 %v73
    %v626 = vunpack.c.l.b16 %v74
    %v627 = vunpack.c.l.b16 %v75
    %v628 = vunpack.c.l.b16 %v76
    %v629 = vunpack.c.l.b16 %v77
    %v630 = vunpack.c.l.b16 %v78
    %v631 = vunpack.c.l.b16 %v79
    %v632 = vunpack.c.l.b16 %v80
    %v633 = vunpack.c.l.b16 %v81
    %v634 = vunpack.c.l.b16 %v82
    %v635 = vunpack.c.l.b16 %v83
    %v636 = vunpack.c.l.b16 %v84
    %v637 = vunpack.c.l.b16 %v85
    %v638 = vunpack.c.l.b16 %v86
    %v639 = vunpack.c.l.b16 %v87
    %v640 = vunpack.c.l.b16 %v88
    %v641 = vunpack.c.l.b16 %v89
    %v642 = vunpack.c.l.b16 %v90
    %v643 = vunpack.c.l.b16 %v91
    %v644 = vunpack.c.l.b16 %v92
    %v645 = vunpack.c.l.b16 %v93
    %v646 = vunpack.c.l.b16 %v94
    %v647 = vunpack.c.l.b16 %v95
    %v648 = vunpack.c.l.b16 %v96
    %v649 = vunpack.c.l.b16 %v97
    %v650 = vunpack.c.l.b16 %v98
    %v651 = vunpack.c.l.b16 %v99
    %v652 = vunpack.c.l.b16 %v100
    %v653 = vunpack.c.l.b16 %v101
    %v654 = vunpack.c.l.b16 %v102
    %v655 = vunpack.c.l.b16 %v103
    %v656 = vunpack.c.l.b16 %v104
    %v657 = vunpack.c.l.b16 %v105
    %v658 = vunpack.c.l.b16 %v106
    %v659 = vunpack.c.l.b16 %v107
    %v660 = vunpack.c.l.b16 %v108
    %v661 = vunpack.c.l.b16 %v109
    %v662 = vunpack.c.l.b16 %v110
    %v663 = vunpack.c.l.b16 %v111
    %v664 = vunpack.c.l.b16 %v112
    %v665 = vunpack.c.l.b16 %v113
    %v666 = vunpack.c.l.b16 %v114
    %v667 = vunpack.c.l.b16 %v115
    %v668 = vunpack.c.l.b16 %v116
    %v669 = vunpack.c.l.b16 %v117
    %v670 = vunpack.c.l.b16 %v118
    %v671 = vunpack.c.l.b16 %v119
    %v672 = vunpack.c.l.b16 %v120
    %v673 = vunpack.c.l.b16 %v121
    %v674 = vunpack.c.l.b16 %v122
    %v675 = vunpack.c.l.b16 %v123
    %v676 = vunpack.c.l.b16 %v124
    %v677 = vunpack.c.l.b16 %v125
    %v678 = vunpack.c.l.b16 %v126
    %v679 = vunpack.c.l.b16 %v127
    %v680 = vunpack.c.l.b16 %v128
    %v681 = vunpack.c.l.b16 %v129
    %v682 = vunpack.c.l.b16 %v130
    %v683 = vunpack.c.l.b16 %v131
    %v684 = vunpack.c.l.b16 %v132
    %v685 = vunpack.c.l.b16 %v133
    %v686 = vunpack.c.l.b16 %v134
    %v687 = vunpack.c.l.b16 %v135
    %v688 = vunpack.c.l.b16 %v136
    %v689 = vunpack.c.l.b16 %v137
    %v690 = vunpack.c.l.b16 %v138
    %v691 = vunpack.c.l.b16 %v139
    %v692 = vunpack.c.l.b16 %v140
    %v693 = vunpack.c.l.b16 %v141
    %v694 = vunpack.c.l.b16 %v142
    %v695 = vunpack.c.l.b16 %v143
    %v696 = vunpack.c.l.b16 %v144
    %v697 = vunpack.c.l.b16 %v145
    %v698 = vunpack.c.l.b16 %v146
    %v699 = vunpack.c.l.b16 %v147
    %v700 = vunpack.c.l.b16 %v148
    %v701 = vunpack.c.l.b16 %v149
    %v702 = vunpack.c.l.b16 %v150
    %v703 = vunpack.c.l.b16 %v151
    %v704 = vunpack.c.l.b16 %v152
    %v705 = vunpack.c.l.b16 %v153
    %v706 = vunpack.c.l.b16 %v154
    %v707 = vunpack.c.l.b16 %v155
    %v708 = vunpack.c.l.b16 %v156
    %v709 = vunpack.c.l.b16 %v157
    %v710 = vunpack.c.l.b16 %v158
    %v711 = vunpack.c.l.b16 %v159
    %v712 = vunpack.c.l.b16 %v160
    %v713 = vunpack.c.l.b16 %v161
    %v714 = vunpack.c.l.b16 %v162
    %v715 = vunpack.c.l.b16 %v163
    %v716 = vunpack.c.l.b16 %v164
    %v717 = vunpack.c.l.b16 %v165
    %v718 = vunpack.c.l.b16 %v166
    %v719 = vunpack.c.l.b16 %v167
    %v720 = vunpack.c.l.b16 %v168
    %v721 = vunpack.c.l.b16 %v169
    %v722 = vunpack.c.l.b16 %v170
    %v723 = vunpack.c.l.b16 %v171
    %v724 = vunpack.c.l.b16 %v172
    %v725 = vunpack.c.l.b16 %v173
    %v726 = vunpack.c.l.b16 %v174
    %v727 = vunpack.c.l.b16 %v175
    %v728 = vunpack.c.l.b16 %v176
    %v729 = vunpack.c.l.b16 %v177
    %v730 = vunpack.c.l.b16 %v178
    %v731 = vunpack.c.l.b16 %v179
    %v732 = vunpack.c.l.b16 %v180
    %v733 = vunpack.c.l.b16 %v181
    %v734 = vunpack.c.l.b16 %v182
    %v735 = vunpack.c.l.b16 %v183
    %v736 = vunpack.c.l.b16 %v184
    %v737 = vunpack.c.l.b16 %v185
    %v738 = vunpack.c.l.b16 %v186
    %v739 = vunpack.c.l.b16 %v187
    %v740 = vunpack.c.l.b16 %v188
    %v741 = vunpack.c.l.b16 %v189
    %v742 = vunpack.c.l.b16 %v190
    %v743 = vunpack.c.l.b16 %v191
    %v744 = vunpack.c.l.b16 %v192
    %v745 = vunpack.c.l.b16 %v193
    %v746 = vunpack.c.l.b16 %v194
    %v747 = vunpack.c.l.b16 %v195
    %v748 = vunpack.c.l.b16 %v196
    %v749 = vunpack.c.l.b16 %v197
    %v750 = vunpack.c.l.b16 %v198
    %v751 = vunpack.c.l.b16 %v199
    %v752 = vunpack.c.l.b16 %v200
    %v753 = vunpack.c.l.b16 %v201
    %v754 = vunpack.c.l.b16 %v202
    %v755 = vunpack.c.l.b16 %v203
    %v756 = vunpack.c.l.b16 %v204
    %v757 = vunpack.c.l.b16 %v205
    %v758 = vunpack.c.l.b16 %v206
    %v759 = vunpack.c.l.b16 %v207
    %v760 = vunpack.c.l.b16 %v208
    %v761 = vunpack.c.l.b16 %v209
    %v762 = vunpack.c.l.b16 %v210
    %v763 = vunpack.c.l.b16 %v211
    %v764 = vunpack.c.l.b16 %v212
    %v765 = vunpack.c.l.b16 %v213
    %v766 = vunpack.c.l.b16 %v214
    %v767 = vunpack.c.l.b16 %v215
    %v768 = vunpack.c.l.b16 %v216
    %v769 = vunpack.c.l.b16 %v217
    %v770 = vunpack.c.l.b16 %v218
    %v771 = vunpack.c.l.b16 %v219
    %v772 = vunpack.c.l.b16 %v220
    %v773 = vunpack.c.l.b16 %v221
    %v774 = vunpack.c.l.b16 %v222
    %v775 = vunpack.c.l.b16 %v223
    %v776 = vunpack.c.l.b16 %v224
    %v777 = vunpack.c.l.b16 %v225
    %v778 = vunpack.c.l.b16 %v226
    %v779 = vunpack.c.l.b16 %v227
    %v780 = vunpack.c.l.b16 %v228
    %v781 = vunpack.c.l.b16 %v229
    %v782 = vunpack.c.l.b16 %v230
    %v783 = vunpack.c.l.b16 %v231
    %v784 = vunpack.c.l.b16 %v232
    %v785 = vunpack.c.l.b16 %v233
    %v786 = vunpack.c.l.b16 %v234
    %v787 = vunpack.c.l.b16 %v235
    %v788 = vunpack.c.l.b16 %v236
    %v789 = vunpack.c.l.b16 %v237
    %v790 = vunpack.c.l.b16 %v238
    %v791 = vunpack.c.l.b16 %v239
    %v792 = vunpack.c.l.b16 %v240
    %v793 = vunpack.c.l.b16 %v241
    %v794 = vunpack.c.l.b16 %v242
    %v795 = vunpack.c.l.b16 %v243
    %v796 = vunpack.c.l.b16 %v244
    %v797 = vunpack.c.l.b16 %v245
    %v798 = vunpack.c.l.b16 %v246
    %v799 = vunpack.c.l.b16 %v247
    %v800 = vunpack.c.l.b16 %v248
    %v801 = vunpack.c.l.b16 %v249
    %v802 = vunpack.c.l.b16 %v250
    %v803 = vunpack.c.l.b16 %v251
    %v804 = vunpack.c.l.b16 %v252
    %v805 = vunpack.c.l.b16 %v253
    %v806 = vunpack.c.l.b16 %v254
    %v807 = vunpack.c.l.b16 %v255
    %v808 = vunpack.c.l.b16 %v256
    %v809 = vunpack.c.l.b16 %v257
    %v810 = vunpack.c.l.b16 %v258
    %v811 = vunpack.c.l.b16 %v259
    %v812 = vunpack.c.l.b16 %v260
    %v813 = vunpack.c.l.b16 %v261
    %v814 = vunpack.c.l.b16 %v262
    %v815 = vunpack.c.l.b16 %v263
    %v816 = vunpack.c.l.b16 %v264
    %v817 = vunpack.c.l.b16 %v265
    %v818 = vunpack.c.l.b16 %v266
    %v819 = vunpack.c.l.b16 %v267
    %v820 = vunpack.c.l.b16 %v268
    %v821 = vunpack.c.l.b16 %v269
    %v822 = vunpack.c.l.b16 %v270
    %v823 = vunpack.c.l.b16 %v271
    %v824 = vunpack.c.l.b16 %v272
    %v825 = vpack.c.b16 %v570, %v569
    %v826 = vpack.c.b16 %v572, %v571
    %v827 = vpack.c.b16 %v574, %v573
    %v828 = vpack.c.b16 %v576, %v575
    %v829 = vpack.c.b16 %v578, %v577
    %v830 = vpack.c.b16 %v580, %v579
    %v831 = vpack.c.b16 %v582, %v581
    %v832 = vpack.c.b16 %v584, %v583
    %v833 = vpack.c.b16 %v586, %v585
    %v834 = vpack.c.b16 %v588, %v587
    %v835 = vpack.c.b16 %v590, %v589
    %v836 = vpack.c.b16 %v592, %v591
    %v837 = vpack.c.b16 %v594, %v593
    %v838 = vpack.c.b16 %v596, %v595
    %v839 = vpack.c.b16 %v598, %v597
    %v840 = vpack.c.b16 %v600, %v599
    %v841 = vpack.c.b16 %v602, %v601
    %v842 = vpack.c.b16 %v604, %v603
    %v843 = vpack.c.b16 %v606, %v605
    %v844 = vpack.c.b16 %v608, %v607
    %v845 = vpack.c.b16 %v610, %v609
    %v846 = vpack.c.b16 %v612, %v611
    %v847 = vpack.c.b16 %v614, %v613
    %v848 = vpack.c.b16 %v616, %v615
    %v849 = vpack.c.b16 %v618, %v617
    %v850 = vpack.c.b16 %v620, %v619
    %v851 = vpack.c.b16 %v622, %v621
    %v852 = vpack.c.b16 %v624, %v623
    %v853 = vpack.c.b16 %v626, %v625
    %v854 = vpack.c.b16 %v628, %v627
    %v855 = vpack.c.b16 %v630, %v629
    %v856 = vpack.c.b16 %v632, %v631
    %v857 = vpack.c.b16 %v634, %v633
    %v858 = vpack.c.b16 %v636, %v635
    %v859 = vpack.c.b16 %v638, %v637
    %v860 = vpack.c.b16 %v640, %v639
    %v861 = vpack.c.b16 %v642, %v641
    %v862 = vpack.c.b16 %v644, %v643
    %v863 = vpack.c.b16 %v646, %v645
    %v864 = vpack.c.b16 %v648, %v647
    %v865 = vpack.c.b16 %v650, %v649
    %v866 = vpack.c.b16 %v652, %v651
    %v867 = vpack.c.b16 %v654, %v653
    %v868 = vpack.c.b16 %v656, %v655
    %v869 = vpack.c.b16 %v658, %v657
    %v870 = vpack.c.b16 %v660, %v659
    %v871 = vpack.c.b16 %v662, %v661
    %v872 = vpack.c.b16 %v664, %v663
    %v873 = vpack.c.b16 %v666, %v665
    %v874 = vpack.c.b16 %v668, %v667
    %v875 = vpack.c.b16 %v670, %v669
    %v876 = vpack.c.b16 %v672, %v671
    %v877 = vpack.c.b16 %v674, %v673
    %v878 = vpack.c.b16 %v676, %v675
    %v879 = vpack.c.b16 %v678, %v677
    %v880 = vpack.c.b16 %v680, %v679
    %v881 = vpack.c.b16 %v682, %v681
    %v882 = vpack.c.b16 %v684, %v683
    %v883 = vpack.c.b16 %v686, %v685
    %v884 = vpack.c.b16 %v688, %v687
    %v885 = vpack.c.b16 %v690, %v689
    %v886 = vpack.c.b16 %v692, %v691
    %v887 = vpack.c.b16 %v694, %v693
    %v888 = vpack.c.b16 %v696, %v695
    %v889 = vpack.c.b16 %v698, %v697
    %v890 = vpack.c.b16 %v700, %v699
    %v891 = vpack.c.b16 %v702, %v701
    %v892 = vpack.c.b16 %v704, %v703
    %v893 = vpack.c.b16 %v706, %v705
    %v894 = vpack.c.b16 %v708, %v707
    %v895 = vpack.c.b16 %v710, %v709
    %v896 = vpack.c.b16 %v712, %v711
    %v897 = vpack.c.b16 %v714, %v713
    %v898 = vpack.c.b16 %v716, %v715
    %v899 = vpack.c.b16 %v718, %v717
    %v900 = vpack.c.b16 %v720, %v719
    %v901 = vpack.c.b16 %v722, %v721
    %v902 = vpack.c.b16 %v724, %v723
    %v903 = vpack.c.b16 %v726, %v725
    %v904 = vpack.c.b16 %v728, %v727
    %v905 = vpack.c.b16 %v730, %v729
    %v906 = vpack.c.b16 %v732, %v731
    %v907 = vpack.c.b16 %v734, %v733
    %v908 = vpack.c.b16 %v736, %v735
    %v909 = vpack.c.b16 %v738, %v737
    %v910 = vpack.c.b16 %v740, %v739
    %v911 = vpack.c.b16 %v742, %v741
    %v912 = vpack.c.b16 %v744, %v743
    %v913 = vpack.c.b16 %v746, %v745
    %v914 = vpack.c.b16 %v748, %v747
    %v915 = vpack.c.b16 %v750, %v749
    %v916 = vpack.c.b16 %v752, %v751
    %v917 = vpack.c.b16 %v754, %v753
    %v918 = vpack.c.b16 %v756, %v755
    %v919 = vpack.c.b16 %v758, %v757
    %v920 = vpack.c.b16 %v760, %v759
    %v921 = vpack.c.b16 %v762, %v761
    %v922 = vpack.c.b16 %v764, %v763
    %v923 = vpack.c.b16 %v766, %v765
    %v924 = vpack.c.b16 %v768, %v767
    %v925 = vpack.c.b16 %v770, %v769
    %v926 = vpack.c.b16 %v772, %v771
    %v927 = vpack.c.b16 %v774, %v773
    %v928 = vpack.c.b16 %v776, %v775
    %v929 = vpack.c.b16 %v778, %v777
    %v930 = vpack.c.b16 %v780, %v779
    %v931 = vpack.c.b16 %v782, %v781
    %v932 = vpack.c.b16 %v784, %v783
    %v933 = vpack.c.b16 %v786, %v785
    %v934 = vpack.c.b16 %v788, %v787
    %v935 = vpack.c.b16 %v790, %v789
    %v936 = vpack.c.b16 %v792, %v791
    %v937 = vpack.c.b16 %v794, %v793
    %v938 = vpack.c.b16 %v796, %v795
    %v939 = vpack.c.b16 %v798, %v797
    %v940 = vpack.c.b16 %v800, %v799
    %v941 = vpack.c.b16 %v802, %v801
    %v942 = vpack.c.b16 %v804, %v803
    %v943 = vpack.c.b16 %v806, %v805
    %v944 = vpack.c.b16 %v808, %v807
    %v945 = vpack.c.b16 %v810, %v809
    %v946 = vpack.c.b16 %v812, %v811
    %v947 = vpack.c.b16 %v814, %v813
    %v948 = vpack.c.b16 %v816, %v815
    %v949 = vpack.c.b16 %v818, %v817
    %v950 = vpack.c.b16 %v820, %v819
    %v951 = vpack.c.b16 %v822, %v821
    %v952 = vpack.c.b16 %v824, %v823
    %1081 = vmatpush.bf16.msra.mxu0 %v832
    %1082 = vmatpush.bf16.msra.mxu0 %v831
    %1083 = vmatpush.bf16.msra.mxu0 %v830
    %1084 = vmatpush.bf16.msra.mxu0 %v829
    %1085 = vmatpush.bf16.msra.mxu0 %v828
    %1086 = vmatpush.bf16.msra.mxu0 %v827
    %1087 = vmatpush.bf16.msra.mxu0 %v826
    %1088 = vmatpush.bf16.msra.mxu0 %v825
    %1089 = vmatmul.bf16.gmra.mxu0 %v279
    %v1090 = vpop.f32.mrf.mxu0
    %v1091 = vadd.f32 %v275, %v1090
    %v1092 = vpop.f32.mrf.mxu0
    %1093 = vdwg.mxu0
    %1094 = vmatpush.bf16.msra.mxu0 %v840
    %1095 = vmatpush.bf16.msra.mxu0 %v839
    %1096 = vmatpush.bf16.msra.mxu0 %v838
    %1097 = vmatpush.bf16.msra.mxu0 %v837
    %1098 = vmatpush.bf16.msra.mxu0 %v836
    %1099 = vmatpush.bf16.msra.mxu0 %v835
    %1100 = vmatpush.bf16.msra.mxu0 %v834
    %1101 = vmatpush.bf16.msra.mxu0 %v833
    %1102 = vmatmul.bf16.gmra.mxu0 %v280
    %v1103 = vpop.f32.mrf.mxu0
    %v1104 = vadd.f32 %v1091, %v1103
    %v1105 = vpop.f32.mrf.mxu0
    %1106 = vdwg.mxu0
    %1107 = vmatpush.bf16.msra.mxu0 %v848
    %1108 = vmatpush.bf16.msra.mxu0 %v847
    %1109 = vmatpush.bf16.msra.mxu0 %v846
    %1110 = vmatpush.bf16.msra.mxu0 %v845
    %1111 = vmatpush.bf16.msra.mxu0 %v844
    %1112 = vmatpush.bf16.msra.mxu0 %v843
    %1113 = vmatpush.bf16.msra.mxu0 %v842
    %1114 = vmatpush.bf16.msra.mxu0 %v841
    %1115 = vmatmul.bf16.gmra.mxu0 %v281
    %v1116 = vpop.f32.mrf.mxu0
    %v1117 = vadd.f32 %v1104, %v1116
    %v1118 = vpop.f32.mrf.mxu0
    %1119 = vdwg.mxu0
    %1120 = vmatpush.bf16.msra.mxu0 %v856
    %1121 = vmatpush.bf16.msra.mxu0 %v855
    %1122 = vmatpush.bf16.msra.mxu0 %v854
    %1123 = vmatpush.bf16.msra.mxu0 %v853
    %1124 = vmatpush.bf16.msra.mxu0 %v852
    %1125 = vmatpush.bf16.msra.mxu0 %v851
    %1126 = vmatpush.bf16.msra.mxu0 %v850
    %1127 = vmatpush.bf16.msra.mxu0 %v849
    %1128 = vmatmul.bf16.gmra.mxu0 %v282
    %v1129 = vpop.f32.mrf.mxu0
    %v1130 = vadd.f32 %v1117, %v1129
    %v1131 = vpop.f32.mrf.mxu0
    %1132 = vdwg.mxu0
    %1133 = vmatpush.bf16.msra.mxu0 %v864
    %1134 = vmatpush.bf16.msra.mxu0 %v863
    %1135 = vmatpush.bf16.msra.mxu0 %v862
    %1136 = vmatpush.bf16.msra.mxu0 %v861
    %1137 = vmatpush.bf16.msra.mxu0 %v860
    %1138 = vmatpush.bf16.msra.mxu0 %v859
    %1139 = vmatpush.bf16.msra.mxu0 %v858
    %1140 = vmatpush.bf16.msra.mxu0 %v857
    %1141 = vmatmul.bf16.gmra.mxu0 %v283
    %v1142 = vpop.f32.mrf.mxu0
    %v1143 = vadd.f32 %v1130, %v1142
    %v1144 = vpop.f32.mrf.mxu0
    %1145 = vdwg.mxu0
    %1146 = vmatpush.bf16.msra.mxu0 %v872
    %1147 = vmatpush.bf16.msra.mxu0 %v871
    %1148 = vmatpush.bf16.msra.mxu0 %v870
    %1149 = vmatpush.bf16.msra.mxu0 %v869
    %1150 = vmatpush.bf16.msra.mxu0 %v868
    %1151 = vmatpush.bf16.msra.mxu0 %v867
    %1152 = vmatpush.bf16.msra.mxu0 %v866
    %1153 = vmatpush.bf16.msra.mxu0 %v865
    %1154 = vmatmul.bf16.gmra.mxu0 %v284
    %v1155 = vpop.f32.mrf.mxu0
    %v1156 = vadd.f32 %v1143, %v1155
    %v1157 = vpop.f32.mrf.mxu0
    %1158 = vdwg.mxu0
    %1159 = vmatpush.bf16.msra.mxu0 %v880
    %1160 = vmatpush.bf16.msra.mxu0 %v879
    %1161 = vmatpush.bf16.msra.mxu0 %v878
    %1162 = vmatpush.bf16.msra.mxu0 %v877
    %1163 = vmatpush.bf16.msra.mxu0 %v876
    %1164 = vmatpush.bf16.msra.mxu0 %v875
    %1165 = vmatpush.bf16.msra.mxu0 %v874
    %1166 = vmatpush.bf16.msra.mxu0 %v873
    %1167 = vmatmul.bf16.gmra.mxu0 %v285
    %v1168 = vpop.f32.mrf.mxu0
    %v1169 = vadd.f32 %v1156, %v1168
    %v1170 = vpop.f32.mrf.mxu0
    %1171 = vdwg.mxu0
    %1172 = vmatpush.bf16.msra.mxu0 %v888
    %1173 = vmatpush.bf16.msra.mxu0 %v887
    %1174 = vmatpush.bf16.msra.mxu0 %v886
    %1175 = vmatpush.bf16.msra.mxu0 %v885
    %1176 = vmatpush.bf16.msra.mxu0 %v884
    %1177 = vmatpush.bf16.msra.mxu0 %v883
    %1178 = vmatpush.bf16.msra.mxu0 %v882
    %1179 = vmatpush.bf16.msra.mxu0 %v881
    %1180 = vmatmul.bf16.gmra.mxu0 %v286
    %v1181 = vpop.f32.mrf.mxu0
    %v1182 = vadd.f32 %v1169, %v1181
    %v1183 = vpop.f32.mrf.mxu0
    %1184 = vdwg.mxu0
    %1185 = vmatpush.bf16.msra.mxu0 %v896
    %1186 = vmatpush.bf16.msra.mxu0 %v895
    %1187 = vmatpush.bf16.msra.mxu0 %v894
    %1188 = vmatpush.bf16.msra.mxu0 %v893
    %1189 = vmatpush.bf16.msra.mxu0 %v892
    %1190 = vmatpush.bf16.msra.mxu0 %v891
    %1191 = vmatpush.bf16.msra.mxu0 %v890
    %1192 = vmatpush.bf16.msra.mxu0 %v889
    %1193 = vmatmul.bf16.gmra.mxu0 %v289
    %v1194 = vpop.f32.mrf.mxu0
    %v1195 = vadd.f32 %v1182, %v1194
    %v1196 = vpop.f32.mrf.mxu0
    %1197 = vdwg.mxu0
    %1198 = vmatpush.bf16.msra.mxu0 %v904
    %1199 = vmatpush.bf16.msra.mxu0 %v903
    %1200 = vmatpush.bf16.msra.mxu0 %v902
    %1201 = vmatpush.bf16.msra.mxu0 %v901
    %1202 = vmatpush.bf16.msra.mxu0 %v900
    %1203 = vmatpush.bf16.msra.mxu0 %v899
    %1204 = vmatpush.bf16.msra.mxu0 %v898
    %1205 = vmatpush.bf16.msra.mxu0 %v897
    %1206 = vmatmul.bf16.gmra.mxu0 %v290
    %v1207 = vpop.f32.mrf.mxu0
    %v1208 = vadd.f32 %v1195, %v1207
    %v1209 = vpop.f32.mrf.mxu0
    %1210 = vdwg.mxu0
    %1211 = vmatpush.bf16.msra.mxu0 %v912
    %1212 = vmatpush.bf16.msra.mxu0 %v911
    %1213 = vmatpush.bf16.msra.mxu0 %v910
    %1214 = vmatpush.bf16.msra.mxu0 %v909
    %1215 = vmatpush.bf16.msra.mxu0 %v908
    %1216 = vmatpush.bf16.msra.mxu0 %v907
    %1217 = vmatpush.bf16.msra.mxu0 %v906
    %1218 = vmatpush.bf16.msra.mxu0 %v905
    %1219 = vmatmul.bf16.gmra.mxu0 %v291
    %v1220 = vpop.f32.mrf.mxu0
    %v1221 = vadd.f32 %v1208, %v1220
    %v1222 = vpop.f32.mrf.mxu0
    %1223 = vdwg.mxu0
    %1224 = vmatpush.bf16.msra.mxu0 %v920
    %1225 = vmatpush.bf16.msra.mxu0 %v919
    %1226 = vmatpush.bf16.msra.mxu0 %v918
    %1227 = vmatpush.bf16.msra.mxu0 %v917
    %1228 = vmatpush.bf16.msra.mxu0 %v916
    %1229 = vmatpush.bf16.msra.mxu0 %v915
    %1230 = vmatpush.bf16.msra.mxu0 %v914
    %1231 = vmatpush.bf16.msra.mxu0 %v913
    %1232 = vmatmul.bf16.gmra.mxu0 %v292
    %v1233 = vpop.f32.mrf.mxu0
    %v1234 = vadd.f32 %v1221, %v1233
    %v1235 = vpop.f32.mrf.mxu0
    %1236 = vdwg.mxu0
    %1237 = vmatpush.bf16.msra.mxu0 %v928
    %1238 = vmatpush.bf16.msra.mxu0 %v927
    %1239 = vmatpush.bf16.msra.mxu0 %v926
    %1240 = vmatpush.bf16.msra.mxu0 %v925
    %1241 = vmatpush.bf16.msra.mxu0 %v924
    %1242 = vmatpush.bf16.msra.mxu0 %v923
    %1243 = vmatpush.bf16.msra.mxu0 %v922
    %1244 = vmatpush.bf16.msra.mxu0 %v921
    %1245 = vmatmul.bf16.gmra.mxu0 %v293
    %v1246 = vpop.f32.mrf.mxu0
    %v1247 = vadd.f32 %v1234, %v1246
    %v1248 = vpop.f32.mrf.mxu0
    %1249 = vdwg.mxu0
    %1250 = vmatpush.bf16.msra.mxu0 %v936
    %1251 = vmatpush.bf16.msra.mxu0 %v935
    %1252 = vmatpush.bf16.msra.mxu0 %v934
    %1253 = vmatpush.bf16.msra.mxu0 %v933
    %1254 = vmatpush.bf16.msra.mxu0 %v932
    %1255 = vmatpush.bf16.msra.mxu0 %v931
    %1256 = vmatpush.bf16.msra.mxu0 %v930
    %1257 = vmatpush.bf16.msra.mxu0 %v929
    %1258 = vmatmul.bf16.gmra.mxu0 %v294
    %v1259 = vpop.f32.mrf.mxu0
    %v1260 = vadd.f32 %v1247, %v1259
    %v1261 = vpop.f32.mrf.mxu0
    %1262 = vdwg.mxu0
    %1263 = vmatpush.bf16.msra.mxu0 %v944
    %1264 = vmatpush.bf16.msra.mxu0 %v943
    %1265 = vmatpush.bf16.msra.mxu0 %v942
    %1266 = vmatpush.bf16.msra.mxu0 %v941
    %1267 = vmatpush.bf16.msra.mxu0 %v940
    %1268 = vmatpush.bf16.msra.mxu0 %v939
    %1269 = vmatpush.bf16.msra.mxu0 %v938
    %1270 = vmatpush.bf16.msra.mxu0 %v937
    %1271 = vmatmul.bf16.gmra.mxu0 %v295
    %v1272 = vpop.f32.mrf.mxu0
    %v1273 = vadd.f32 %v1260, %v1272
    %v1274 = vpop.f32.mrf.mxu0
    %1275 = vdwg.mxu0
    %1276 = vmatpush.bf16.msra.mxu0 %v952
    %1277 = vmatpush.bf16.msra.mxu0 %v951
    %1278 = vmatpush.bf16.msra.mxu0 %v950
    %1279 = vmatpush.bf16.msra.mxu0 %v949
    %1280 = vmatpush.bf16.msra.mxu0 %v948
    %1281 = vmatpush.bf16.msra.mxu0 %v947
    %1282 = vmatpush.bf16.msra.mxu0 %v946
    %1283 = vmatpush.bf16.msra.mxu0 %v945
    %1284 = vmatmul.bf16.gmra.mxu0 %v296
    %v1285 = vpop.f32.mrf.mxu0
    %v1286 = vadd.f32 %v1273, %v1285
    %v1287 = vpop.f32.mrf.mxu0
    %1288 = vdwg.mxu0
    %1289 = vst [vmem:[#allocation2] sm:$0x3] %v1286
    // Predicated region
    $region14: #{net_forward.13} parent=1 // pred_check
      _
    $region15: #{net_forward.13} parent=1 // pred_check_branch
      %1291 = sbr.rel (0) target = $region17
    $region16: #{net_forward.13} parent=1 // pred_region
      %1293 = vsyncadd [#allocation3], 0
      %s1295 = sshll.u32 [#allocation2], 4
      %s1296 = int_to_ptr.vmem [resolvable:$true] %s1295
      %s1297 = sshll.u32 %s3, 4
      %s1298 = int_to_ptr.hbm [resolvable:$true] %s1297
      %1300 = dma.vmem_to_hbm [thread:$0]  %s1296, 32, %s1298, [#allocation3]
    $region17: #{net_forward.13} parent=1 // pred_fallthru
      _
    // Predicated region
    $region18: #{net_forward.13} parent=1 // pred_check
      _
    $region19: #{net_forward.13} parent=1 // pred_check_branch
      %1302 = sbr.rel (0) target = $region21
    $region20: #{net_forward.13} parent=1 // pred_region
      %1304 = dma.done [#allocation3], 32
    $region21: #{net_forward.13} parent=1 // pred_fallthru
      _
    %1305 = vsyncpa [#allocation3], 1

</llo_original>
